<compile_context>
chip_gen: v7x
topology: tpu7x:2x2x1
jax: 0.10.0
libtpu: 0.0.40
codegen_flags: <defaults>
</compile_context>

<pallas_src>
import functools

import jax
import jax.numpy as jnp
from jax.experimental import pallas as pl
from jax.experimental.pallas import tpu as pltpu

_HIGHEST = jax.lax.Precision.HIGHEST

# VMEM cost per batch row for the pipeline buffers of this kernel:
#   (2 input buffers + 2 output buffers) * 128 lane-padded f32 = 2 KiB / row.
_VMEM_BYTES_PER_ROW = (2 + 2) * 128 * 4


def _mlp_kernel(x_ref, w1_ref, b1_ref, w2_ref, b2_ref, w3_ref, b3_ref, o_ref):
    # x_ref: [TB, 3] batch-major tile; weights are pre-transposed to [in, out],
    # biases pre-reshaped to [1, out] (broadcast over rows).
    x = x_ref[...]
    # Layer 1: Linear(3 -> 20) + ReLU     -> [TB, 20]
    h1 = jnp.dot(x, w1_ref[...], preferred_element_type=jnp.float32,
                 precision=_HIGHEST)
    h1 = jnp.maximum(h1 + b1_ref[...], 0.0)
    # Layer 2: Linear(20 -> 10) + ReLU    -> [TB, 10]
    h2 = jnp.dot(h1, w2_ref[...], preferred_element_type=jnp.float32,
                 precision=_HIGHEST)
    h2 = jnp.maximum(h2 + b2_ref[...], 0.0)
    # Layer 3: Linear(10 -> 3), no act    -> [TB, 3]
    out = jnp.dot(h2, w3_ref[...], preferred_element_type=jnp.float32,
                  precision=_HIGHEST)
    o_ref[...] = (out + b3_ref[...]).astype(o_ref.dtype)


def _round_up(n, m):
    return ((n + m - 1) // m) * m


@functools.lru_cache(maxsize=1)
def _vmem_capacity_bytes():
    """Per-core physical VMEM; falls back to the smallest listed generation (v7x)."""
    try:
        return int(pltpu.get_tpu_info().vmem_capacity_bytes)
    except Exception:
        return 64 << 20


def _pick_tile(batch, tb):
    """Batch tile: multiple of 128, capped by a ~60%-of-VMEM budget for the
    double-buffered (TB, 3) input/output blocks, and no larger than the batch."""
    tb = max(128, _round_up(tb, 128))
    cap_rows = int(0.6 * _vmem_capacity_bytes()) // _VMEM_BYTES_PER_ROW
    cap_rows = max(128, (cap_rows // 128) * 128)
    TB = min(tb, cap_rows, _round_up(batch, 128))
    # Keep >= 2 grid steps once the batch is big enough that halving the tile
    # still leaves fat (>= 8K row) tiles: lets v7x's two TensorCores both work.
    if batch >= 2 * 8192:
        TB = min(TB, _round_up((batch + 1) // 2, 128))
    return TB


def prepare_params(params):
    """One-time conversion of PyTorch-style params to kernel operands:
    weights [out, in] -> [in, out]; biases [out] -> [1, out]."""
    (w1, b1), (w2, b2), (w3, b3) = params["l1"], params["l2"], params["l3"]
    return (w1.T, b1[None, :], w2.T, b2[None, :], w3.T, b3[None, :])


@functools.partial(jax.jit, static_argnames=("tb",))
def mlp_forward_pallas(x, prepared, *, tb=16384):
    """x: [batch, 3] float32.  prepared: output of prepare_params()."""
    w1, b1, w2, b2, w3, b3 = prepared
    B, in_dim = x.shape
    out_dim = w3.shape[1]

    TB = _pick_tile(B, tb)
    grid = (pl.cdiv(B, TB),)

    # Raise the scoped VMEM limit to cover the double-buffered tiles (+ margin),
    # but never above ~90% of this generation's physical VMEM.
    vmem_limit = _VMEM_BYTES_PER_ROW * TB + (8 << 20)
    vmem_limit = int(min(max(vmem_limit, 16 << 20), 0.9 * _vmem_capacity_bytes()))

    const = lambda shape: pl.BlockSpec(shape, lambda i: (0, 0))  # VMEM-resident

    return pl.pallas_call(
        _mlp_kernel,
        out_shape=jax.ShapeDtypeStruct((B, out_dim), x.dtype),
        grid=grid,
        in_specs=[
            pl.BlockSpec((TB, in_dim), lambda i: (i, 0)),   # streamed x tile
            const(w1.shape), const(b1.shape),
            const(w2.shape), const(b2.shape),
            const(w3.shape), const(b3.shape),
        ],
        out_specs=pl.BlockSpec((TB, out_dim), lambda i: (i, 0)),
        compiler_params=pltpu.CompilerParams(
            dimension_semantics=("parallel",),
            vmem_limit_bytes=vmem_limit),
    )(x, w1, b1, w2, b2, w3, b3)


@jax.jit
def _mlp_fused_xla(x, prepared):
    """Small-batch fast path: one fused XLA chain, no pallas_call launch."""
    w1, b1, w2, b2, w3, b3 = prepared
    h = jnp.maximum(jnp.dot(x, w1, precision=_HIGHEST) + b1, 0.0)
    h = jnp.maximum(jnp.dot(h, w2, precision=_HIGHEST) + b2, 0.0)
    return jnp.dot(h, w3, precision=_HIGHEST) + b3


def mlp_forward(x, prepared, *, tb=16384, small_batch_threshold=1024):
    """Dispatcher: fused XLA below the threshold, Pallas streaming kernel above."""
    if x.shape[0] < small_batch_threshold:
        return _mlp_fused_xla(x, prepared)
    return mlp_forward_pallas(x, prepared, tb=tb)


def init_params(key, input_dim=3, output_dim=3, hidden_layers=(20, 10)):
    """Deterministic init mimicking PyTorch nn.Linear default:
    U(-1/sqrt(fan_in), 1/sqrt(fan_in)) for weight ([out, in]) and bias."""
    dims = [input_dim, *hidden_layers, output_dim]
    params = {}
    for i, (fan_in, fan_out) in enumerate(zip(dims[:-1], dims[1:]), start=1):
        key, kw, kb = jax.random.split(key, 3)
        bound = 1.0 / jnp.sqrt(float(fan_in))
        w = jax.random.uniform(kw, (fan_out, fan_in), jnp.float32, -bound, bound)
        b = jax.random.uniform(kb, (fan_out,), jnp.float32, -bound, bound)
        params[f"l{i}"] = (w, b)
    return params


def mlp_reference(x, params):
    (w1, b1), (w2, b2), (w3, b3) = params["l1"], params["l2"], params["l3"]
    h = jnp.maximum(jnp.dot(x, w1.T, precision=_HIGHEST) + b1, 0.0)
    h = jnp.maximum(jnp.dot(h, w2.T, precision=_HIGHEST) + b2, 0.0)
    return jnp.dot(h, w3.T, precision=_HIGHEST) + b3


if __name__ == "__main__":
    key = jax.random.PRNGKey(0)
    params = init_params(key, input_dim=3, output_dim=3, hidden_layers=(20, 10))
    prepared = prepare_params(params)   # hoisted out of the per-call path

    # 1) Small batch through the Pallas kernel (single partial tile).
    key, kx = jax.random.split(key)
    x = jax.random.uniform(kx, (8, 3), jnp.float32, 0.2, 2.9)
    out = jax.block_until_ready(mlp_forward_pallas(x, prepared))
    ref = mlp_reference(x, params)
    assert out.shape == (8, 3)
    assert jnp.allclose(out, ref, atol=1e-5, rtol=1e-5), "mismatch vs JAX reference (B=8)"

    # 2) Batch not a tile multiple -> multi-tile grid + masked tail tile.
    key, kx2 = jax.random.split(key)
    x2 = jax.random.uniform(kx2, (300, 3), jnp.float32, 0.2, 2.9)
    out2 = jax.block_until_ready(mlp_forward_pallas(x2, prepared, tb=128))
    assert jnp.allclose(out2, mlp_reference(x2, params), atol=1e-5, rtol=1e-5), \
        "mismatch vs JAX reference (B=300)"

    # 3) Multi-tile parallel grid (tb rounded to 128 internally even if odd).
    key, kx3 = jax.random.split(key)
    x3 = jax.random.uniform(kx3, (1024, 3), jnp.float32, 0.2, 2.9)
    out3 = jax.block_until_ready(mlp_forward_pallas(x3, prepared, tb=200))
    assert jnp.allclose(out3, mlp_reference(x3, params), atol=1e-5, rtol=1e-5), \
        "mismatch vs JAX reference (B=1024)"

    # 4) Dispatcher: small batch takes the fused-XLA fast path.
    out4 = jax.block_until_ready(mlp_forward(x, prepared))
    assert jnp.allclose(out4, ref, atol=1e-5, rtol=1e-5), "mismatch on fast path"

    print("KERNEL_OK")
</pallas_src>

<mosaic_0001>
module attributes {stable_mosaic.version = 11 : i64} {
  func.func @_mlp_kernel(%arg0: i32, %arg1: memref<128x3xf32, #tpu.memory_space<vmem>>, %arg2: memref<3x20xf32, #tpu.memory_space<vmem>>, %arg3: memref<1x20xf32, #tpu.memory_space<vmem>>, %arg4: memref<20x10xf32, #tpu.memory_space<vmem>>, %arg5: memref<1x10xf32, #tpu.memory_space<vmem>>, %arg6: memref<10x3xf32, #tpu.memory_space<vmem>>, %arg7: memref<1x3xf32, #tpu.memory_space<vmem>>, %arg8: memref<128x3xf32, #tpu.memory_space<vmem>>) attributes {dimension_semantics = [#tpu.dimension_semantics<parallel>], iteration_bounds = array<i64: 1>, scalar_prefetch = 0 : i64, scratch_operands = 0 : i64, tpu.core_type = #tpu.core_type<tc>, window_params = [{transform_indices = @transform_0, window_bounds = array<i64: 128, 3>}, {pipeline_mode = #tpu.pipeline_mode<synchronous>, transform_indices = @transform_1, window_bounds = array<i64: 3, 20>}, {pipeline_mode = #tpu.pipeline_mode<synchronous>, transform_indices = @transform_2, window_bounds = array<i64: 1, 20>}, {pipeline_mode = #tpu.pipeline_mode<synchronous>, transform_indices = @transform_3, window_bounds = array<i64: 20, 10>}, {pipeline_mode = #tpu.pipeline_mode<synchronous>, transform_indices = @transform_4, window_bounds = array<i64: 1, 10>}, {pipeline_mode = #tpu.pipeline_mode<synchronous>, transform_indices = @transform_5, window_bounds = array<i64: 10, 3>}, {pipeline_mode = #tpu.pipeline_mode<synchronous>, transform_indices = @transform_6, window_bounds = array<i64: 1, 3>}, {transform_indices = @transform_7, window_bounds = array<i64: 128, 3>}]} {
    %c0 = arith.constant 0 : index
    %c0_0 = arith.constant 0 : index
    %0 = vector.load %arg1[%c0, %c0_0] : memref<128x3xf32, #tpu.memory_space<vmem>>, vector<128x3xf32>
    %c0_1 = arith.constant 0 : index
    %c0_2 = arith.constant 0 : index
    %1 = vector.load %arg2[%c0_1, %c0_2] : memref<3x20xf32, #tpu.memory_space<vmem>>, vector<3x20xf32>
    %cst = arith.constant dense<0.000000e+00> : vector<128x20xf32>
    %2 = tpu.matmul %0, %1, %cst {dimension_numbers = #tpu.dot_dimension_numbers<[1], [0], [0], [1], [0, 0, 1, 1], [], []>, precision = #tpu.contract_precision<fp32>} : vector<128x3xf32>, vector<3x20xf32>, vector<128x20xf32> -> vector<128x20xf32>
    %c0_3 = arith.constant 0 : index
    %c0_4 = arith.constant 0 : index
    %3 = vector.load %arg3[%c0_3, %c0_4] : memref<1x20xf32, #tpu.memory_space<vmem>>, vector<1x20xf32>
    %4 = vector.broadcast %3 : vector<1x20xf32> to vector<128x20xf32>
    %5 = arith.addf %2, %4 : vector<128x20xf32>
    %cst_5 = arith.constant 0.000000e+00 : f32
    %6 = vector.broadcast %cst_5 : f32 to vector<128x20xf32>
    %7 = arith.maximumf %5, %6 : vector<128x20xf32>
    %c0_6 = arith.constant 0 : index
    %c0_7 = arith.constant 0 : index
    %8 = vector.load %arg4[%c0_6, %c0_7] : memref<20x10xf32, #tpu.memory_space<vmem>>, vector<20x10xf32>
    %cst_8 = arith.constant dense<0.000000e+00> : vector<128x10xf32>
    %9 = tpu.matmul %7, %8, %cst_8 {dimension_numbers = #tpu.dot_dimension_numbers<[1], [0], [0], [1], [0, 0, 1, 1], [], []>, precision = #tpu.contract_precision<fp32>} : vector<128x20xf32>, vector<20x10xf32>, vector<128x10xf32> -> vector<128x10xf32>
    %c0_9 = arith.constant 0 : index
    %c0_10 = arith.constant 0 : index
    %10 = vector.load %arg5[%c0_9, %c0_10] : memref<1x10xf32, #tpu.memory_space<vmem>>, vector<1x10xf32>
    %11 = vector.broadcast %10 : vector<1x10xf32> to vector<128x10xf32>
    %12 = arith.addf %9, %11 : vector<128x10xf32>
    %cst_11 = arith.constant 0.000000e+00 : f32
    %13 = vector.broadcast %cst_11 : f32 to vector<128x10xf32>
    %14 = arith.maximumf %12, %13 : vector<128x10xf32>
    %c0_12 = arith.constant 0 : index
    %c0_13 = arith.constant 0 : index
    %15 = vector.load %arg6[%c0_12, %c0_13] : memref<10x3xf32, #tpu.memory_space<vmem>>, vector<10x3xf32>
    %cst_14 = arith.constant dense<0.000000e+00> : vector<128x3xf32>
    %16 = tpu.matmul %14, %15, %cst_14 {dimension_numbers = #tpu.dot_dimension_numbers<[1], [0], [0], [1], [0, 0, 1, 1], [], []>, precision = #tpu.contract_precision<fp32>} : vector<128x10xf32>, vector<10x3xf32>, vector<128x3xf32> -> vector<128x3xf32>
    %c0_15 = arith.constant 0 : index
    %c0_16 = arith.constant 0 : index
    %17 = vector.load %arg7[%c0_15, %c0_16] : memref<1x3xf32, #tpu.memory_space<vmem>>, vector<1x3xf32>
    %18 = vector.broadcast %17 : vector<1x3xf32> to vector<128x3xf32>
    %19 = arith.addf %16, %18 : vector<128x3xf32>
    %c0_17 = arith.constant 0 : index
    %c0_18 = arith.constant 0 : index
    %20 = vector.load %arg8[%c0_17, %c0_18] : memref<128x3xf32, #tpu.memory_space<vmem>>, vector<128x3xf32>
    tpu.vector_store %arg8[%c0_17, %c0_18], %19 {strides = array<i32>} : memref<128x3xf32, #tpu.memory_space<vmem>>, vector<128x3xf32>,
    return
  }
  func.func @transform_0(%arg0: i32) -> (i32, i32) {
    %c0_i32 = arith.constant 0 : i32
    %c0_i32_0 = arith.constant 0 : i32
    return %arg0, %c0_i32 : i32, i32
  }
  func.func @transform_1(%arg0: i32) -> (i32, i32) {
    %c0_i32 = arith.constant 0 : i32
    %c0_i32_0 = arith.constant 0 : i32
    %c0_i32_1 = arith.constant 0 : i32
    return %c0_i32, %c0_i32_0 : i32, i32
  }
  func.func @transform_2(%arg0: i32) -> (i32, i32) {
    %c0_i32 = arith.constant 0 : i32
    %c0_i32_0 = arith.constant 0 : i32
    %c0_i32_1 = arith.constant 0 : i32
    return %c0_i32, %c0_i32_0 : i32, i32
  }
  func.func @transform_3(%arg0: i32) -> (i32, i32) {
    %c0_i32 = arith.constant 0 : i32
    %c0_i32_0 = arith.constant 0 : i32
    %c0_i32_1 = arith.constant 0 : i32
    return %c0_i32, %c0_i32_0 : i32, i32
  }
  func.func @transform_4(%arg0: i32) -> (i32, i32) {
    %c0_i32 = arith.constant 0 : i32
    %c0_i32_0 = arith.constant 0 : i32
    %c0_i32_1 = arith.constant 0 : i32
    return %c0_i32, %c0_i32_0 : i32, i32
  }
  func.func @transform_5(%arg0: i32) -> (i32, i32) {
    %c0_i32 = arith.constant 0 : i32
    %c0_i32_0 = arith.constant 0 : i32
    %c0_i32_1 = arith.constant 0 : i32
    return %c0_i32, %c0_i32_0 : i32, i32
  }
  func.func @transform_6(%arg0: i32) -> (i32, i32) {
    %c0_i32 = arith.constant 0 : i32
    %c0_i32_0 = arith.constant 0 : i32
    %c0_i32_1 = arith.constant 0 : i32
    return %c0_i32, %c0_i32_0 : i32, i32
  }
  func.func @transform_7(%arg0: i32) -> (i32, i32) {
    %c0_i32 = arith.constant 0 : i32
    %c0_i32_0 = arith.constant 0 : i32
    return %arg0, %c0_i32 : i32, i32
  }
}

</mosaic_0001>

<llo_original>
// kernel: mlp_forward_pallas.1
$region0: #{mlp_forward_pallas.1}
  #allocation0 [shape = 'u32[]', space=smem, size = 0x4, offset = 0x4, fixed_abs, tag = 'smem constant byte address 0x4 - core index']
  #allocation1 [shape = 'u32[144,128]{1,0:T(1,128)}', space=vmem, size = 0x12000, scoped, tag = 'internal scratch']
  %s0 = inlined_call_operand.vmem [shape: f32[8,3], index: 0, kind: input, shape index: {}]
  %s1 = inlined_call_operand.vmem [shape: f32[3,20], index: 1, kind: input, shape index: {}]
  %s2 = inlined_call_operand.vmem [shape: f32[1,20], index: 2, kind: input, shape index: {}]
  %s3 = inlined_call_operand.vmem [shape: f32[20,10], index: 3, kind: input, shape index: {}]
  %s4 = inlined_call_operand.vmem [shape: f32[1,10], index: 4, kind: input, shape index: {}]
  %s5 = inlined_call_operand.vmem [shape: f32[10,3], index: 5, kind: input, shape index: {}]
  %s6 = inlined_call_operand.vmem [shape: f32[1,3], index: 6, kind: input, shape index: {}]
  %s7 = inlined_call_operand.vmem [shape: f32[8,3], index: 7, kind: output, shape index: {}]
  %s8 = sld [smem:[#allocation0]]
  $region72: #{mlp_forward_pallas.1} parent=0
    _
  %s10 = ssub.s32 1, %s8
  %s11 = scalar_select 0, %s10, %s8
  $region1: #{mlp_forward_pallas.1} parent=0
    #allocation2 [shape = 'u8[65536]{0}', space=vmem, size = 0x10000, scoped, tag = 'output window, operand 0, single buffered']
    // Predicated region
    $region2: #{mlp_forward_pallas.1} parent=1 // pred_check
      _
    $region3: #{mlp_forward_pallas.1} parent=1 // pred_check_branch
      %13 = sbr.rel (0) target = $region5
    $region4: #{mlp_forward_pallas.1} parent=1 // pred_region
      _
    $region5: #{mlp_forward_pallas.1} parent=1 // pred_fallthru
      _
    // Predicated region
    $region6: #{mlp_forward_pallas.1} parent=1 // pred_check
      _
    $region7: #{mlp_forward_pallas.1} parent=1 // pred_check_branch
      %15 = sbr.rel (0) target = $region9
    $region8: #{mlp_forward_pallas.1} parent=1 // pred_region
      _
    $region9: #{mlp_forward_pallas.1} parent=1 // pred_fallthru
      _
    // Predicated region
    $region10: #{mlp_forward_pallas.1} parent=1 // pred_check
      _
    $region11: #{mlp_forward_pallas.1} parent=1 // pred_check_branch
      %17 = sbr.rel (0) target = $region13
    $region12: #{mlp_forward_pallas.1} parent=1 // pred_region
      _
    $region13: #{mlp_forward_pallas.1} parent=1 // pred_fallthru
      _
    // Predicated region
    $region14: #{mlp_forward_pallas.1} parent=1 // pred_check
      _
    $region15: #{mlp_forward_pallas.1} parent=1 // pred_check_branch
      %19 = sbr.rel (0) target = $region17
    $region16: #{mlp_forward_pallas.1} parent=1 // pred_region
      _
    $region17: #{mlp_forward_pallas.1} parent=1 // pred_fallthru
      _
    // Predicated region
    $region18: #{mlp_forward_pallas.1} parent=1 // pred_check
      _
    $region19: #{mlp_forward_pallas.1} parent=1 // pred_check_branch
      %21 = sbr.rel (0) target = $region21
    $region20: #{mlp_forward_pallas.1} parent=1 // pred_region
      _
    $region21: #{mlp_forward_pallas.1} parent=1 // pred_fallthru
      _
    // Predicated region
    $region22: #{mlp_forward_pallas.1} parent=1 // pred_check
      _
    $region23: #{mlp_forward_pallas.1} parent=1 // pred_check_branch
      %23 = sbr.rel (0) target = $region25
    $region24: #{mlp_forward_pallas.1} parent=1 // pred_region
      _
    $region25: #{mlp_forward_pallas.1} parent=1 // pred_fallthru
      _
    // Predicated region
    $region26: #{mlp_forward_pallas.1} parent=1 // pred_check
      _
    $region27: #{mlp_forward_pallas.1} parent=1 // pred_check_branch
      %25 = sbr.rel (0) target = $region29
    $region28: #{mlp_forward_pallas.1} parent=1 // pred_region
      _
    $region29: #{mlp_forward_pallas.1} parent=1 // pred_fallthru
      _
    %v26 = vld [vmem:[%s0] sm:$0xff]
    %v27 = vld [vmem:[%s0 + $0x8] sm:$0xff]
    %v28 = vld [vmem:[%s0 + $0x10] sm:$0xff]
    %v29 = vld [vmem:[%s0 + $0x18] sm:$0xff]
    %v30 = vld [vmem:[%s0 + $0x20] sm:$0xff]
    %v31 = vld [vmem:[%s0 + $0x28] sm:$0xff]
    %v32 = vld [vmem:[%s0 + $0x30] sm:$0xff]
    %v33 = vld [vmem:[%s0 + $0x38] sm:$0xff]
    %v34 = vld [vmem:[%s0 + $0x40] sm:$0xff]
    %v35 = vld [vmem:[%s0 + $0x48] sm:$0xff]
    %v36 = vld [vmem:[%s0 + $0x50] sm:$0xff]
    %v37 = vld [vmem:[%s0 + $0x58] sm:$0xff]
    %v38 = vld [vmem:[%s0 + $0x60] sm:$0xff]
    %v39 = vld [vmem:[%s0 + $0x68] sm:$0xff]
    %v40 = vld [vmem:[%s0 + $0x70] sm:$0xff]
    %v41 = vld [vmem:[%s0 + $0x78] sm:$0xff]
    %v42 = vld [vmem:[%s1] sm:$0x7]
    %v43 = vld [vmem:[%s2] sm:$0x1]
    %v45 = vlaneseq
    %v46 = vshrl.u32 %v45, 7
    %v47 = vsub.s32 0, %v46
    %v48 = vrot.slane %v43, %v47
    %vm50 = vcmask 23552
    %v52 = vsel %vm50, %v26, 0
    %v55 = vsel %vm50, %v27, 0
    %v58 = vsel %vm50, %v28, 0
    %v61 = vsel %vm50, %v29, 0
    %v64 = vsel %vm50, %v30, 0
    %v67 = vsel %vm50, %v31, 0
    %v70 = vsel %vm50, %v32, 0
    %v73 = vsel %vm50, %v33, 0
    %v76 = vsel %vm50, %v34, 0
    %v79 = vsel %vm50, %v35, 0
    %v82 = vsel %vm50, %v36, 0
    %v85 = vsel %vm50, %v37, 0
    %v88 = vsel %vm50, %v38, 0
    %v91 = vsel %vm50, %v39, 0
    %v94 = vsel %vm50, %v40, 0
    %v97 = vsel %vm50, %v41, 0
    %vm99 = vcmask 1042432
    %v101 = vsel %vm99, %v42, 0
    %103 = vmatprep.subr.mxu0 0.0
    %v104 = vand.u32 %v101, 4294901760
    %105 = vmatpush1.msra.mxu0 %v104
    %106 = vmatprep.subr.mxu0 0.0
    %107 = vmatpush1.msra.mxu0 0.0
    %108 = vmatprep.subr.mxu0 0.0
    %109 = vmatpush1.msra.mxu0 0.0
    %110 = vmatprep.subr.mxu0 0.0
    %111 = vmatpush1.msra.mxu0 0.0
    %112 = vmatprep.subr.mxu0 0.0
    %113 = vmatpush1.msra.mxu0 0.0
    %114 = vmatprep.subr.mxu0 0.0
    %115 = vmatpush1.msra.mxu0 0.0
    %116 = vmatprep.subr.mxu0 0.0
    %117 = vmatpush1.msra.mxu0 0.0
    %118 = vmatprep.subr.mxu0 0.0
    %119 = vmatpush1.msra.mxu0 0.0
    %120 = vmatprep.subr.mxu0 0.0
    %121 = vmatpush1.msra.mxu0 0.0
    %122 = vmatprep.subr.mxu0 0.0
    %123 = vmatpush1.msra.mxu0 0.0
    %124 = vmatprep.subr.mxu0 0.0
    %125 = vmatpush1.msra.mxu0 0.0
    %126 = vmatprep.subr.mxu0 0.0
    %127 = vmatpush1.msra.mxu0 0.0
    %128 = vmatprep.subr.mxu0 0.0
    %129 = vmatpush1.msra.mxu0 0.0
    %130 = vmatprep.subr.mxu0 0.0
    %131 = vmatpush1.msra.mxu0 0.0
    %132 = vmatprep.subr.mxu0 0.0
    %133 = vmatpush1.msra.mxu0 0.0
    %134 = vmatprep.subr.mxu0 0.0
    %135 = vmatpush1.msra.mxu0 0.0
    %136 = vmatprep.subr.mxu0 0.0
    %137 = vmatpush1.msra.mxu0 0.0
    %138 = vmatprep.subr.mxu0 0.0
    %139 = vmatpush1.msra.mxu0 0.0
    %140 = vmatprep.subr.mxu0 0.0
    %141 = vmatpush1.msra.mxu0 0.0
    %142 = vmatprep.subr.mxu0 0.0
    %143 = vmatpush1.msra.mxu0 0.0
    %144 = vmatprep.subr.mxu0 0.0
    %145 = vmatpush1.msra.mxu0 0.0
    %146 = vmatprep.subr.mxu0 0.0
    %147 = vmatpush1.msra.mxu0 0.0
    %148 = vmatprep.subr.mxu0 0.0
    %149 = vmatpush1.msra.mxu0 0.0
    %150 = vmatprep.subr.mxu0 0.0
    %151 = vmatpush1.msra.mxu0 0.0
    %152 = vmatprep.subr.mxu0 0.0
    %153 = vmatpush1.msra.mxu0 0.0
    %154 = vmatprep.subr.mxu0 0.0
    %155 = vmatpush1.msra.mxu0 0.0
    %156 = vmatprep.subr.mxu0 0.0
    %157 = vmatpush1.msra.mxu0 0.0
    %158 = vmatprep.subr.mxu0 0.0
    %159 = vmatpush1.msra.mxu0 0.0
    %160 = vmatprep.subr.mxu0 0.0
    %161 = vmatpush1.msra.mxu0 0.0
    %162 = vmatprep.subr.mxu0 0.0
    %163 = vmatpush1.msra.mxu0 0.0
    %164 = vmatprep.subr.mxu0 0.0
    %165 = vmatpush1.msra.mxu0 0.0
    %166 = vmatprep.subr.mxu0 0.0
    %167 = vmatpush1.msra.mxu0 0.0
    %168 = vmatprep.mubr.f32.mxu0 0.0
    %v169 = vand.u32 %v52, 4294901760
    %v170 = vsub.f32 %v52, %v169
    %v171 = vand.u32 %v170, 4294901760
    %v172 = vsub.f32 %v170, %v171
    %v173 = vand.u32 %v172, 4294901760
    %174 = vmatmul.mubr.f32.gmra.mrb[0].mxu0 %v173
    %v175 = vpop.f32.mrb[0].mxu0
    %v176 = vadd.f32 %v48, %v175
    %v177 = vpop.f32.mrb[0].mxu0
    %178 = vmatprep.mubr.f32.mxu0 0.0
    %v179 = vand.u32 %v55, 4294901760
    %v180 = vsub.f32 %v55, %v179
    %v181 = vand.u32 %v180, 4294901760
    %v182 = vsub.f32 %v180, %v181
    %v183 = vand.u32 %v182, 4294901760
    %184 = vmatmul.mubr.f32.gmra.mrb[0].mxu0 %v183
    %v185 = vpop.f32.mrb[0].mxu0
    %v186 = vadd.f32 %v48, %v185
    %v187 = vpop.f32.mrb[0].mxu0
    %188 = vmatprep.mubr.f32.mxu0 0.0
    %v189 = vand.u32 %v58, 4294901760
    %v190 = vsub.f32 %v58, %v189
    %v191 = vand.u32 %v190, 4294901760
    %v192 = vsub.f32 %v190, %v191
    %v193 = vand.u32 %v192, 4294901760
    %194 = vmatmul.mubr.f32.gmra.mrb[0].mxu0 %v193
    %v195 = vpop.f32.mrb[0].mxu0
    %v196 = vadd.f32 %v48, %v195
    %v197 = vpop.f32.mrb[0].mxu0
    %198 = vmatprep.mubr.f32.mxu0 0.0
    %v199 = vand.u32 %v61, 4294901760
    %v200 = vsub.f32 %v61, %v199
    %v201 = vand.u32 %v200, 4294901760
    %v202 = vsub.f32 %v200, %v201
    %v203 = vand.u32 %v202, 4294901760
    %204 = vmatmul.mubr.f32.gmra.mrb[0].mxu0 %v203
    %v205 = vpop.f32.mrb[0].mxu0
    %v206 = vadd.f32 %v48, %v205
    %v207 = vpop.f32.mrb[0].mxu0
    %208 = vmatprep.mubr.f32.mxu0 0.0
    %v209 = vand.u32 %v64, 4294901760
    %v210 = vsub.f32 %v64, %v209
    %v211 = vand.u32 %v210, 4294901760
    %v212 = vsub.f32 %v210, %v211
    %v213 = vand.u32 %v212, 4294901760
    %214 = vmatmul.mubr.f32.gmra.mrb[0].mxu0 %v213
    %v215 = vpop.f32.mrb[0].mxu0
    %v216 = vadd.f32 %v48, %v215
    %v217 = vpop.f32.mrb[0].mxu0
    %218 = vmatprep.mubr.f32.mxu0 0.0
    %v219 = vand.u32 %v67, 4294901760
    %v220 = vsub.f32 %v67, %v219
    %v221 = vand.u32 %v220, 4294901760
    %v222 = vsub.f32 %v220, %v221
    %v223 = vand.u32 %v222, 4294901760
    %224 = vmatmul.mubr.f32.gmra.mrb[0].mxu0 %v223
    %v225 = vpop.f32.mrb[0].mxu0
    %v226 = vadd.f32 %v48, %v225
    %v227 = vpop.f32.mrb[0].mxu0
    %228 = vmatprep.mubr.f32.mxu0 0.0
    %v229 = vand.u32 %v70, 4294901760
    %v230 = vsub.f32 %v70, %v229
    %v231 = vand.u32 %v230, 4294901760
    %v232 = vsub.f32 %v230, %v231
    %v233 = vand.u32 %v232, 4294901760
    %234 = vmatmul.mubr.f32.gmra.mrb[0].mxu0 %v233
    %v235 = vpop.f32.mrb[0].mxu0
    %v236 = vadd.f32 %v48, %v235
    %v237 = vpop.f32.mrb[0].mxu0
    %238 = vmatprep.mubr.f32.mxu0 0.0
    %v239 = vand.u32 %v73, 4294901760
    %v240 = vsub.f32 %v73, %v239
    %v241 = vand.u32 %v240, 4294901760
    %v242 = vsub.f32 %v240, %v241
    %v243 = vand.u32 %v242, 4294901760
    %244 = vmatmul.mubr.f32.gmra.mrb[0].mxu0 %v243
    %v245 = vpop.f32.mrb[0].mxu0
    %v246 = vadd.f32 %v48, %v245
    %v247 = vpop.f32.mrb[0].mxu0
    %248 = vmatprep.mubr.f32.mxu0 0.0
    %v249 = vand.u32 %v76, 4294901760
    %v250 = vsub.f32 %v76, %v249
    %v251 = vand.u32 %v250, 4294901760
    %v252 = vsub.f32 %v250, %v251
    %v253 = vand.u32 %v252, 4294901760
    %254 = vmatmul.mubr.f32.gmra.mrb[0].mxu0 %v253
    %v255 = vpop.f32.mrb[0].mxu0
    %v256 = vadd.f32 %v48, %v255
    %v257 = vpop.f32.mrb[0].mxu0
    %258 = vmatprep.mubr.f32.mxu0 0.0
    %v259 = vand.u32 %v79, 4294901760
    %v260 = vsub.f32 %v79, %v259
    %v261 = vand.u32 %v260, 4294901760
    %v262 = vsub.f32 %v260, %v261
    %v263 = vand.u32 %v262, 4294901760
    %264 = vmatmul.mubr.f32.gmra.mrb[0].mxu0 %v263
    %v265 = vpop.f32.mrb[0].mxu0
    %v266 = vadd.f32 %v48, %v265
    %v267 = vpop.f32.mrb[0].mxu0
    %268 = vmatprep.mubr.f32.mxu0 0.0
    %v269 = vand.u32 %v82, 4294901760
    %v270 = vsub.f32 %v82, %v269
    %v271 = vand.u32 %v270, 4294901760
    %v272 = vsub.f32 %v270, %v271
    %v273 = vand.u32 %v272, 4294901760
    %274 = vmatmul.mubr.f32.gmra.mrb[0].mxu0 %v273
    %v275 = vpop.f32.mrb[0].mxu0
    %v276 = vadd.f32 %v48, %v275
    %v277 = vpop.f32.mrb[0].mxu0
    %278 = vmatprep.mubr.f32.mxu0 0.0
    %v279 = vand.u32 %v85, 4294901760
    %v280 = vsub.f32 %v85, %v279
    %v281 = vand.u32 %v280, 4294901760
    %v282 = vsub.f32 %v280, %v281
    %v283 = vand.u32 %v282, 4294901760
    %284 = vmatmul.mubr.f32.gmra.mrb[0].mxu0 %v283
    %v285 = vpop.f32.mrb[0].mxu0
    %v286 = vadd.f32 %v48, %v285
    %v287 = vpop.f32.mrb[0].mxu0
    %288 = vmatprep.mubr.f32.mxu0 0.0
    %v289 = vand.u32 %v88, 4294901760
    %v290 = vsub.f32 %v88, %v289
    %v291 = vand.u32 %v290, 4294901760
    %v292 = vsub.f32 %v290, %v291
    %v293 = vand.u32 %v292, 4294901760
    %294 = vmatmul.mubr.f32.gmra.mrb[0].mxu0 %v293
    %v295 = vpop.f32.mrb[0].mxu0
    %v296 = vadd.f32 %v48, %v295
    %v297 = vpop.f32.mrb[0].mxu0
    %298 = vmatprep.mubr.f32.mxu0 0.0
    %v299 = vand.u32 %v91, 4294901760
    %v300 = vsub.f32 %v91, %v299
    %v301 = vand.u32 %v300, 4294901760
    %v302 = vsub.f32 %v300, %v301
    %v303 = vand.u32 %v302, 4294901760
    %304 = vmatmul.mubr.f32.gmra.mrb[0].mxu0 %v303
    %v305 = vpop.f32.mrb[0].mxu0
    %v306 = vadd.f32 %v48, %v305
    %v307 = vpop.f32.mrb[0].mxu0
    %308 = vmatprep.mubr.f32.mxu0 0.0
    %v309 = vand.u32 %v94, 4294901760
    %v310 = vsub.f32 %v94, %v309
    %v311 = vand.u32 %v310, 4294901760
    %v312 = vsub.f32 %v310, %v311
    %v313 = vand.u32 %v312, 4294901760
    %314 = vmatmul.mubr.f32.gmra.mrb[0].mxu0 %v313
    %v315 = vpop.f32.mrb[0].mxu0
    %v316 = vadd.f32 %v48, %v315
    %v317 = vpop.f32.mrb[0].mxu0
    %318 = vmatprep.mubr.f32.mxu0 0.0
    %v319 = vand.u32 %v97, 4294901760
    %v320 = vsub.f32 %v97, %v319
    %v321 = vand.u32 %v320, 4294901760
    %v322 = vsub.f32 %v320, %v321
    %v323 = vand.u32 %v322, 4294901760
    %324 = vmatmul.mubr.f32.gmra.mrb[0].mxu0 %v323
    %v325 = vpop.f32.mrb[0].mxu0
    %v326 = vadd.f32 %v48, %v325
    %v327 = vpop.f32.mrb[0].mxu0
    %328 = vdwg.mxu0
    %329 = vmatprep.subr.mxu0 0.0
    %v330 = vand.u32 %v101, 4294901760
    %v331 = vsub.f32 %v101, %v330
    %v332 = vand.u32 %v331, 4294901760
    %v333 = vsub.f32 %v331, %v332
    %v334 = vand.u32 %v333, 4294901760
    %335 = vmatpush1.msra.mxu0 %v334
    %336 = vmatprep.subr.mxu0 0.0
    %337 = vmatpush1.msra.mxu0 0.0
    %338 = vmatprep.subr.mxu0 0.0
    %339 = vmatpush1.msra.mxu0 0.0
    %340 = vmatprep.subr.mxu0 0.0
    %341 = vmatpush1.msra.mxu0 0.0
    %342 = vmatprep.subr.mxu0 0.0
    %343 = vmatpush1.msra.mxu0 0.0
    %344 = vmatprep.subr.mxu0 0.0
    %345 = vmatpush1.msra.mxu0 0.0
    %346 = vmatprep.subr.mxu0 0.0
    %347 = vmatpush1.msra.mxu0 0.0
    %348 = vmatprep.subr.mxu0 0.0
    %349 = vmatpush1.msra.mxu0 0.0
    %350 = vmatprep.subr.mxu0 0.0
    %351 = vmatpush1.msra.mxu0 0.0
    %352 = vmatprep.subr.mxu0 0.0
    %353 = vmatpush1.msra.mxu0 0.0
    %354 = vmatprep.subr.mxu0 0.0
    %355 = vmatpush1.msra.mxu0 0.0
    %356 = vmatprep.subr.mxu0 0.0
    %357 = vmatpush1.msra.mxu0 0.0
    %358 = vmatprep.subr.mxu0 0.0
    %359 = vmatpush1.msra.mxu0 0.0
    %360 = vmatprep.subr.mxu0 0.0
    %361 = vmatpush1.msra.mxu0 0.0
    %362 = vmatprep.subr.mxu0 0.0
    %363 = vmatpush1.msra.mxu0 0.0
    %364 = vmatprep.subr.mxu0 0.0
    %365 = vmatpush1.msra.mxu0 0.0
    %366 = vmatprep.subr.mxu0 0.0
    %367 = vmatpush1.msra.mxu0 0.0
    %368 = vmatprep.subr.mxu0 0.0
    %369 = vmatpush1.msra.mxu0 0.0
    %370 = vmatprep.subr.mxu0 0.0
    %371 = vmatpush1.msra.mxu0 0.0
    %372 = vmatprep.subr.mxu0 0.0
    %373 = vmatpush1.msra.mxu0 0.0
    %374 = vmatprep.subr.mxu0 0.0
    %375 = vmatpush1.msra.mxu0 0.0
    %376 = vmatprep.subr.mxu0 0.0
    %377 = vmatpush1.msra.mxu0 0.0
    %378 = vmatprep.subr.mxu0 0.0
    %379 = vmatpush1.msra.mxu0 0.0
    %380 = vmatprep.subr.mxu0 0.0
    %381 = vmatpush1.msra.mxu0 0.0
    %382 = vmatprep.subr.mxu0 0.0
    %383 = vmatpush1.msra.mxu0 0.0
    %384 = vmatprep.subr.mxu0 0.0
    %385 = vmatpush1.msra.mxu0 0.0
    %386 = vmatprep.subr.mxu0 0.0
    %387 = vmatpush1.msra.mxu0 0.0
    %388 = vmatprep.subr.mxu0 0.0
    %389 = vmatpush1.msra.mxu0 0.0
    %390 = vmatprep.subr.mxu0 0.0
    %391 = vmatpush1.msra.mxu0 0.0
    %392 = vmatprep.subr.mxu0 0.0
    %393 = vmatpush1.msra.mxu0 0.0
    %394 = vmatprep.subr.mxu0 0.0
    %395 = vmatpush1.msra.mxu0 0.0
    %396 = vmatprep.subr.mxu0 0.0
    %397 = vmatpush1.msra.mxu0 0.0
    %398 = vmatprep.mubr.f32.mxu0 0.0
    %v399 = vand.u32 %v52, 4294901760
    %400 = vmatmul.mubr.f32.gmra.mrb[0].mxu0 %v399
    %v401 = vpop.f32.mrb[0].mxu0
    %v402 = vadd.f32 %v176, %v401
    %v403 = vpop.f32.mrb[0].mxu0
    %404 = vmatprep.mubr.f32.mxu0 0.0
    %v405 = vand.u32 %v55, 4294901760
    %406 = vmatmul.mubr.f32.gmra.mrb[0].mxu0 %v405
    %v407 = vpop.f32.mrb[0].mxu0
    %v408 = vadd.f32 %v186, %v407
    %v409 = vpop.f32.mrb[0].mxu0
    %410 = vmatprep.mubr.f32.mxu0 0.0
    %v411 = vand.u32 %v58, 4294901760
    %412 = vmatmul.mubr.f32.gmra.mrb[0].mxu0 %v411
    %v413 = vpop.f32.mrb[0].mxu0
    %v414 = vadd.f32 %v196, %v413
    %v415 = vpop.f32.mrb[0].mxu0
    %416 = vmatprep.mubr.f32.mxu0 0.0
    %v417 = vand.u32 %v61, 4294901760
    %418 = vmatmul.mubr.f32.gmra.mrb[0].mxu0 %v417
    %v419 = vpop.f32.mrb[0].mxu0
    %v420 = vadd.f32 %v206, %v419
    %v421 = vpop.f32.mrb[0].mxu0
    %422 = vmatprep.mubr.f32.mxu0 0.0
    %v423 = vand.u32 %v64, 4294901760
    %424 = vmatmul.mubr.f32.gmra.mrb[0].mxu0 %v423
    %v425 = vpop.f32.mrb[0].mxu0
    %v426 = vadd.f32 %v216, %v425
    %v427 = vpop.f32.mrb[0].mxu0
    %428 = vmatprep.mubr.f32.mxu0 0.0
    %v429 = vand.u32 %v67, 4294901760
    %430 = vmatmul.mubr.f32.gmra.mrb[0].mxu0 %v429
    %v431 = vpop.f32.mrb[0].mxu0
    %v432 = vadd.f32 %v226, %v431
    %v433 = vpop.f32.mrb[0].mxu0
    %434 = vmatprep.mubr.f32.mxu0 0.0
    %v435 = vand.u32 %v70, 4294901760
    %436 = vmatmul.mubr.f32.gmra.mrb[0].mxu0 %v435
    %v437 = vpop.f32.mrb[0].mxu0
    %v438 = vadd.f32 %v236, %v437
    %v439 = vpop.f32.mrb[0].mxu0
    %440 = vmatprep.mubr.f32.mxu0 0.0
    %v441 = vand.u32 %v73, 4294901760
    %442 = vmatmul.mubr.f32.gmra.mrb[0].mxu0 %v441
    %v443 = vpop.f32.mrb[0].mxu0
    %v444 = vadd.f32 %v246, %v443
    %v445 = vpop.f32.mrb[0].mxu0
    %446 = vmatprep.mubr.f32.mxu0 0.0
    %v447 = vand.u32 %v76, 4294901760
    %448 = vmatmul.mubr.f32.gmra.mrb[0].mxu0 %v447
    %v449 = vpop.f32.mrb[0].mxu0
    %v450 = vadd.f32 %v256, %v449
    %v451 = vpop.f32.mrb[0].mxu0
    %452 = vmatprep.mubr.f32.mxu0 0.0
    %v453 = vand.u32 %v79, 4294901760
    %454 = vmatmul.mubr.f32.gmra.mrb[0].mxu0 %v453
    %v455 = vpop.f32.mrb[0].mxu0
    %v456 = vadd.f32 %v266, %v455
    %v457 = vpop.f32.mrb[0].mxu0
    %458 = vmatprep.mubr.f32.mxu0 0.0
    %v459 = vand.u32 %v82, 4294901760
    %460 = vmatmul.mubr.f32.gmra.mrb[0].mxu0 %v459
    %v461 = vpop.f32.mrb[0].mxu0
    %v462 = vadd.f32 %v276, %v461
    %v463 = vpop.f32.mrb[0].mxu0
    %464 = vmatprep.mubr.f32.mxu0 0.0
    %v465 = vand.u32 %v85, 4294901760
    %466 = vmatmul.mubr.f32.gmra.mrb[0].mxu0 %v465
    %v467 = vpop.f32.mrb[0].mxu0
    %v468 = vadd.f32 %v286, %v467
    %v469 = vpop.f32.mrb[0].mxu0
    %470 = vmatprep.mubr.f32.mxu0 0.0
    %v471 = vand.u32 %v88, 4294901760
    %472 = vmatmul.mubr.f32.gmra.mrb[0].mxu0 %v471
    %v473 = vpop.f32.mrb[0].mxu0
    %v474 = vadd.f32 %v296, %v473
    %v475 = vpop.f32.mrb[0].mxu0
    %476 = vmatprep.mubr.f32.mxu0 0.0
    %v477 = vand.u32 %v91, 4294901760
    %478 = vmatmul.mubr.f32.gmra.mrb[0].mxu0 %v477
    %v479 = vpop.f32.mrb[0].mxu0
    %v480 = vadd.f32 %v306, %v479
    %v481 = vpop.f32.mrb[0].mxu0
    %482 = vmatprep.mubr.f32.mxu0 0.0
    %v483 = vand.u32 %v94, 4294901760
    %484 = vmatmul.mubr.f32.gmra.mrb[0].mxu0 %v483
    %v485 = vpop.f32.mrb[0].mxu0
    %v486 = vadd.f32 %v316, %v485
    %v487 = vpop.f32.mrb[0].mxu0
    %488 = vmatprep.mubr.f32.mxu0 0.0
    %v489 = vand.u32 %v97, 4294901760
    %490 = vmatmul.mubr.f32.gmra.mrb[0].mxu0 %v489
    %v491 = vpop.f32.mrb[0].mxu0
    %v492 = vadd.f32 %v326, %v491
    %v493 = vpop.f32.mrb[0].mxu0
    %494 = vdwg.mxu0
    %495 = vmatprep.subr.mxu0 0.0
    %v496 = vand.u32 %v101, 4294901760
    %v497 = vsub.f32 %v101, %v496
    %498 = vmatpush1.msra.mxu0 %v497
    %499 = vmatprep.subr.mxu0 0.0
    %500 = vmatpush1.msra.mxu0 0.0
    %501 = vmatprep.subr.mxu0 0.0
    %502 = vmatpush1.msra.mxu0 0.0
    %503 = vmatprep.subr.mxu0 0.0
    %504 = vmatpush1.msra.mxu0 0.0
    %505 = vmatprep.subr.mxu0 0.0
    %506 = vmatpush1.msra.mxu0 0.0
    %507 = vmatprep.subr.mxu0 0.0
    %508 = vmatpush1.msra.mxu0 0.0
    %509 = vmatprep.subr.mxu0 0.0
    %510 = vmatpush1.msra.mxu0 0.0
    %511 = vmatprep.subr.mxu0 0.0
    %512 = vmatpush1.msra.mxu0 0.0
    %513 = vmatprep.subr.mxu0 0.0
    %514 = vmatpush1.msra.mxu0 0.0
    %515 = vmatprep.subr.mxu0 0.0
    %516 = vmatpush1.msra.mxu0 0.0
    %517 = vmatprep.subr.mxu0 0.0
    %518 = vmatpush1.msra.mxu0 0.0
    %519 = vmatprep.subr.mxu0 0.0
    %520 = vmatpush1.msra.mxu0 0.0
    %521 = vmatprep.subr.mxu0 0.0
    %522 = vmatpush1.msra.mxu0 0.0
    %523 = vmatprep.subr.mxu0 0.0
    %524 = vmatpush1.msra.mxu0 0.0
    %525 = vmatprep.subr.mxu0 0.0
    %526 = vmatpush1.msra.mxu0 0.0
    %527 = vmatprep.subr.mxu0 0.0
    %528 = vmatpush1.msra.mxu0 0.0
    %529 = vmatprep.subr.mxu0 0.0
    %530 = vmatpush1.msra.mxu0 0.0
    %531 = vmatprep.subr.mxu0 0.0
    %532 = vmatpush1.msra.mxu0 0.0
    %533 = vmatprep.subr.mxu0 0.0
    %534 = vmatpush1.msra.mxu0 0.0
    %535 = vmatprep.subr.mxu0 0.0
    %536 = vmatpush1.msra.mxu0 0.0
    %537 = vmatprep.subr.mxu0 0.0
    %538 = vmatpush1.msra.mxu0 0.0
    %539 = vmatprep.subr.mxu0 0.0
    %540 = vmatpush1.msra.mxu0 0.0
    %541 = vmatprep.subr.mxu0 0.0
    %542 = vmatpush1.msra.mxu0 0.0
    %543 = vmatprep.subr.mxu0 0.0
    %544 = vmatpush1.msra.mxu0 0.0
    %545 = vmatprep.subr.mxu0 0.0
    %546 = vmatpush1.msra.mxu0 0.0
    %547 = vmatprep.subr.mxu0 0.0
    %548 = vmatpush1.msra.mxu0 0.0
    %549 = vmatprep.subr.mxu0 0.0
    %550 = vmatpush1.msra.mxu0 0.0
    %551 = vmatprep.subr.mxu0 0.0
    %552 = vmatpush1.msra.mxu0 0.0
    %553 = vmatprep.subr.mxu0 0.0
    %554 = vmatpush1.msra.mxu0 0.0
    %555 = vmatprep.subr.mxu0 0.0
    %556 = vmatpush1.msra.mxu0 0.0
    %557 = vmatprep.subr.mxu0 0.0
    %558 = vmatpush1.msra.mxu0 0.0
    %559 = vmatprep.subr.mxu0 0.0
    %560 = vmatpush1.msra.mxu0 0.0
    %561 = vmatprep.mubr.f32.mxu0 0.0
    %v562 = vand.u32 %v52, 4294901760
    %v563 = vsub.f32 %v52, %v562
    %564 = vmatmul.mubr.f32.gmra.mrb[0].mxu0 %v563
    %v565 = vpop.f32.mrb[0].mxu0
    %v566 = vadd.f32 %v402, %v565
    %v567 = vpop.f32.mrb[0].mxu0
    %568 = vmatprep.mubr.f32.mxu0 0.0
    %v569 = vand.u32 %v55, 4294901760
    %v570 = vsub.f32 %v55, %v569
    %571 = vmatmul.mubr.f32.gmra.mrb[0].mxu0 %v570
    %v572 = vpop.f32.mrb[0].mxu0
    %v573 = vadd.f32 %v408, %v572
    %v574 = vpop.f32.mrb[0].mxu0
    %575 = vmatprep.mubr.f32.mxu0 0.0
    %v576 = vand.u32 %v58, 4294901760
    %v577 = vsub.f32 %v58, %v576
    %578 = vmatmul.mubr.f32.gmra.mrb[0].mxu0 %v577
    %v579 = vpop.f32.mrb[0].mxu0
    %v580 = vadd.f32 %v414, %v579
    %v581 = vpop.f32.mrb[0].mxu0
    %582 = vmatprep.mubr.f32.mxu0 0.0
    %v583 = vand.u32 %v61, 4294901760
    %v584 = vsub.f32 %v61, %v583
    %585 = vmatmul.mubr.f32.gmra.mrb[0].mxu0 %v584
    %v586 = vpop.f32.mrb[0].mxu0
    %v587 = vadd.f32 %v420, %v586
    %v588 = vpop.f32.mrb[0].mxu0
    %589 = vmatprep.mubr.f32.mxu0 0.0
    %v590 = vand.u32 %v64, 4294901760
    %v591 = vsub.f32 %v64, %v590
    %592 = vmatmul.mubr.f32.gmra.mrb[0].mxu0 %v591
    %v593 = vpop.f32.mrb[0].mxu0
    %v594 = vadd.f32 %v426, %v593
    %v595 = vpop.f32.mrb[0].mxu0
    %596 = vmatprep.mubr.f32.mxu0 0.0
    %v597 = vand.u32 %v67, 4294901760
    %v598 = vsub.f32 %v67, %v597
    %599 = vmatmul.mubr.f32.gmra.mrb[0].mxu0 %v598
    %v600 = vpop.f32.mrb[0].mxu0
    %v601 = vadd.f32 %v432, %v600
    %v602 = vpop.f32.mrb[0].mxu0
    %603 = vmatprep.mubr.f32.mxu0 0.0
    %v604 = vand.u32 %v70, 4294901760
    %v605 = vsub.f32 %v70, %v604
    %606 = vmatmul.mubr.f32.gmra.mrb[0].mxu0 %v605
    %v607 = vpop.f32.mrb[0].mxu0
    %v608 = vadd.f32 %v438, %v607
    %v609 = vpop.f32.mrb[0].mxu0
    %610 = vmatprep.mubr.f32.mxu0 0.0
    %v611 = vand.u32 %v73, 4294901760
    %v612 = vsub.f32 %v73, %v611
    %613 = vmatmul.mubr.f32.gmra.mrb[0].mxu0 %v612
    %v614 = vpop.f32.mrb[0].mxu0
    %v615 = vadd.f32 %v444, %v614
    %v616 = vpop.f32.mrb[0].mxu0
    %617 = vmatprep.mubr.f32.mxu0 0.0
    %v618 = vand.u32 %v76, 4294901760
    %v619 = vsub.f32 %v76, %v618
    %620 = vmatmul.mubr.f32.gmra.mrb[0].mxu0 %v619
    %v621 = vpop.f32.mrb[0].mxu0
    %v622 = vadd.f32 %v450, %v621
    %v623 = vpop.f32.mrb[0].mxu0
    %624 = vmatprep.mubr.f32.mxu0 0.0
    %v625 = vand.u32 %v79, 4294901760
    %v626 = vsub.f32 %v79, %v625
    %627 = vmatmul.mubr.f32.gmra.mrb[0].mxu0 %v626
    %v628 = vpop.f32.mrb[0].mxu0
    %v629 = vadd.f32 %v456, %v628
    %v630 = vpop.f32.mrb[0].mxu0
    %631 = vmatprep.mubr.f32.mxu0 0.0
    %v632 = vand.u32 %v82, 4294901760
    %v633 = vsub.f32 %v82, %v632
    %634 = vmatmul.mubr.f32.gmra.mrb[0].mxu0 %v633
    %v635 = vpop.f32.mrb[0].mxu0
    %v636 = vadd.f32 %v462, %v635
    %v637 = vpop.f32.mrb[0].mxu0
    %638 = vmatprep.mubr.f32.mxu0 0.0
    %v639 = vand.u32 %v85, 4294901760
    %v640 = vsub.f32 %v85, %v639
    %641 = vmatmul.mubr.f32.gmra.mrb[0].mxu0 %v640
    %v642 = vpop.f32.mrb[0].mxu0
    %v643 = vadd.f32 %v468, %v642
    %v644 = vpop.f32.mrb[0].mxu0
    %645 = vmatprep.mubr.f32.mxu0 0.0
    %v646 = vand.u32 %v88, 4294901760
    %v647 = vsub.f32 %v88, %v646
    %648 = vmatmul.mubr.f32.gmra.mrb[0].mxu0 %v647
    %v649 = vpop.f32.mrb[0].mxu0
    %v650 = vadd.f32 %v474, %v649
    %v651 = vpop.f32.mrb[0].mxu0
    %652 = vmatprep.mubr.f32.mxu0 0.0
    %v653 = vand.u32 %v91, 4294901760
    %v654 = vsub.f32 %v91, %v653
    %655 = vmatmul.mubr.f32.gmra.mrb[0].mxu0 %v654
    %v656 = vpop.f32.mrb[0].mxu0
    %v657 = vadd.f32 %v480, %v656
    %v658 = vpop.f32.mrb[0].mxu0
    %659 = vmatprep.mubr.f32.mxu0 0.0
    %v660 = vand.u32 %v94, 4294901760
    %v661 = vsub.f32 %v94, %v660
    %662 = vmatmul.mubr.f32.gmra.mrb[0].mxu0 %v661
    %v663 = vpop.f32.mrb[0].mxu0
    %v664 = vadd.f32 %v486, %v663
    %v665 = vpop.f32.mrb[0].mxu0
    %666 = vmatprep.mubr.f32.mxu0 0.0
    %v667 = vand.u32 %v97, 4294901760
    %v668 = vsub.f32 %v97, %v667
    %669 = vmatmul.mubr.f32.gmra.mrb[0].mxu0 %v668
    %v670 = vpop.f32.mrb[0].mxu0
    %v671 = vadd.f32 %v492, %v670
    %v672 = vpop.f32.mrb[0].mxu0
    %673 = vdwg.mxu0
    %674 = vmatprep.subr.mxu0 0.0
    %v675 = vand.u32 %v101, 4294901760
    %676 = vmatpush1.msra.mxu0 %v675
    %677 = vmatprep.subr.mxu0 0.0
    %678 = vmatpush1.msra.mxu0 0.0
    %679 = vmatprep.subr.mxu0 0.0
    %680 = vmatpush1.msra.mxu0 0.0
    %681 = vmatprep.subr.mxu0 0.0
    %682 = vmatpush1.msra.mxu0 0.0
    %683 = vmatprep.subr.mxu0 0.0
    %684 = vmatpush1.msra.mxu0 0.0
    %685 = vmatprep.subr.mxu0 0.0
    %686 = vmatpush1.msra.mxu0 0.0
    %687 = vmatprep.subr.mxu0 0.0
    %688 = vmatpush1.msra.mxu0 0.0
    %689 = vmatprep.subr.mxu0 0.0
    %690 = vmatpush1.msra.mxu0 0.0
    %691 = vmatprep.subr.mxu0 0.0
    %692 = vmatpush1.msra.mxu0 0.0
    %693 = vmatprep.subr.mxu0 0.0
    %694 = vmatpush1.msra.mxu0 0.0
    %695 = vmatprep.subr.mxu0 0.0
    %696 = vmatpush1.msra.mxu0 0.0
    %697 = vmatprep.subr.mxu0 0.0
    %698 = vmatpush1.msra.mxu0 0.0
    %699 = vmatprep.subr.mxu0 0.0
    %700 = vmatpush1.msra.mxu0 0.0
    %701 = vmatprep.subr.mxu0 0.0
    %702 = vmatpush1.msra.mxu0 0.0
    %703 = vmatprep.subr.mxu0 0.0
    %704 = vmatpush1.msra.mxu0 0.0
    %705 = vmatprep.subr.mxu0 0.0
    %706 = vmatpush1.msra.mxu0 0.0
    %707 = vmatprep.subr.mxu0 0.0
    %708 = vmatpush1.msra.mxu0 0.0
    %709 = vmatprep.subr.mxu0 0.0
    %710 = vmatpush1.msra.mxu0 0.0
    %711 = vmatprep.subr.mxu0 0.0
    %712 = vmatpush1.msra.mxu0 0.0
    %713 = vmatprep.subr.mxu0 0.0
    %714 = vmatpush1.msra.mxu0 0.0
    %715 = vmatprep.subr.mxu0 0.0
    %716 = vmatpush1.msra.mxu0 0.0
    %717 = vmatprep.subr.mxu0 0.0
    %718 = vmatpush1.msra.mxu0 0.0
    %719 = vmatprep.subr.mxu0 0.0
    %720 = vmatpush1.msra.mxu0 0.0
    %721 = vmatprep.subr.mxu0 0.0
    %722 = vmatpush1.msra.mxu0 0.0
    %723 = vmatprep.subr.mxu0 0.0
    %724 = vmatpush1.msra.mxu0 0.0
    %725 = vmatprep.subr.mxu0 0.0
    %726 = vmatpush1.msra.mxu0 0.0
    %727 = vmatprep.subr.mxu0 0.0
    %728 = vmatpush1.msra.mxu0 0.0
    %729 = vmatprep.subr.mxu0 0.0
    %730 = vmatpush1.msra.mxu0 0.0
    %731 = vmatprep.subr.mxu0 0.0
    %732 = vmatpush1.msra.mxu0 0.0
    %733 = vmatprep.subr.mxu0 0.0
    %734 = vmatpush1.msra.mxu0 0.0
    %735 = vmatprep.subr.mxu0 0.0
    %736 = vmatpush1.msra.mxu0 0.0
    %737 = vmatprep.subr.mxu0 0.0
    %738 = vmatpush1.msra.mxu0 0.0
    %739 = vmatprep.mubr.f32.mxu0 0.0
    %v740 = vand.u32 %v52, 4294901760
    %v741 = vsub.f32 %v52, %v740
    %v742 = vand.u32 %v741, 4294901760
    %743 = vmatmul.mubr.f32.gmra.mrb[0].mxu0 %v742
    %v744 = vpop.f32.mrb[0].mxu0
    %v745 = vadd.f32 %v566, %v744
    %v746 = vpop.f32.mrb[0].mxu0
    %747 = vmatprep.mubr.f32.mxu0 0.0
    %v748 = vand.u32 %v55, 4294901760
    %v749 = vsub.f32 %v55, %v748
    %v750 = vand.u32 %v749, 4294901760
    %751 = vmatmul.mubr.f32.gmra.mrb[0].mxu0 %v750
    %v752 = vpop.f32.mrb[0].mxu0
    %v753 = vadd.f32 %v573, %v752
    %v754 = vpop.f32.mrb[0].mxu0
    %755 = vmatprep.mubr.f32.mxu0 0.0
    %v756 = vand.u32 %v58, 4294901760
    %v757 = vsub.f32 %v58, %v756
    %v758 = vand.u32 %v757, 4294901760
    %759 = vmatmul.mubr.f32.gmra.mrb[0].mxu0 %v758
    %v760 = vpop.f32.mrb[0].mxu0
    %v761 = vadd.f32 %v580, %v760
    %v762 = vpop.f32.mrb[0].mxu0
    %763 = vmatprep.mubr.f32.mxu0 0.0
    %v764 = vand.u32 %v61, 4294901760
    %v765 = vsub.f32 %v61, %v764
    %v766 = vand.u32 %v765, 4294901760
    %767 = vmatmul.mubr.f32.gmra.mrb[0].mxu0 %v766
    %v768 = vpop.f32.mrb[0].mxu0
    %v769 = vadd.f32 %v587, %v768
    %v770 = vpop.f32.mrb[0].mxu0
    %771 = vmatprep.mubr.f32.mxu0 0.0
    %v772 = vand.u32 %v64, 4294901760
    %v773 = vsub.f32 %v64, %v772
    %v774 = vand.u32 %v773, 4294901760
    %775 = vmatmul.mubr.f32.gmra.mrb[0].mxu0 %v774
    %v776 = vpop.f32.mrb[0].mxu0
    %v777 = vadd.f32 %v594, %v776
    %v778 = vpop.f32.mrb[0].mxu0
    %779 = vmatprep.mubr.f32.mxu0 0.0
    %v780 = vand.u32 %v67, 4294901760
    %v781 = vsub.f32 %v67, %v780
    %v782 = vand.u32 %v781, 4294901760
    %783 = vmatmul.mubr.f32.gmra.mrb[0].mxu0 %v782
    %v784 = vpop.f32.mrb[0].mxu0
    %v785 = vadd.f32 %v601, %v784
    %v786 = vpop.f32.mrb[0].mxu0
    %787 = vmatprep.mubr.f32.mxu0 0.0
    %v788 = vand.u32 %v70, 4294901760
    %v789 = vsub.f32 %v70, %v788
    %v790 = vand.u32 %v789, 4294901760
    %791 = vmatmul.mubr.f32.gmra.mrb[0].mxu0 %v790
    %v792 = vpop.f32.mrb[0].mxu0
    %v793 = vadd.f32 %v608, %v792
    %v794 = vpop.f32.mrb[0].mxu0
    %795 = vmatprep.mubr.f32.mxu0 0.0
    %v796 = vand.u32 %v73, 4294901760
    %v797 = vsub.f32 %v73, %v796
    %v798 = vand.u32 %v797, 4294901760
    %799 = vmatmul.mubr.f32.gmra.mrb[0].mxu0 %v798
    %v800 = vpop.f32.mrb[0].mxu0
    %v801 = vadd.f32 %v615, %v800
    %v802 = vpop.f32.mrb[0].mxu0
    %803 = vmatprep.mubr.f32.mxu0 0.0
    %v804 = vand.u32 %v76, 4294901760
    %v805 = vsub.f32 %v76, %v804
    %v806 = vand.u32 %v805, 4294901760
    %807 = vmatmul.mubr.f32.gmra.mrb[0].mxu0 %v806
    %v808 = vpop.f32.mrb[0].mxu0
    %v809 = vadd.f32 %v622, %v808
    %v810 = vpop.f32.mrb[0].mxu0
    %811 = vmatprep.mubr.f32.mxu0 0.0
    %v812 = vand.u32 %v79, 4294901760
    %v813 = vsub.f32 %v79, %v812
    %v814 = vand.u32 %v813, 4294901760
    %815 = vmatmul.mubr.f32.gmra.mrb[0].mxu0 %v814
    %v816 = vpop.f32.mrb[0].mxu0
    %v817 = vadd.f32 %v629, %v816
    %v818 = vpop.f32.mrb[0].mxu0
    %819 = vmatprep.mubr.f32.mxu0 0.0
    %v820 = vand.u32 %v82, 4294901760
    %v821 = vsub.f32 %v82, %v820
    %v822 = vand.u32 %v821, 4294901760
    %823 = vmatmul.mubr.f32.gmra.mrb[0].mxu0 %v822
    %v824 = vpop.f32.mrb[0].mxu0
    %v825 = vadd.f32 %v636, %v824
    %v826 = vpop.f32.mrb[0].mxu0
    %827 = vmatprep.mubr.f32.mxu0 0.0
    %v828 = vand.u32 %v85, 4294901760
    %v829 = vsub.f32 %v85, %v828
    %v830 = vand.u32 %v829, 4294901760
    %831 = vmatmul.mubr.f32.gmra.mrb[0].mxu0 %v830
    %v832 = vpop.f32.mrb[0].mxu0
    %v833 = vadd.f32 %v643, %v832
    %v834 = vpop.f32.mrb[0].mxu0
    %835 = vmatprep.mubr.f32.mxu0 0.0
    %v836 = vand.u32 %v88, 4294901760
    %v837 = vsub.f32 %v88, %v836
    %v838 = vand.u32 %v837, 4294901760
    %839 = vmatmul.mubr.f32.gmra.mrb[0].mxu0 %v838
    %v840 = vpop.f32.mrb[0].mxu0
    %v841 = vadd.f32 %v650, %v840
    %v842 = vpop.f32.mrb[0].mxu0
    %843 = vmatprep.mubr.f32.mxu0 0.0
    %v844 = vand.u32 %v91, 4294901760
    %v845 = vsub.f32 %v91, %v844
    %v846 = vand.u32 %v845, 4294901760
    %847 = vmatmul.mubr.f32.gmra.mrb[0].mxu0 %v846
    %v848 = vpop.f32.mrb[0].mxu0
    %v849 = vadd.f32 %v657, %v848
    %v850 = vpop.f32.mrb[0].mxu0
    %851 = vmatprep.mubr.f32.mxu0 0.0
    %v852 = vand.u32 %v94, 4294901760
    %v853 = vsub.f32 %v94, %v852
    %v854 = vand.u32 %v853, 4294901760
    %855 = vmatmul.mubr.f32.gmra.mrb[0].mxu0 %v854
    %v856 = vpop.f32.mrb[0].mxu0
    %v857 = vadd.f32 %v664, %v856
    %v858 = vpop.f32.mrb[0].mxu0
    %859 = vmatprep.mubr.f32.mxu0 0.0
    %v860 = vand.u32 %v97, 4294901760
    %v861 = vsub.f32 %v97, %v860
    %v862 = vand.u32 %v861, 4294901760
    %863 = vmatmul.mubr.f32.gmra.mrb[0].mxu0 %v862
    %v864 = vpop.f32.mrb[0].mxu0
    %v865 = vadd.f32 %v671, %v864
    %v866 = vpop.f32.mrb[0].mxu0
    %867 = vdwg.mxu0
    %868 = vmatprep.subr.mxu0 0.0
    %v869 = vand.u32 %v101, 4294901760
    %v870 = vsub.f32 %v101, %v869
    %v871 = vand.u32 %v870, 4294901760
    %872 = vmatpush1.msra.mxu0 %v871
    %873 = vmatprep.subr.mxu0 0.0
    %874 = vmatpush1.msra.mxu0 0.0
    %875 = vmatprep.subr.mxu0 0.0
    %876 = vmatpush1.msra.mxu0 0.0
    %877 = vmatprep.subr.mxu0 0.0
    %878 = vmatpush1.msra.mxu0 0.0
    %879 = vmatprep.subr.mxu0 0.0
    %880 = vmatpush1.msra.mxu0 0.0
    %881 = vmatprep.subr.mxu0 0.0
    %882 = vmatpush1.msra.mxu0 0.0
    %883 = vmatprep.subr.mxu0 0.0
    %884 = vmatpush1.msra.mxu0 0.0
    %885 = vmatprep.subr.mxu0 0.0
    %886 = vmatpush1.msra.mxu0 0.0
    %887 = vmatprep.subr.mxu0 0.0
    %888 = vmatpush1.msra.mxu0 0.0
    %889 = vmatprep.subr.mxu0 0.0
    %890 = vmatpush1.msra.mxu0 0.0
    %891 = vmatprep.subr.mxu0 0.0
    %892 = vmatpush1.msra.mxu0 0.0
    %893 = vmatprep.subr.mxu0 0.0
    %894 = vmatpush1.msra.mxu0 0.0
    %895 = vmatprep.subr.mxu0 0.0
    %896 = vmatpush1.msra.mxu0 0.0
    %897 = vmatprep.subr.mxu0 0.0
    %898 = vmatpush1.msra.mxu0 0.0
    %899 = vmatprep.subr.mxu0 0.0
    %900 = vmatpush1.msra.mxu0 0.0
    %901 = vmatprep.subr.mxu0 0.0
    %902 = vmatpush1.msra.mxu0 0.0
    %903 = vmatprep.subr.mxu0 0.0
    %904 = vmatpush1.msra.mxu0 0.0
    %905 = vmatprep.subr.mxu0 0.0
    %906 = vmatpush1.msra.mxu0 0.0
    %907 = vmatprep.subr.mxu0 0.0
    %908 = vmatpush1.msra.mxu0 0.0
    %909 = vmatprep.subr.mxu0 0.0
    %910 = vmatpush1.msra.mxu0 0.0
    %911 = vmatprep.subr.mxu0 0.0
    %912 = vmatpush1.msra.mxu0 0.0
    %913 = vmatprep.subr.mxu0 0.0
    %914 = vmatpush1.msra.mxu0 0.0
    %915 = vmatprep.subr.mxu0 0.0
    %916 = vmatpush1.msra.mxu0 0.0
    %917 = vmatprep.subr.mxu0 0.0
    %918 = vmatpush1.msra.mxu0 0.0
    %919 = vmatprep.subr.mxu0 0.0
    %920 = vmatpush1.msra.mxu0 0.0
    %921 = vmatprep.subr.mxu0 0.0
    %922 = vmatpush1.msra.mxu0 0.0
    %923 = vmatprep.subr.mxu0 0.0
    %924 = vmatpush1.msra.mxu0 0.0
    %925 = vmatprep.subr.mxu0 0.0
    %926 = vmatpush1.msra.mxu0 0.0
    %927 = vmatprep.subr.mxu0 0.0
    %928 = vmatpush1.msra.mxu0 0.0
    %929 = vmatprep.subr.mxu0 0.0
    %930 = vmatpush1.msra.mxu0 0.0
    %931 = vmatprep.subr.mxu0 0.0
    %932 = vmatpush1.msra.mxu0 0.0
    %933 = vmatprep.subr.mxu0 0.0
    %934 = vmatpush1.msra.mxu0 0.0
    %935 = vmatprep.mubr.f32.mxu0 0.0
    %v936 = vand.u32 %v52, 4294901760
    %937 = vmatmul.mubr.f32.gmra.mrb[0].mxu0 %v936
    %v938 = vpop.f32.mrb[0].mxu0
    %v939 = vadd.f32 %v745, %v938
    %v940 = vpop.f32.mrb[0].mxu0
    %941 = vmatprep.mubr.f32.mxu0 0.0
    %v942 = vand.u32 %v55, 4294901760
    %943 = vmatmul.mubr.f32.gmra.mrb[0].mxu0 %v942
    %v944 = vpop.f32.mrb[0].mxu0
    %v945 = vadd.f32 %v753, %v944
    %v946 = vpop.f32.mrb[0].mxu0
    %947 = vmatprep.mubr.f32.mxu0 0.0
    %v948 = vand.u32 %v58, 4294901760
    %949 = vmatmul.mubr.f32.gmra.mrb[0].mxu0 %v948
    %v950 = vpop.f32.mrb[0].mxu0
    %v951 = vadd.f32 %v761, %v950
    %v952 = vpop.f32.mrb[0].mxu0
    %953 = vmatprep.mubr.f32.mxu0 0.0
    %v954 = vand.u32 %v61, 4294901760
    %955 = vmatmul.mubr.f32.gmra.mrb[0].mxu0 %v954
    %v956 = vpop.f32.mrb[0].mxu0
    %v957 = vadd.f32 %v769, %v956
    %v958 = vpop.f32.mrb[0].mxu0
    %959 = vmatprep.mubr.f32.mxu0 0.0
    %v960 = vand.u32 %v64, 4294901760
    %961 = vmatmul.mubr.f32.gmra.mrb[0].mxu0 %v960
    %v962 = vpop.f32.mrb[0].mxu0
    %v963 = vadd.f32 %v777, %v962
    %v964 = vpop.f32.mrb[0].mxu0
    %965 = vmatprep.mubr.f32.mxu0 0.0
    %v966 = vand.u32 %v67, 4294901760
    %967 = vmatmul.mubr.f32.gmra.mrb[0].mxu0 %v966
    %v968 = vpop.f32.mrb[0].mxu0
    %v969 = vadd.f32 %v785, %v968
    %v970 = vpop.f32.mrb[0].mxu0
    %971 = vmatprep.mubr.f32.mxu0 0.0
    %v972 = vand.u32 %v70, 4294901760
    %973 = vmatmul.mubr.f32.gmra.mrb[0].mxu0 %v972
    %v974 = vpop.f32.mrb[0].mxu0
    %v975 = vadd.f32 %v793, %v974
    %v976 = vpop.f32.mrb[0].mxu0
    %977 = vmatprep.mubr.f32.mxu0 0.0
    %v978 = vand.u32 %v73, 4294901760
    %979 = vmatmul.mubr.f32.gmra.mrb[0].mxu0 %v978
    %v980 = vpop.f32.mrb[0].mxu0
    %v981 = vadd.f32 %v801, %v980
    %v982 = vpop.f32.mrb[0].mxu0
    %983 = vmatprep.mubr.f32.mxu0 0.0
    %v984 = vand.u32 %v76, 4294901760
    %985 = vmatmul.mubr.f32.gmra.mrb[0].mxu0 %v984
    %v986 = vpop.f32.mrb[0].mxu0
    %v987 = vadd.f32 %v809, %v986
    %v988 = vpop.f32.mrb[0].mxu0
    %989 = vmatprep.mubr.f32.mxu0 0.0
    %v990 = vand.u32 %v79, 4294901760
    %991 = vmatmul.mubr.f32.gmra.mrb[0].mxu0 %v990
    %v992 = vpop.f32.mrb[0].mxu0
    %v993 = vadd.f32 %v817, %v992
    %v994 = vpop.f32.mrb[0].mxu0
    %995 = vmatprep.mubr.f32.mxu0 0.0
    %v996 = vand.u32 %v82, 4294901760
    %997 = vmatmul.mubr.f32.gmra.mrb[0].mxu0 %v996
    %v998 = vpop.f32.mrb[0].mxu0
    %v999 = vadd.f32 %v825, %v998
    %v1000 = vpop.f32.mrb[0].mxu0
    %1001 = vmatprep.mubr.f32.mxu0 0.0
    %v1002 = vand.u32 %v85, 4294901760
    %1003 = vmatmul.mubr.f32.gmra.mrb[0].mxu0 %v1002
    %v1004 = vpop.f32.mrb[0].mxu0
    %v1005 = vadd.f32 %v833, %v1004
    %v1006 = vpop.f32.mrb[0].mxu0
    %1007 = vmatprep.mubr.f32.mxu0 0.0
    %v1008 = vand.u32 %v88, 4294901760
    %1009 = vmatmul.mubr.f32.gmra.mrb[0].mxu0 %v1008
    %v1010 = vpop.f32.mrb[0].mxu0
    %v1011 = vadd.f32 %v841, %v1010
    %v1012 = vpop.f32.mrb[0].mxu0
    %1013 = vmatprep.mubr.f32.mxu0 0.0
    %v1014 = vand.u32 %v91, 4294901760
    %1015 = vmatmul.mubr.f32.gmra.mrb[0].mxu0 %v1014
    %v1016 = vpop.f32.mrb[0].mxu0
    %v1017 = vadd.f32 %v849, %v1016
    %v1018 = vpop.f32.mrb[0].mxu0
    %1019 = vmatprep.mubr.f32.mxu0 0.0
    %v1020 = vand.u32 %v94, 4294901760
    %1021 = vmatmul.mubr.f32.gmra.mrb[0].mxu0 %v1020
    %v1022 = vpop.f32.mrb[0].mxu0
    %v1023 = vadd.f32 %v857, %v1022
    %v1024 = vpop.f32.mrb[0].mxu0
    %1025 = vmatprep.mubr.f32.mxu0 0.0
    %v1026 = vand.u32 %v97, 4294901760
    %1027 = vmatmul.mubr.f32.gmra.mrb[0].mxu0 %v1026
    %v1028 = vpop.f32.mrb[0].mxu0
    %v1029 = vadd.f32 %v865, %v1028
    %v1030 = vpop.f32.mrb[0].mxu0
    %1031 = vdwg.mxu0
    %1032 = vmatprep.subr.mxu0 0.0
    %v1033 = vand.u32 %v101, 4294901760
    %1034 = vmatpush1.msra.mxu0 %v1033
    %1035 = vmatprep.subr.mxu0 0.0
    %1036 = vmatpush1.msra.mxu0 0.0
    %1037 = vmatprep.subr.mxu0 0.0
    %1038 = vmatpush1.msra.mxu0 0.0
    %1039 = vmatprep.subr.mxu0 0.0
    %1040 = vmatpush1.msra.mxu0 0.0
    %1041 = vmatprep.subr.mxu0 0.0
    %1042 = vmatpush1.msra.mxu0 0.0
    %1043 = vmatprep.subr.mxu0 0.0
    %1044 = vmatpush1.msra.mxu0 0.0
    %1045 = vmatprep.subr.mxu0 0.0
    %1046 = vmatpush1.msra.mxu0 0.0
    %1047 = vmatprep.subr.mxu0 0.0
    %1048 = vmatpush1.msra.mxu0 0.0
    %1049 = vmatprep.subr.mxu0 0.0
    %1050 = vmatpush1.msra.mxu0 0.0
    %1051 = vmatprep.subr.mxu0 0.0
    %1052 = vmatpush1.msra.mxu0 0.0
    %1053 = vmatprep.subr.mxu0 0.0
    %1054 = vmatpush1.msra.mxu0 0.0
    %1055 = vmatprep.subr.mxu0 0.0
    %1056 = vmatpush1.msra.mxu0 0.0
    %1057 = vmatprep.subr.mxu0 0.0
    %1058 = vmatpush1.msra.mxu0 0.0
    %1059 = vmatprep.subr.mxu0 0.0
    %1060 = vmatpush1.msra.mxu0 0.0
    %1061 = vmatprep.subr.mxu0 0.0
    %1062 = vmatpush1.msra.mxu0 0.0
    %1063 = vmatprep.subr.mxu0 0.0
    %1064 = vmatpush1.msra.mxu0 0.0
    %1065 = vmatprep.subr.mxu0 0.0
    %1066 = vmatpush1.msra.mxu0 0.0
    %1067 = vmatprep.subr.mxu0 0.0
    %1068 = vmatpush1.msra.mxu0 0.0
    %1069 = vmatprep.subr.mxu0 0.0
    %1070 = vmatpush1.msra.mxu0 0.0
    %1071 = vmatprep.subr.mxu0 0.0
    %1072 = vmatpush1.msra.mxu0 0.0
    %1073 = vmatprep.subr.mxu0 0.0
    %1074 = vmatpush1.msra.mxu0 0.0
    %1075 = vmatprep.subr.mxu0 0.0
    %1076 = vmatpush1.msra.mxu0 0.0
    %1077 = vmatprep.subr.mxu0 0.0
    %1078 = vmatpush1.msra.mxu0 0.0
    %1079 = vmatprep.subr.mxu0 0.0
    %1080 = vmatpush1.msra.mxu0 0.0
    %1081 = vmatprep.subr.mxu0 0.0
    %1082 = vmatpush1.msra.mxu0 0.0
    %1083 = vmatprep.subr.mxu0 0.0
    %1084 = vmatpush1.msra.mxu0 0.0
    %1085 = vmatprep.subr.mxu0 0.0
    %1086 = vmatpush1.msra.mxu0 0.0
    %1087 = vmatprep.subr.mxu0 0.0
    %1088 = vmatpush1.msra.mxu0 0.0
    %1089 = vmatprep.subr.mxu0 0.0
    %1090 = vmatpush1.msra.mxu0 0.0
    %1091 = vmatprep.subr.mxu0 0.0
    %1092 = vmatpush1.msra.mxu0 0.0
    %1093 = vmatprep.subr.mxu0 0.0
    %1094 = vmatpush1.msra.mxu0 0.0
    %1095 = vmatprep.subr.mxu0 0.0
    %1096 = vmatpush1.msra.mxu0 0.0
    %1097 = vmatprep.mubr.f32.mxu0 0.0
    %v1098 = vand.u32 %v52, 4294901760
    %1099 = vmatmul.mubr.f32.gmra.mrb[0].mxu0 %v1098
    %v1100 = vpop.f32.mrb[0].mxu0
    %v1101 = vadd.f32 %v939, %v1100
    %v1102 = vpop.f32.mrb[0].mxu0
    %1103 = vmatprep.mubr.f32.mxu0 0.0
    %v1104 = vand.u32 %v55, 4294901760
    %1105 = vmatmul.mubr.f32.gmra.mrb[0].mxu0 %v1104
    %v1106 = vpop.f32.mrb[0].mxu0
    %v1107 = vadd.f32 %v945, %v1106
    %v1108 = vpop.f32.mrb[0].mxu0
    %1109 = vmatprep.mubr.f32.mxu0 0.0
    %v1110 = vand.u32 %v58, 4294901760
    %1111 = vmatmul.mubr.f32.gmra.mrb[0].mxu0 %v1110
    %v1112 = vpop.f32.mrb[0].mxu0
    %v1113 = vadd.f32 %v951, %v1112
    %v1114 = vpop.f32.mrb[0].mxu0
    %1115 = vmatprep.mubr.f32.mxu0 0.0
    %v1116 = vand.u32 %v61, 4294901760
    %1117 = vmatmul.mubr.f32.gmra.mrb[0].mxu0 %v1116
    %v1118 = vpop.f32.mrb[0].mxu0
    %v1119 = vadd.f32 %v957, %v1118
    %v1120 = vpop.f32.mrb[0].mxu0
    %1121 = vmatprep.mubr.f32.mxu0 0.0
    %v1122 = vand.u32 %v64, 4294901760
    %1123 = vmatmul.mubr.f32.gmra.mrb[0].mxu0 %v1122
    %v1124 = vpop.f32.mrb[0].mxu0
    %v1125 = vadd.f32 %v963, %v1124
    %v1126 = vpop.f32.mrb[0].mxu0
    %1127 = vmatprep.mubr.f32.mxu0 0.0
    %v1128 = vand.u32 %v67, 4294901760
    %1129 = vmatmul.mubr.f32.gmra.mrb[0].mxu0 %v1128
    %v1130 = vpop.f32.mrb[0].mxu0
    %v1131 = vadd.f32 %v969, %v1130
    %v1132 = vpop.f32.mrb[0].mxu0
    %1133 = vmatprep.mubr.f32.mxu0 0.0
    %v1134 = vand.u32 %v70, 4294901760
    %1135 = vmatmul.mubr.f32.gmra.mrb[0].mxu0 %v1134
    %v1136 = vpop.f32.mrb[0].mxu0
    %v1137 = vadd.f32 %v975, %v1136
    %v1138 = vpop.f32.mrb[0].mxu0
    %1139 = vmatprep.mubr.f32.mxu0 0.0
    %v1140 = vand.u32 %v73, 4294901760
    %1141 = vmatmul.mubr.f32.gmra.mrb[0].mxu0 %v1140
    %v1142 = vpop.f32.mrb[0].mxu0
    %v1143 = vadd.f32 %v981, %v1142
    %v1144 = vpop.f32.mrb[0].mxu0
    %1145 = vmatprep.mubr.f32.mxu0 0.0
    %v1146 = vand.u32 %v76, 4294901760
    %1147 = vmatmul.mubr.f32.gmra.mrb[0].mxu0 %v1146
    %v1148 = vpop.f32.mrb[0].mxu0
    %v1149 = vadd.f32 %v987, %v1148
    %v1150 = vpop.f32.mrb[0].mxu0
    %1151 = vmatprep.mubr.f32.mxu0 0.0
    %v1152 = vand.u32 %v79, 4294901760
    %1153 = vmatmul.mubr.f32.gmra.mrb[0].mxu0 %v1152
    %v1154 = vpop.f32.mrb[0].mxu0
    %v1155 = vadd.f32 %v993, %v1154
    %v1156 = vpop.f32.mrb[0].mxu0
    %1157 = vmatprep.mubr.f32.mxu0 0.0
    %v1158 = vand.u32 %v82, 4294901760
    %1159 = vmatmul.mubr.f32.gmra.mrb[0].mxu0 %v1158
    %v1160 = vpop.f32.mrb[0].mxu0
    %v1161 = vadd.f32 %v999, %v1160
    %v1162 = vpop.f32.mrb[0].mxu0
    %1163 = vmatprep.mubr.f32.mxu0 0.0
    %v1164 = vand.u32 %v85, 4294901760
    %1165 = vmatmul.mubr.f32.gmra.mrb[0].mxu0 %v1164
    %v1166 = vpop.f32.mrb[0].mxu0
    %v1167 = vadd.f32 %v1005, %v1166
    %v1168 = vpop.f32.mrb[0].mxu0
    %1169 = vmatprep.mubr.f32.mxu0 0.0
    %v1170 = vand.u32 %v88, 4294901760
    %1171 = vmatmul.mubr.f32.gmra.mrb[0].mxu0 %v1170
    %v1172 = vpop.f32.mrb[0].mxu0
    %v1173 = vadd.f32 %v1011, %v1172
    %v1174 = vpop.f32.mrb[0].mxu0
    %1175 = vmatprep.mubr.f32.mxu0 0.0
    %v1176 = vand.u32 %v91, 4294901760
    %1177 = vmatmul.mubr.f32.gmra.mrb[0].mxu0 %v1176
    %v1178 = vpop.f32.mrb[0].mxu0
    %v1179 = vadd.f32 %v1017, %v1178
    %v1180 = vpop.f32.mrb[0].mxu0
    %1181 = vmatprep.mubr.f32.mxu0 0.0
    %v1182 = vand.u32 %v94, 4294901760
    %1183 = vmatmul.mubr.f32.gmra.mrb[0].mxu0 %v1182
    %v1184 = vpop.f32.mrb[0].mxu0
    %v1185 = vadd.f32 %v1023, %v1184
    %v1186 = vpop.f32.mrb[0].mxu0
    %1187 = vmatprep.mubr.f32.mxu0 0.0
    %v1188 = vand.u32 %v97, 4294901760
    %1189 = vmatmul.mubr.f32.gmra.mrb[0].mxu0 %v1188
    %v1190 = vpop.f32.mrb[0].mxu0
    %v1191 = vadd.f32 %v1029, %v1190
    %v1192 = vpop.f32.mrb[0].mxu0
    %1193 = vdwg.mxu0
    %v1194 = vmax.f32 %v1101, 0.0
    %v1195 = vmax.f32 %v1107, 0.0
    %v1196 = vmax.f32 %v1113, 0.0
    %v1197 = vmax.f32 %v1119, 0.0
    %v1198 = vmax.f32 %v1125, 0.0
    %v1199 = vmax.f32 %v1131, 0.0
    %v1200 = vmax.f32 %v1137, 0.0
    %v1201 = vmax.f32 %v1143, 0.0
    %v1202 = vmax.f32 %v1149, 0.0
    %v1203 = vmax.f32 %v1155, 0.0
    %v1204 = vmax.f32 %v1161, 0.0
    %v1205 = vmax.f32 %v1167, 0.0
    %v1206 = vmax.f32 %v1173, 0.0
    %v1207 = vmax.f32 %v1179, 0.0
    %v1208 = vmax.f32 %v1185, 0.0
    %v1209 = vmax.f32 %v1191, 0.0
    %v1210 = vld [vmem:[%s3] sm:$0xff]
    %v1211 = vld [vmem:[%s3 + $0x8] sm:$0xff]
    %v1212 = vld [vmem:[%s3 + $0x10] sm:$0xf]
    %v1213 = vld [vmem:[%s4] sm:$0x1]
    %v1215 = vlaneseq
    %v1216 = vshrl.u32 %v1215, 7
    %v1217 = vsub.s32 0, %v1216
    %v1218 = vrot.slane %v1213, %v1217
    %vm1220 = vcmask 162816
    %v1222 = vsel %vm1220, %v1194, 0
    %v1225 = vsel %vm1220, %v1195, 0
    %v1228 = vsel %vm1220, %v1196, 0
    %v1231 = vsel %vm1220, %v1197, 0
    %v1234 = vsel %vm1220, %v1198, 0
    %v1237 = vsel %vm1220, %v1199, 0
    %v1240 = vsel %vm1220, %v1200, 0
    %v1243 = vsel %vm1220, %v1201, 0
    %v1246 = vsel %vm1220, %v1202, 0
    %v1249 = vsel %vm1220, %v1203, 0
    %v1252 = vsel %vm1220, %v1204, 0
    %v1255 = vsel %vm1220, %v1205, 0
    %v1258 = vsel %vm1220, %v1206, 0
    %v1261 = vsel %vm1220, %v1207, 0
    %v1264 = vsel %vm1220, %v1208, 0
    %v1267 = vsel %vm1220, %v1209, 0
    %vm1269 = vcmask 1043456
    %v1271 = vsel %vm1269, %v1212, 0
    %1273 = vmatprep.subr.mxu0 0.0
    %v1274 = vand.u32 %v1210, 4294901760
    %1275 = vmatpush1.msra.mxu0 %v1274
    %1276 = vmatprep.subr.mxu0 0.0
    %v1277 = vand.u32 %v1211, 4294901760
    %1278 = vmatpush1.msra.mxu0 %v1277
    %1279 = vmatprep.subr.mxu0 0.0
    %v1280 = vand.u32 %v1271, 4294901760
    %1281 = vmatpush1.msra.mxu0 %v1280
    %1282 = vmatprep.subr.mxu0 0.0
    %1283 = vmatpush1.msra.mxu0 0.0
    %1284 = vmatprep.subr.mxu0 0.0
    %1285 = vmatpush1.msra.mxu0 0.0
    %1286 = vmatprep.subr.mxu0 0.0
    %1287 = vmatpush1.msra.mxu0 0.0
    %1288 = vmatprep.subr.mxu0 0.0
    %1289 = vmatpush1.msra.mxu0 0.0
    %1290 = vmatprep.subr.mxu0 0.0
    %1291 = vmatpush1.msra.mxu0 0.0
    %1292 = vmatprep.subr.mxu0 0.0
    %1293 = vmatpush1.msra.mxu0 0.0
    %1294 = vmatprep.subr.mxu0 0.0
    %1295 = vmatpush1.msra.mxu0 0.0
    %1296 = vmatprep.subr.mxu0 0.0
    %1297 = vmatpush1.msra.mxu0 0.0
    %1298 = vmatprep.subr.mxu0 0.0
    %1299 = vmatpush1.msra.mxu0 0.0
    %1300 = vmatprep.subr.mxu0 0.0
    %1301 = vmatpush1.msra.mxu0 0.0
    %1302 = vmatprep.subr.mxu0 0.0
    %1303 = vmatpush1.msra.mxu0 0.0
    %1304 = vmatprep.subr.mxu0 0.0
    %1305 = vmatpush1.msra.mxu0 0.0
    %1306 = vmatprep.subr.mxu0 0.0
    %1307 = vmatpush1.msra.mxu0 0.0
    %1308 = vmatprep.subr.mxu0 0.0
    %1309 = vmatpush1.msra.mxu0 0.0
    %1310 = vmatprep.subr.mxu0 0.0
    %1311 = vmatpush1.msra.mxu0 0.0
    %1312 = vmatprep.subr.mxu0 0.0
    %1313 = vmatpush1.msra.mxu0 0.0
    %1314 = vmatprep.subr.mxu0 0.0
    %1315 = vmatpush1.msra.mxu0 0.0
    %1316 = vmatprep.subr.mxu0 0.0
    %1317 = vmatpush1.msra.mxu0 0.0
    %1318 = vmatprep.subr.mxu0 0.0
    %1319 = vmatpush1.msra.mxu0 0.0
    %1320 = vmatprep.subr.mxu0 0.0
    %1321 = vmatpush1.msra.mxu0 0.0
    %1322 = vmatprep.subr.mxu0 0.0
    %1323 = vmatpush1.msra.mxu0 0.0
    %1324 = vmatprep.subr.mxu0 0.0
    %1325 = vmatpush1.msra.mxu0 0.0
    %1326 = vmatprep.subr.mxu0 0.0
    %1327 = vmatpush1.msra.mxu0 0.0
    %1328 = vmatprep.subr.mxu0 0.0
    %1329 = vmatpush1.msra.mxu0 0.0
    %1330 = vmatprep.subr.mxu0 0.0
    %1331 = vmatpush1.msra.mxu0 0.0
    %1332 = vmatprep.subr.mxu0 0.0
    %1333 = vmatpush1.msra.mxu0 0.0
    %1334 = vmatprep.subr.mxu0 0.0
    %1335 = vmatpush1.msra.mxu0 0.0
    %1336 = vmatprep.subr.mxu0 0.0
    %1337 = vmatpush1.msra.mxu0 0.0
    %1338 = vmatprep.subr.mxu0 0.0
    %1339 = vmatpush1.msra.mxu0 0.0
    %1340 = vmatprep.mubr.f32.mxu0 0.0
    %v1341 = vand.u32 %v1222, 4294901760
    %v1342 = vsub.f32 %v1222, %v1341
    %v1343 = vand.u32 %v1342, 4294901760
    %v1344 = vsub.f32 %v1342, %v1343
    %v1345 = vand.u32 %v1344, 4294901760
    %1346 = vmatmul.mubr.f32.gmra.mrb[0].mxu0 %v1345
    %v1347 = vpop.f32.mrb[0].mxu0
    %v1348 = vadd.f32 %v1218, %v1347
    %v1349 = vpop.f32.mrb[0].mxu0
    %1350 = vmatprep.mubr.f32.mxu0 0.0
    %v1351 = vand.u32 %v1225, 4294901760
    %v1352 = vsub.f32 %v1225, %v1351
    %v1353 = vand.u32 %v1352, 4294901760
    %v1354 = vsub.f32 %v1352, %v1353
    %v1355 = vand.u32 %v1354, 4294901760
    %1356 = vmatmul.mubr.f32.gmra.mrb[0].mxu0 %v1355
    %v1357 = vpop.f32.mrb[0].mxu0
    %v1358 = vadd.f32 %v1218, %v1357
    %v1359 = vpop.f32.mrb[0].mxu0
    %1360 = vmatprep.mubr.f32.mxu0 0.0
    %v1361 = vand.u32 %v1228, 4294901760
    %v1362 = vsub.f32 %v1228, %v1361
    %v1363 = vand.u32 %v1362, 4294901760
    %v1364 = vsub.f32 %v1362, %v1363
    %v1365 = vand.u32 %v1364, 4294901760
    %1366 = vmatmul.mubr.f32.gmra.mrb[0].mxu0 %v1365
    %v1367 = vpop.f32.mrb[0].mxu0
    %v1368 = vadd.f32 %v1218, %v1367
    %v1369 = vpop.f32.mrb[0].mxu0
    %1370 = vmatprep.mubr.f32.mxu0 0.0
    %v1371 = vand.u32 %v1231, 4294901760
    %v1372 = vsub.f32 %v1231, %v1371
    %v1373 = vand.u32 %v1372, 4294901760
    %v1374 = vsub.f32 %v1372, %v1373
    %v1375 = vand.u32 %v1374, 4294901760
    %1376 = vmatmul.mubr.f32.gmra.mrb[0].mxu0 %v1375
    %v1377 = vpop.f32.mrb[0].mxu0
    %v1378 = vadd.f32 %v1218, %v1377
    %v1379 = vpop.f32.mrb[0].mxu0
    %1380 = vmatprep.mubr.f32.mxu0 0.0
    %v1381 = vand.u32 %v1234, 4294901760
    %v1382 = vsub.f32 %v1234, %v1381
    %v1383 = vand.u32 %v1382, 4294901760
    %v1384 = vsub.f32 %v1382, %v1383
    %v1385 = vand.u32 %v1384, 4294901760
    %1386 = vmatmul.mubr.f32.gmra.mrb[0].mxu0 %v1385
    %v1387 = vpop.f32.mrb[0].mxu0
    %v1388 = vadd.f32 %v1218, %v1387
    %v1389 = vpop.f32.mrb[0].mxu0
    %1390 = vmatprep.mubr.f32.mxu0 0.0
    %v1391 = vand.u32 %v1237, 4294901760
    %v1392 = vsub.f32 %v1237, %v1391
    %v1393 = vand.u32 %v1392, 4294901760
    %v1394 = vsub.f32 %v1392, %v1393
    %v1395 = vand.u32 %v1394, 4294901760
    %1396 = vmatmul.mubr.f32.gmra.mrb[0].mxu0 %v1395
    %v1397 = vpop.f32.mrb[0].mxu0
    %v1398 = vadd.f32 %v1218, %v1397
    %v1399 = vpop.f32.mrb[0].mxu0
    %1400 = vmatprep.mubr.f32.mxu0 0.0
    %v1401 = vand.u32 %v1240, 4294901760
    %v1402 = vsub.f32 %v1240, %v1401
    %v1403 = vand.u32 %v1402, 4294901760
    %v1404 = vsub.f32 %v1402, %v1403
    %v1405 = vand.u32 %v1404, 4294901760
    %1406 = vmatmul.mubr.f32.gmra.mrb[0].mxu0 %v1405
    %v1407 = vpop.f32.mrb[0].mxu0
    %v1408 = vadd.f32 %v1218, %v1407
    %v1409 = vpop.f32.mrb[0].mxu0
    %1410 = vmatprep.mubr.f32.mxu0 0.0
    %v1411 = vand.u32 %v1243, 4294901760
    %v1412 = vsub.f32 %v1243, %v1411
    %v1413 = vand.u32 %v1412, 4294901760
    %v1414 = vsub.f32 %v1412, %v1413
    %v1415 = vand.u32 %v1414, 4294901760
    %1416 = vmatmul.mubr.f32.gmra.mrb[0].mxu0 %v1415
    %v1417 = vpop.f32.mrb[0].mxu0
    %v1418 = vadd.f32 %v1218, %v1417
    %v1419 = vpop.f32.mrb[0].mxu0
    %1420 = vmatprep.mubr.f32.mxu0 0.0
    %v1421 = vand.u32 %v1246, 4294901760
    %v1422 = vsub.f32 %v1246, %v1421
    %v1423 = vand.u32 %v1422, 4294901760
    %v1424 = vsub.f32 %v1422, %v1423
    %v1425 = vand.u32 %v1424, 4294901760
    %1426 = vmatmul.mubr.f32.gmra.mrb[0].mxu0 %v1425
    %v1427 = vpop.f32.mrb[0].mxu0
    %v1428 = vadd.f32 %v1218, %v1427
    %v1429 = vpop.f32.mrb[0].mxu0
    %1430 = vmatprep.mubr.f32.mxu0 0.0
    %v1431 = vand.u32 %v1249, 4294901760
    %v1432 = vsub.f32 %v1249, %v1431
    %v1433 = vand.u32 %v1432, 4294901760
    %v1434 = vsub.f32 %v1432, %v1433
    %v1435 = vand.u32 %v1434, 4294901760
    %1436 = vmatmul.mubr.f32.gmra.mrb[0].mxu0 %v1435
    %v1437 = vpop.f32.mrb[0].mxu0
    %v1438 = vadd.f32 %v1218, %v1437
    %v1439 = vpop.f32.mrb[0].mxu0
    %1440 = vmatprep.mubr.f32.mxu0 0.0
    %v1441 = vand.u32 %v1252, 4294901760
    %v1442 = vsub.f32 %v1252, %v1441
    %v1443 = vand.u32 %v1442, 4294901760
    %v1444 = vsub.f32 %v1442, %v1443
    %v1445 = vand.u32 %v1444, 4294901760
    %1446 = vmatmul.mubr.f32.gmra.mrb[0].mxu0 %v1445
    %v1447 = vpop.f32.mrb[0].mxu0
    %v1448 = vadd.f32 %v1218, %v1447
    %v1449 = vpop.f32.mrb[0].mxu0
    %1450 = vmatprep.mubr.f32.mxu0 0.0
    %v1451 = vand.u32 %v1255, 4294901760
    %v1452 = vsub.f32 %v1255, %v1451
    %v1453 = vand.u32 %v1452, 4294901760
    %v1454 = vsub.f32 %v1452, %v1453
    %v1455 = vand.u32 %v1454, 4294901760
    %1456 = vmatmul.mubr.f32.gmra.mrb[0].mxu0 %v1455
    %v1457 = vpop.f32.mrb[0].mxu0
    %v1458 = vadd.f32 %v1218, %v1457
    %v1459 = vpop.f32.mrb[0].mxu0
    %1460 = vmatprep.mubr.f32.mxu0 0.0
    %v1461 = vand.u32 %v1258, 4294901760
    %v1462 = vsub.f32 %v1258, %v1461
    %v1463 = vand.u32 %v1462, 4294901760
    %v1464 = vsub.f32 %v1462, %v1463
    %v1465 = vand.u32 %v1464, 4294901760
    %1466 = vmatmul.mubr.f32.gmra.mrb[0].mxu0 %v1465
    %v1467 = vpop.f32.mrb[0].mxu0
    %v1468 = vadd.f32 %v1218, %v1467
    %v1469 = vpop.f32.mrb[0].mxu0
    %1470 = vmatprep.mubr.f32.mxu0 0.0
    %v1471 = vand.u32 %v1261, 4294901760
    %v1472 = vsub.f32 %v1261, %v1471
    %v1473 = vand.u32 %v1472, 4294901760
    %v1474 = vsub.f32 %v1472, %v1473
    %v1475 = vand.u32 %v1474, 4294901760
    %1476 = vmatmul.mubr.f32.gmra.mrb[0].mxu0 %v1475
    %v1477 = vpop.f32.mrb[0].mxu0
    %v1478 = vadd.f32 %v1218, %v1477
    %v1479 = vpop.f32.mrb[0].mxu0
    %1480 = vmatprep.mubr.f32.mxu0 0.0
    %v1481 = vand.u32 %v1264, 4294901760
    %v1482 = vsub.f32 %v1264, %v1481
    %v1483 = vand.u32 %v1482, 4294901760
    %v1484 = vsub.f32 %v1482, %v1483
    %v1485 = vand.u32 %v1484, 4294901760
    %1486 = vmatmul.mubr.f32.gmra.mrb[0].mxu0 %v1485
    %v1487 = vpop.f32.mrb[0].mxu0
    %v1488 = vadd.f32 %v1218, %v1487
    %v1489 = vpop.f32.mrb[0].mxu0
    %1490 = vmatprep.mubr.f32.mxu0 0.0
    %v1491 = vand.u32 %v1267, 4294901760
    %v1492 = vsub.f32 %v1267, %v1491
    %v1493 = vand.u32 %v1492, 4294901760
    %v1494 = vsub.f32 %v1492, %v1493
    %v1495 = vand.u32 %v1494, 4294901760
    %1496 = vmatmul.mubr.f32.gmra.mrb[0].mxu0 %v1495
    %v1497 = vpop.f32.mrb[0].mxu0
    %v1498 = vadd.f32 %v1218, %v1497
    %v1499 = vpop.f32.mrb[0].mxu0
    %1500 = vdwg.mxu0
    %1501 = vmatprep.subr.mxu0 0.0
    %v1502 = vand.u32 %v1210, 4294901760
    %v1503 = vsub.f32 %v1210, %v1502
    %v1504 = vand.u32 %v1503, 4294901760
    %v1505 = vsub.f32 %v1503, %v1504
    %v1506 = vand.u32 %v1505, 4294901760
    %1507 = vmatpush1.msra.mxu0 %v1506
    %1508 = vmatprep.subr.mxu0 0.0
    %v1509 = vand.u32 %v1211, 4294901760
    %v1510 = vsub.f32 %v1211, %v1509
    %v1511 = vand.u32 %v1510, 4294901760
    %v1512 = vsub.f32 %v1510, %v1511
    %v1513 = vand.u32 %v1512, 4294901760
    %1514 = vmatpush1.msra.mxu0 %v1513
    %1515 = vmatprep.subr.mxu0 0.0
    %v1516 = vand.u32 %v1271, 4294901760
    %v1517 = vsub.f32 %v1271, %v1516
    %v1518 = vand.u32 %v1517, 4294901760
    %v1519 = vsub.f32 %v1517, %v1518
    %v1520 = vand.u32 %v1519, 4294901760
    %1521 = vmatpush1.msra.mxu0 %v1520
    %1522 = vmatprep.subr.mxu0 0.0
    %1523 = vmatpush1.msra.mxu0 0.0
    %1524 = vmatprep.subr.mxu0 0.0
    %1525 = vmatpush1.msra.mxu0 0.0
    %1526 = vmatprep.subr.mxu0 0.0
    %1527 = vmatpush1.msra.mxu0 0.0
    %1528 = vmatprep.subr.mxu0 0.0
    %1529 = vmatpush1.msra.mxu0 0.0
    %1530 = vmatprep.subr.mxu0 0.0
    %1531 = vmatpush1.msra.mxu0 0.0
    %1532 = vmatprep.subr.mxu0 0.0
    %1533 = vmatpush1.msra.mxu0 0.0
    %1534 = vmatprep.subr.mxu0 0.0
    %1535 = vmatpush1.msra.mxu0 0.0
    %1536 = vmatprep.subr.mxu0 0.0
    %1537 = vmatpush1.msra.mxu0 0.0
    %1538 = vmatprep.subr.mxu0 0.0
    %1539 = vmatpush1.msra.mxu0 0.0
    %1540 = vmatprep.subr.mxu0 0.0
    %1541 = vmatpush1.msra.mxu0 0.0
    %1542 = vmatprep.subr.mxu0 0.0
    %1543 = vmatpush1.msra.mxu0 0.0
    %1544 = vmatprep.subr.mxu0 0.0
    %1545 = vmatpush1.msra.mxu0 0.0
    %1546 = vmatprep.subr.mxu0 0.0
    %1547 = vmatpush1.msra.mxu0 0.0
    %1548 = vmatprep.subr.mxu0 0.0
    %1549 = vmatpush1.msra.mxu0 0.0
    %1550 = vmatprep.subr.mxu0 0.0
    %1551 = vmatpush1.msra.mxu0 0.0
    %1552 = vmatprep.subr.mxu0 0.0
    %1553 = vmatpush1.msra.mxu0 0.0
    %1554 = vmatprep.subr.mxu0 0.0
    %1555 = vmatpush1.msra.mxu0 0.0
    %1556 = vmatprep.subr.mxu0 0.0
    %1557 = vmatpush1.msra.mxu0 0.0
    %1558 = vmatprep.subr.mxu0 0.0
    %1559 = vmatpush1.msra.mxu0 0.0
    %1560 = vmatprep.subr.mxu0 0.0
    %1561 = vmatpush1.msra.mxu0 0.0
    %1562 = vmatprep.subr.mxu0 0.0
    %1563 = vmatpush1.msra.mxu0 0.0
    %1564 = vmatprep.subr.mxu0 0.0
    %1565 = vmatpush1.msra.mxu0 0.0
    %1566 = vmatprep.subr.mxu0 0.0
    %1567 = vmatpush1.msra.mxu0 0.0
    %1568 = vmatprep.subr.mxu0 0.0
    %1569 = vmatpush1.msra.mxu0 0.0
    %1570 = vmatprep.subr.mxu0 0.0
    %1571 = vmatpush1.msra.mxu0 0.0
    %1572 = vmatprep.subr.mxu0 0.0
    %1573 = vmatpush1.msra.mxu0 0.0
    %1574 = vmatprep.subr.mxu0 0.0
    %1575 = vmatpush1.msra.mxu0 0.0
    %1576 = vmatprep.subr.mxu0 0.0
    %1577 = vmatpush1.msra.mxu0 0.0
    %1578 = vmatprep.subr.mxu0 0.0
    %1579 = vmatpush1.msra.mxu0 0.0
    %1580 = vmatprep.mubr.f32.mxu0 0.0
    %v1581 = vand.u32 %v1222, 4294901760
    %1582 = vmatmul.mubr.f32.gmra.mrb[0].mxu0 %v1581
    %v1583 = vpop.f32.mrb[0].mxu0
    %v1584 = vadd.f32 %v1348, %v1583
    %v1585 = vpop.f32.mrb[0].mxu0
    %1586 = vmatprep.mubr.f32.mxu0 0.0
    %v1587 = vand.u32 %v1225, 4294901760
    %1588 = vmatmul.mubr.f32.gmra.mrb[0].mxu0 %v1587
    %v1589 = vpop.f32.mrb[0].mxu0
    %v1590 = vadd.f32 %v1358, %v1589
    %v1591 = vpop.f32.mrb[0].mxu0
    %1592 = vmatprep.mubr.f32.mxu0 0.0
    %v1593 = vand.u32 %v1228, 4294901760
    %1594 = vmatmul.mubr.f32.gmra.mrb[0].mxu0 %v1593
    %v1595 = vpop.f32.mrb[0].mxu0
    %v1596 = vadd.f32 %v1368, %v1595
    %v1597 = vpop.f32.mrb[0].mxu0
    %1598 = vmatprep.mubr.f32.mxu0 0.0
    %v1599 = vand.u32 %v1231, 4294901760
    %1600 = vmatmul.mubr.f32.gmra.mrb[0].mxu0 %v1599
    %v1601 = vpop.f32.mrb[0].mxu0
    %v1602 = vadd.f32 %v1378, %v1601
    %v1603 = vpop.f32.mrb[0].mxu0
    %1604 = vmatprep.mubr.f32.mxu0 0.0
    %v1605 = vand.u32 %v1234, 4294901760
    %1606 = vmatmul.mubr.f32.gmra.mrb[0].mxu0 %v1605
    %v1607 = vpop.f32.mrb[0].mxu0
    %v1608 = vadd.f32 %v1388, %v1607
    %v1609 = vpop.f32.mrb[0].mxu0
    %1610 = vmatprep.mubr.f32.mxu0 0.0
    %v1611 = vand.u32 %v1237, 4294901760
    %1612 = vmatmul.mubr.f32.gmra.mrb[0].mxu0 %v1611
    %v1613 = vpop.f32.mrb[0].mxu0
    %v1614 = vadd.f32 %v1398, %v1613
    %v1615 = vpop.f32.mrb[0].mxu0
    %1616 = vmatprep.mubr.f32.mxu0 0.0
    %v1617 = vand.u32 %v1240, 4294901760
    %1618 = vmatmul.mubr.f32.gmra.mrb[0].mxu0 %v1617
    %v1619 = vpop.f32.mrb[0].mxu0
    %v1620 = vadd.f32 %v1408, %v1619
    %v1621 = vpop.f32.mrb[0].mxu0
    %1622 = vmatprep.mubr.f32.mxu0 0.0
    %v1623 = vand.u32 %v1243, 4294901760
    %1624 = vmatmul.mubr.f32.gmra.mrb[0].mxu0 %v1623
    %v1625 = vpop.f32.mrb[0].mxu0
    %v1626 = vadd.f32 %v1418, %v1625
    %v1627 = vpop.f32.mrb[0].mxu0
    %1628 = vmatprep.mubr.f32.mxu0 0.0
    %v1629 = vand.u32 %v1246, 4294901760
    %1630 = vmatmul.mubr.f32.gmra.mrb[0].mxu0 %v1629
    %v1631 = vpop.f32.mrb[0].mxu0
    %v1632 = vadd.f32 %v1428, %v1631
    %v1633 = vpop.f32.mrb[0].mxu0
    %1634 = vmatprep.mubr.f32.mxu0 0.0
    %v1635 = vand.u32 %v1249, 4294901760
    %1636 = vmatmul.mubr.f32.gmra.mrb[0].mxu0 %v1635
    %v1637 = vpop.f32.mrb[0].mxu0
    %v1638 = vadd.f32 %v1438, %v1637
    %v1639 = vpop.f32.mrb[0].mxu0
    %1640 = vmatprep.mubr.f32.mxu0 0.0
    %v1641 = vand.u32 %v1252, 4294901760
    %1642 = vmatmul.mubr.f32.gmra.mrb[0].mxu0 %v1641
    %v1643 = vpop.f32.mrb[0].mxu0
    %v1644 = vadd.f32 %v1448, %v1643
    %v1645 = vpop.f32.mrb[0].mxu0
    %1646 = vmatprep.mubr.f32.mxu0 0.0
    %v1647 = vand.u32 %v1255, 4294901760
    %1648 = vmatmul.mubr.f32.gmra.mrb[0].mxu0 %v1647
    %v1649 = vpop.f32.mrb[0].mxu0
    %v1650 = vadd.f32 %v1458, %v1649
    %v1651 = vpop.f32.mrb[0].mxu0
    %1652 = vmatprep.mubr.f32.mxu0 0.0
    %v1653 = vand.u32 %v1258, 4294901760
    %1654 = vmatmul.mubr.f32.gmra.mrb[0].mxu0 %v1653
    %v1655 = vpop.f32.mrb[0].mxu0
    %v1656 = vadd.f32 %v1468, %v1655
    %v1657 = vpop.f32.mrb[0].mxu0
    %1658 = vmatprep.mubr.f32.mxu0 0.0
    %v1659 = vand.u32 %v1261, 4294901760
    %1660 = vmatmul.mubr.f32.gmra.mrb[0].mxu0 %v1659
    %v1661 = vpop.f32.mrb[0].mxu0
    %v1662 = vadd.f32 %v1478, %v1661
    %v1663 = vpop.f32.mrb[0].mxu0
    %1664 = vmatprep.mubr.f32.mxu0 0.0
    %v1665 = vand.u32 %v1264, 4294901760
    %1666 = vmatmul.mubr.f32.gmra.mrb[0].mxu0 %v1665
    %v1667 = vpop.f32.mrb[0].mxu0
    %v1668 = vadd.f32 %v1488, %v1667
    %v1669 = vpop.f32.mrb[0].mxu0
    %1670 = vmatprep.mubr.f32.mxu0 0.0
    %v1671 = vand.u32 %v1267, 4294901760
    %1672 = vmatmul.mubr.f32.gmra.mrb[0].mxu0 %v1671
    %v1673 = vpop.f32.mrb[0].mxu0
    %v1674 = vadd.f32 %v1498, %v1673
    %v1675 = vpop.f32.mrb[0].mxu0
    %1676 = vdwg.mxu0
    %1677 = vmatprep.subr.mxu0 0.0
    %v1678 = vand.u32 %v1210, 4294901760
    %v1679 = vsub.f32 %v1210, %v1678
    %1680 = vmatpush1.msra.mxu0 %v1679
    %1681 = vmatprep.subr.mxu0 0.0
    %v1682 = vand.u32 %v1211, 4294901760
    %v1683 = vsub.f32 %v1211, %v1682
    %1684 = vmatpush1.msra.mxu0 %v1683
    %1685 = vmatprep.subr.mxu0 0.0
    %v1686 = vand.u32 %v1271, 4294901760
    %v1687 = vsub.f32 %v1271, %v1686
    %1688 = vmatpush1.msra.mxu0 %v1687
    %1689 = vmatprep.subr.mxu0 0.0
    %1690 = vmatpush1.msra.mxu0 0.0
    %1691 = vmatprep.subr.mxu0 0.0
    %1692 = vmatpush1.msra.mxu0 0.0
    %1693 = vmatprep.subr.mxu0 0.0
    %1694 = vmatpush1.msra.mxu0 0.0
    %1695 = vmatprep.subr.mxu0 0.0
    %1696 = vmatpush1.msra.mxu0 0.0
    %1697 = vmatprep.subr.mxu0 0.0
    %1698 = vmatpush1.msra.mxu0 0.0
    %1699 = vmatprep.subr.mxu0 0.0
    %1700 = vmatpush1.msra.mxu0 0.0
    %1701 = vmatprep.subr.mxu0 0.0
    %1702 = vmatpush1.msra.mxu0 0.0
    %1703 = vmatprep.subr.mxu0 0.0
    %1704 = vmatpush1.msra.mxu0 0.0
    %1705 = vmatprep.subr.mxu0 0.0
    %1706 = vmatpush1.msra.mxu0 0.0
    %1707 = vmatprep.subr.mxu0 0.0
    %1708 = vmatpush1.msra.mxu0 0.0
    %1709 = vmatprep.subr.mxu0 0.0
    %1710 = vmatpush1.msra.mxu0 0.0
    %1711 = vmatprep.subr.mxu0 0.0
    %1712 = vmatpush1.msra.mxu0 0.0
    %1713 = vmatprep.subr.mxu0 0.0
    %1714 = vmatpush1.msra.mxu0 0.0
    %1715 = vmatprep.subr.mxu0 0.0
    %1716 = vmatpush1.msra.mxu0 0.0
    %1717 = vmatprep.subr.mxu0 0.0
    %1718 = vmatpush1.msra.mxu0 0.0
    %1719 = vmatprep.subr.mxu0 0.0
    %1720 = vmatpush1.msra.mxu0 0.0
    %1721 = vmatprep.subr.mxu0 0.0
    %1722 = vmatpush1.msra.mxu0 0.0
    %1723 = vmatprep.subr.mxu0 0.0
    %1724 = vmatpush1.msra.mxu0 0.0
    %1725 = vmatprep.subr.mxu0 0.0
    %1726 = vmatpush1.msra.mxu0 0.0
    %1727 = vmatprep.subr.mxu0 0.0
    %1728 = vmatpush1.msra.mxu0 0.0
    %1729 = vmatprep.subr.mxu0 0.0
    %1730 = vmatpush1.msra.mxu0 0.0
    %1731 = vmatprep.subr.mxu0 0.0
    %1732 = vmatpush1.msra.mxu0 0.0
    %1733 = vmatprep.subr.mxu0 0.0
    %1734 = vmatpush1.msra.mxu0 0.0
    %1735 = vmatprep.subr.mxu0 0.0
    %1736 = vmatpush1.msra.mxu0 0.0
    %1737 = vmatprep.subr.mxu0 0.0
    %1738 = vmatpush1.msra.mxu0 0.0
    %1739 = vmatprep.subr.mxu0 0.0
    %1740 = vmatpush1.msra.mxu0 0.0
    %1741 = vmatprep.subr.mxu0 0.0
    %1742 = vmatpush1.msra.mxu0 0.0
    %1743 = vmatprep.subr.mxu0 0.0
    %1744 = vmatpush1.msra.mxu0 0.0
    %1745 = vmatprep.subr.mxu0 0.0
    %1746 = vmatpush1.msra.mxu0 0.0
    %1747 = vmatprep.mubr.f32.mxu0 0.0
    %v1748 = vand.u32 %v1222, 4294901760
    %v1749 = vsub.f32 %v1222, %v1748
    %1750 = vmatmul.mubr.f32.gmra.mrb[0].mxu0 %v1749
    %v1751 = vpop.f32.mrb[0].mxu0
    %v1752 = vadd.f32 %v1584, %v1751
    %v1753 = vpop.f32.mrb[0].mxu0
    %1754 = vmatprep.mubr.f32.mxu0 0.0
    %v1755 = vand.u32 %v1225, 4294901760
    %v1756 = vsub.f32 %v1225, %v1755
    %1757 = vmatmul.mubr.f32.gmra.mrb[0].mxu0 %v1756
    %v1758 = vpop.f32.mrb[0].mxu0
    %v1759 = vadd.f32 %v1590, %v1758
    %v1760 = vpop.f32.mrb[0].mxu0
    %1761 = vmatprep.mubr.f32.mxu0 0.0
    %v1762 = vand.u32 %v1228, 4294901760
    %v1763 = vsub.f32 %v1228, %v1762
    %1764 = vmatmul.mubr.f32.gmra.mrb[0].mxu0 %v1763
    %v1765 = vpop.f32.mrb[0].mxu0
    %v1766 = vadd.f32 %v1596, %v1765
    %v1767 = vpop.f32.mrb[0].mxu0
    %1768 = vmatprep.mubr.f32.mxu0 0.0
    %v1769 = vand.u32 %v1231, 4294901760
    %v1770 = vsub.f32 %v1231, %v1769
    %1771 = vmatmul.mubr.f32.gmra.mrb[0].mxu0 %v1770
    %v1772 = vpop.f32.mrb[0].mxu0
    %v1773 = vadd.f32 %v1602, %v1772
    %v1774 = vpop.f32.mrb[0].mxu0
    %1775 = vmatprep.mubr.f32.mxu0 0.0
    %v1776 = vand.u32 %v1234, 4294901760
    %v1777 = vsub.f32 %v1234, %v1776
    %1778 = vmatmul.mubr.f32.gmra.mrb[0].mxu0 %v1777
    %v1779 = vpop.f32.mrb[0].mxu0
    %v1780 = vadd.f32 %v1608, %v1779
    %v1781 = vpop.f32.mrb[0].mxu0
    %1782 = vmatprep.mubr.f32.mxu0 0.0
    %v1783 = vand.u32 %v1237, 4294901760
    %v1784 = vsub.f32 %v1237, %v1783
    %1785 = vmatmul.mubr.f32.gmra.mrb[0].mxu0 %v1784
    %v1786 = vpop.f32.mrb[0].mxu0
    %v1787 = vadd.f32 %v1614, %v1786
    %v1788 = vpop.f32.mrb[0].mxu0
    %1789 = vmatprep.mubr.f32.mxu0 0.0
    %v1790 = vand.u32 %v1240, 4294901760
    %v1791 = vsub.f32 %v1240, %v1790
    %1792 = vmatmul.mubr.f32.gmra.mrb[0].mxu0 %v1791
    %v1793 = vpop.f32.mrb[0].mxu0
    %v1794 = vadd.f32 %v1620, %v1793
    %v1795 = vpop.f32.mrb[0].mxu0
    %1796 = vmatprep.mubr.f32.mxu0 0.0
    %v1797 = vand.u32 %v1243, 4294901760
    %v1798 = vsub.f32 %v1243, %v1797
    %1799 = vmatmul.mubr.f32.gmra.mrb[0].mxu0 %v1798
    %v1800 = vpop.f32.mrb[0].mxu0
    %v1801 = vadd.f32 %v1626, %v1800
    %v1802 = vpop.f32.mrb[0].mxu0
    %1803 = vmatprep.mubr.f32.mxu0 0.0
    %v1804 = vand.u32 %v1246, 4294901760
    %v1805 = vsub.f32 %v1246, %v1804
    %1806 = vmatmul.mubr.f32.gmra.mrb[0].mxu0 %v1805
    %v1807 = vpop.f32.mrb[0].mxu0
    %v1808 = vadd.f32 %v1632, %v1807
    %v1809 = vpop.f32.mrb[0].mxu0
    %1810 = vmatprep.mubr.f32.mxu0 0.0
    %v1811 = vand.u32 %v1249, 4294901760
    %v1812 = vsub.f32 %v1249, %v1811
    %1813 = vmatmul.mubr.f32.gmra.mrb[0].mxu0 %v1812
    %v1814 = vpop.f32.mrb[0].mxu0
    %v1815 = vadd.f32 %v1638, %v1814
    %v1816 = vpop.f32.mrb[0].mxu0
    %1817 = vmatprep.mubr.f32.mxu0 0.0
    %v1818 = vand.u32 %v1252, 4294901760
    %v1819 = vsub.f32 %v1252, %v1818
    %1820 = vmatmul.mubr.f32.gmra.mrb[0].mxu0 %v1819
    %v1821 = vpop.f32.mrb[0].mxu0
    %v1822 = vadd.f32 %v1644, %v1821
    %v1823 = vpop.f32.mrb[0].mxu0
    %1824 = vmatprep.mubr.f32.mxu0 0.0
    %v1825 = vand.u32 %v1255, 4294901760
    %v1826 = vsub.f32 %v1255, %v1825
    %1827 = vmatmul.mubr.f32.gmra.mrb[0].mxu0 %v1826
    %v1828 = vpop.f32.mrb[0].mxu0
    %v1829 = vadd.f32 %v1650, %v1828
    %v1830 = vpop.f32.mrb[0].mxu0
    %1831 = vmatprep.mubr.f32.mxu0 0.0
    %v1832 = vand.u32 %v1258, 4294901760
    %v1833 = vsub.f32 %v1258, %v1832
    %1834 = vmatmul.mubr.f32.gmra.mrb[0].mxu0 %v1833
    %v1835 = vpop.f32.mrb[0].mxu0
    %v1836 = vadd.f32 %v1656, %v1835
    %v1837 = vpop.f32.mrb[0].mxu0
    %1838 = vmatprep.mubr.f32.mxu0 0.0
    %v1839 = vand.u32 %v1261, 4294901760
    %v1840 = vsub.f32 %v1261, %v1839
    %1841 = vmatmul.mubr.f32.gmra.mrb[0].mxu0 %v1840
    %v1842 = vpop.f32.mrb[0].mxu0
    %v1843 = vadd.f32 %v1662, %v1842
    %v1844 = vpop.f32.mrb[0].mxu0
    %1845 = vmatprep.mubr.f32.mxu0 0.0
    %v1846 = vand.u32 %v1264, 4294901760
    %v1847 = vsub.f32 %v1264, %v1846
    %1848 = vmatmul.mubr.f32.gmra.mrb[0].mxu0 %v1847
    %v1849 = vpop.f32.mrb[0].mxu0
    %v1850 = vadd.f32 %v1668, %v1849
    %v1851 = vpop.f32.mrb[0].mxu0
    %1852 = vmatprep.mubr.f32.mxu0 0.0
    %v1853 = vand.u32 %v1267, 4294901760
    %v1854 = vsub.f32 %v1267, %v1853
    %1855 = vmatmul.mubr.f32.gmra.mrb[0].mxu0 %v1854
    %v1856 = vpop.f32.mrb[0].mxu0
    %v1857 = vadd.f32 %v1674, %v1856
    %v1858 = vpop.f32.mrb[0].mxu0
    %1859 = vdwg.mxu0
    %1860 = vmatprep.subr.mxu0 0.0
    %v1861 = vand.u32 %v1210, 4294901760
    %1862 = vmatpush1.msra.mxu0 %v1861
    %1863 = vmatprep.subr.mxu0 0.0
    %v1864 = vand.u32 %v1211, 4294901760
    %1865 = vmatpush1.msra.mxu0 %v1864
    %1866 = vmatprep.subr.mxu0 0.0
    %v1867 = vand.u32 %v1271, 4294901760
    %1868 = vmatpush1.msra.mxu0 %v1867
    %1869 = vmatprep.subr.mxu0 0.0
    %1870 = vmatpush1.msra.mxu0 0.0
    %1871 = vmatprep.subr.mxu0 0.0
    %1872 = vmatpush1.msra.mxu0 0.0
    %1873 = vmatprep.subr.mxu0 0.0
    %1874 = vmatpush1.msra.mxu0 0.0
    %1875 = vmatprep.subr.mxu0 0.0
    %1876 = vmatpush1.msra.mxu0 0.0
    %1877 = vmatprep.subr.mxu0 0.0
    %1878 = vmatpush1.msra.mxu0 0.0
    %1879 = vmatprep.subr.mxu0 0.0
    %1880 = vmatpush1.msra.mxu0 0.0
    %1881 = vmatprep.subr.mxu0 0.0
    %1882 = vmatpush1.msra.mxu0 0.0
    %1883 = vmatprep.subr.mxu0 0.0
    %1884 = vmatpush1.msra.mxu0 0.0
    %1885 = vmatprep.subr.mxu0 0.0
    %1886 = vmatpush1.msra.mxu0 0.0
    %1887 = vmatprep.subr.mxu0 0.0
    %1888 = vmatpush1.msra.mxu0 0.0
    %1889 = vmatprep.subr.mxu0 0.0
    %1890 = vmatpush1.msra.mxu0 0.0
    %1891 = vmatprep.subr.mxu0 0.0
    %1892 = vmatpush1.msra.mxu0 0.0
    %1893 = vmatprep.subr.mxu0 0.0
    %1894 = vmatpush1.msra.mxu0 0.0
    %1895 = vmatprep.subr.mxu0 0.0
    %1896 = vmatpush1.msra.mxu0 0.0
    %1897 = vmatprep.subr.mxu0 0.0
    %1898 = vmatpush1.msra.mxu0 0.0
    %1899 = vmatprep.subr.mxu0 0.0
    %1900 = vmatpush1.msra.mxu0 0.0
    %1901 = vmatprep.subr.mxu0 0.0
    %1902 = vmatpush1.msra.mxu0 0.0
    %1903 = vmatprep.subr.mxu0 0.0
    %1904 = vmatpush1.msra.mxu0 0.0
    %1905 = vmatprep.subr.mxu0 0.0
    %1906 = vmatpush1.msra.mxu0 0.0
    %1907 = vmatprep.subr.mxu0 0.0
    %1908 = vmatpush1.msra.mxu0 0.0
    %1909 = vmatprep.subr.mxu0 0.0
    %1910 = vmatpush1.msra.mxu0 0.0
    %1911 = vmatprep.subr.mxu0 0.0
    %1912 = vmatpush1.msra.mxu0 0.0
    %1913 = vmatprep.subr.mxu0 0.0
    %1914 = vmatpush1.msra.mxu0 0.0
    %1915 = vmatprep.subr.mxu0 0.0
    %1916 = vmatpush1.msra.mxu0 0.0
    %1917 = vmatprep.subr.mxu0 0.0
    %1918 = vmatpush1.msra.mxu0 0.0
    %1919 = vmatprep.subr.mxu0 0.0
    %1920 = vmatpush1.msra.mxu0 0.0
    %1921 = vmatprep.subr.mxu0 0.0
    %1922 = vmatpush1.msra.mxu0 0.0
    %1923 = vmatprep.subr.mxu0 0.0
    %1924 = vmatpush1.msra.mxu0 0.0
    %1925 = vmatprep.subr.mxu0 0.0
    %1926 = vmatpush1.msra.mxu0 0.0
    %1927 = vmatprep.mubr.f32.mxu0 0.0
    %v1928 = vand.u32 %v1222, 4294901760
    %v1929 = vsub.f32 %v1222, %v1928
    %v1930 = vand.u32 %v1929, 4294901760
    %1931 = vmatmul.mubr.f32.gmra.mrb[0].mxu0 %v1930
    %v1932 = vpop.f32.mrb[0].mxu0
    %v1933 = vadd.f32 %v1752, %v1932
    %v1934 = vpop.f32.mrb[0].mxu0
    %1935 = vmatprep.mubr.f32.mxu0 0.0
    %v1936 = vand.u32 %v1225, 4294901760
    %v1937 = vsub.f32 %v1225, %v1936
    %v1938 = vand.u32 %v1937, 4294901760
    %1939 = vmatmul.mubr.f32.gmra.mrb[0].mxu0 %v1938
    %v1940 = vpop.f32.mrb[0].mxu0
    %v1941 = vadd.f32 %v1759, %v1940
    %v1942 = vpop.f32.mrb[0].mxu0
    %1943 = vmatprep.mubr.f32.mxu0 0.0
    %v1944 = vand.u32 %v1228, 4294901760
    %v1945 = vsub.f32 %v1228, %v1944
    %v1946 = vand.u32 %v1945, 4294901760
    %1947 = vmatmul.mubr.f32.gmra.mrb[0].mxu0 %v1946
    %v1948 = vpop.f32.mrb[0].mxu0
    %v1949 = vadd.f32 %v1766, %v1948
    %v1950 = vpop.f32.mrb[0].mxu0
    %1951 = vmatprep.mubr.f32.mxu0 0.0
    %v1952 = vand.u32 %v1231, 4294901760
    %v1953 = vsub.f32 %v1231, %v1952
    %v1954 = vand.u32 %v1953, 4294901760
    %1955 = vmatmul.mubr.f32.gmra.mrb[0].mxu0 %v1954
    %v1956 = vpop.f32.mrb[0].mxu0
    %v1957 = vadd.f32 %v1773, %v1956
    %v1958 = vpop.f32.mrb[0].mxu0
    %1959 = vmatprep.mubr.f32.mxu0 0.0
    %v1960 = vand.u32 %v1234, 4294901760
    %v1961 = vsub.f32 %v1234, %v1960
    %v1962 = vand.u32 %v1961, 4294901760
    %1963 = vmatmul.mubr.f32.gmra.mrb[0].mxu0 %v1962
    %v1964 = vpop.f32.mrb[0].mxu0
    %v1965 = vadd.f32 %v1780, %v1964
    %v1966 = vpop.f32.mrb[0].mxu0
    %1967 = vmatprep.mubr.f32.mxu0 0.0
    %v1968 = vand.u32 %v1237, 4294901760
    %v1969 = vsub.f32 %v1237, %v1968
    %v1970 = vand.u32 %v1969, 4294901760
    %1971 = vmatmul.mubr.f32.gmra.mrb[0].mxu0 %v1970
    %v1972 = vpop.f32.mrb[0].mxu0
    %v1973 = vadd.f32 %v1787, %v1972
    %v1974 = vpop.f32.mrb[0].mxu0
    %1975 = vmatprep.mubr.f32.mxu0 0.0
    %v1976 = vand.u32 %v1240, 4294901760
    %v1977 = vsub.f32 %v1240, %v1976
    %v1978 = vand.u32 %v1977, 4294901760
    %1979 = vmatmul.mubr.f32.gmra.mrb[0].mxu0 %v1978
    %v1980 = vpop.f32.mrb[0].mxu0
    %v1981 = vadd.f32 %v1794, %v1980
    %v1982 = vpop.f32.mrb[0].mxu0
    %1983 = vmatprep.mubr.f32.mxu0 0.0
    %v1984 = vand.u32 %v1243, 4294901760
    %v1985 = vsub.f32 %v1243, %v1984
    %v1986 = vand.u32 %v1985, 4294901760
    %1987 = vmatmul.mubr.f32.gmra.mrb[0].mxu0 %v1986
    %v1988 = vpop.f32.mrb[0].mxu0
    %v1989 = vadd.f32 %v1801, %v1988
    %v1990 = vpop.f32.mrb[0].mxu0
    %1991 = vmatprep.mubr.f32.mxu0 0.0
    %v1992 = vand.u32 %v1246, 4294901760
    %v1993 = vsub.f32 %v1246, %v1992
    %v1994 = vand.u32 %v1993, 4294901760
    %1995 = vmatmul.mubr.f32.gmra.mrb[0].mxu0 %v1994
    %v1996 = vpop.f32.mrb[0].mxu0
    %v1997 = vadd.f32 %v1808, %v1996
    %v1998 = vpop.f32.mrb[0].mxu0
    %1999 = vmatprep.mubr.f32.mxu0 0.0
    %v2000 = vand.u32 %v1249, 4294901760
    %v2001 = vsub.f32 %v1249, %v2000
    %v2002 = vand.u32 %v2001, 4294901760
    %2003 = vmatmul.mubr.f32.gmra.mrb[0].mxu0 %v2002
    %v2004 = vpop.f32.mrb[0].mxu0
    %v2005 = vadd.f32 %v1815, %v2004
    %v2006 = vpop.f32.mrb[0].mxu0
    %2007 = vmatprep.mubr.f32.mxu0 0.0
    %v2008 = vand.u32 %v1252, 4294901760
    %v2009 = vsub.f32 %v1252, %v2008
    %v2010 = vand.u32 %v2009, 4294901760
    %2011 = vmatmul.mubr.f32.gmra.mrb[0].mxu0 %v2010
    %v2012 = vpop.f32.mrb[0].mxu0
    %v2013 = vadd.f32 %v1822, %v2012
    %v2014 = vpop.f32.mrb[0].mxu0
    %2015 = vmatprep.mubr.f32.mxu0 0.0
    %v2016 = vand.u32 %v1255, 4294901760
    %v2017 = vsub.f32 %v1255, %v2016
    %v2018 = vand.u32 %v2017, 4294901760
    %2019 = vmatmul.mubr.f32.gmra.mrb[0].mxu0 %v2018
    %v2020 = vpop.f32.mrb[0].mxu0
    %v2021 = vadd.f32 %v1829, %v2020
    %v2022 = vpop.f32.mrb[0].mxu0
    %2023 = vmatprep.mubr.f32.mxu0 0.0
    %v2024 = vand.u32 %v1258, 4294901760
    %v2025 = vsub.f32 %v1258, %v2024
    %v2026 = vand.u32 %v2025, 4294901760
    %2027 = vmatmul.mubr.f32.gmra.mrb[0].mxu0 %v2026
    %v2028 = vpop.f32.mrb[0].mxu0
    %v2029 = vadd.f32 %v1836, %v2028
    %v2030 = vpop.f32.mrb[0].mxu0
    %2031 = vmatprep.mubr.f32.mxu0 0.0
    %v2032 = vand.u32 %v1261, 4294901760
    %v2033 = vsub.f32 %v1261, %v2032
    %v2034 = vand.u32 %v2033, 4294901760
    %2035 = vmatmul.mubr.f32.gmra.mrb[0].mxu0 %v2034
    %v2036 = vpop.f32.mrb[0].mxu0
    %v2037 = vadd.f32 %v1843, %v2036
    %v2038 = vpop.f32.mrb[0].mxu0
    %2039 = vmatprep.mubr.f32.mxu0 0.0
    %v2040 = vand.u32 %v1264, 4294901760
    %v2041 = vsub.f32 %v1264, %v2040
    %v2042 = vand.u32 %v2041, 4294901760
    %2043 = vmatmul.mubr.f32.gmra.mrb[0].mxu0 %v2042
    %v2044 = vpop.f32.mrb[0].mxu0
    %v2045 = vadd.f32 %v1850, %v2044
    %v2046 = vpop.f32.mrb[0].mxu0
    %2047 = vmatprep.mubr.f32.mxu0 0.0
    %v2048 = vand.u32 %v1267, 4294901760
    %v2049 = vsub.f32 %v1267, %v2048
    %v2050 = vand.u32 %v2049, 4294901760
    %2051 = vmatmul.mubr.f32.gmra.mrb[0].mxu0 %v2050
    %v2052 = vpop.f32.mrb[0].mxu0
    %v2053 = vadd.f32 %v1857, %v2052
    %v2054 = vpop.f32.mrb[0].mxu0
    %2055 = vdwg.mxu0
    %2056 = vmatprep.subr.mxu0 0.0
    %v2057 = vand.u32 %v1210, 4294901760
    %v2058 = vsub.f32 %v1210, %v2057
    %v2059 = vand.u32 %v2058, 4294901760
    %2060 = vmatpush1.msra.mxu0 %v2059
    %2061 = vmatprep.subr.mxu0 0.0
    %v2062 = vand.u32 %v1211, 4294901760
    %v2063 = vsub.f32 %v1211, %v2062
    %v2064 = vand.u32 %v2063, 4294901760
    %2065 = vmatpush1.msra.mxu0 %v2064
    %2066 = vmatprep.subr.mxu0 0.0
    %v2067 = vand.u32 %v1271, 4294901760
    %v2068 = vsub.f32 %v1271, %v2067
    %v2069 = vand.u32 %v2068, 4294901760
    %2070 = vmatpush1.msra.mxu0 %v2069
    %2071 = vmatprep.subr.mxu0 0.0
    %2072 = vmatpush1.msra.mxu0 0.0
    %2073 = vmatprep.subr.mxu0 0.0
    %2074 = vmatpush1.msra.mxu0 0.0
    %2075 = vmatprep.subr.mxu0 0.0
    %2076 = vmatpush1.msra.mxu0 0.0
    %2077 = vmatprep.subr.mxu0 0.0
    %2078 = vmatpush1.msra.mxu0 0.0
    %2079 = vmatprep.subr.mxu0 0.0
    %2080 = vmatpush1.msra.mxu0 0.0
    %2081 = vmatprep.subr.mxu0 0.0
    %2082 = vmatpush1.msra.mxu0 0.0
    %2083 = vmatprep.subr.mxu0 0.0
    %2084 = vmatpush1.msra.mxu0 0.0
    %2085 = vmatprep.subr.mxu0 0.0
    %2086 = vmatpush1.msra.mxu0 0.0
    %2087 = vmatprep.subr.mxu0 0.0
    %2088 = vmatpush1.msra.mxu0 0.0
    %2089 = vmatprep.subr.mxu0 0.0
    %2090 = vmatpush1.msra.mxu0 0.0
    %2091 = vmatprep.subr.mxu0 0.0
    %2092 = vmatpush1.msra.mxu0 0.0
    %2093 = vmatprep.subr.mxu0 0.0
    %2094 = vmatpush1.msra.mxu0 0.0
    %2095 = vmatprep.subr.mxu0 0.0
    %2096 = vmatpush1.msra.mxu0 0.0
    %2097 = vmatprep.subr.mxu0 0.0
    %2098 = vmatpush1.msra.mxu0 0.0
    %2099 = vmatprep.subr.mxu0 0.0
    %2100 = vmatpush1.msra.mxu0 0.0
    %2101 = vmatprep.subr.mxu0 0.0
    %2102 = vmatpush1.msra.mxu0 0.0
    %2103 = vmatprep.subr.mxu0 0.0
    %2104 = vmatpush1.msra.mxu0 0.0
    %2105 = vmatprep.subr.mxu0 0.0
    %2106 = vmatpush1.msra.mxu0 0.0
    %2107 = vmatprep.subr.mxu0 0.0
    %2108 = vmatpush1.msra.mxu0 0.0
    %2109 = vmatprep.subr.mxu0 0.0
    %2110 = vmatpush1.msra.mxu0 0.0
    %2111 = vmatprep.subr.mxu0 0.0
    %2112 = vmatpush1.msra.mxu0 0.0
    %2113 = vmatprep.subr.mxu0 0.0
    %2114 = vmatpush1.msra.mxu0 0.0
    %2115 = vmatprep.subr.mxu0 0.0
    %2116 = vmatpush1.msra.mxu0 0.0
    %2117 = vmatprep.subr.mxu0 0.0
    %2118 = vmatpush1.msra.mxu0 0.0
    %2119 = vmatprep.subr.mxu0 0.0
    %2120 = vmatpush1.msra.mxu0 0.0
    %2121 = vmatprep.subr.mxu0 0.0
    %2122 = vmatpush1.msra.mxu0 0.0
    %2123 = vmatprep.subr.mxu0 0.0
    %2124 = vmatpush1.msra.mxu0 0.0
    %2125 = vmatprep.subr.mxu0 0.0
    %2126 = vmatpush1.msra.mxu0 0.0
    %2127 = vmatprep.subr.mxu0 0.0
    %2128 = vmatpush1.msra.mxu0 0.0
    %2129 = vmatprep.mubr.f32.mxu0 0.0
    %v2130 = vand.u32 %v1222, 4294901760
    %2131 = vmatmul.mubr.f32.gmra.mrb[0].mxu0 %v2130
    %v2132 = vpop.f32.mrb[0].mxu0
    %v2133 = vadd.f32 %v1933, %v2132
    %v2134 = vpop.f32.mrb[0].mxu0
    %2135 = vmatprep.mubr.f32.mxu0 0.0
    %v2136 = vand.u32 %v1225, 4294901760
    %2137 = vmatmul.mubr.f32.gmra.mrb[0].mxu0 %v2136
    %v2138 = vpop.f32.mrb[0].mxu0
    %v2139 = vadd.f32 %v1941, %v2138
    %v2140 = vpop.f32.mrb[0].mxu0
    %2141 = vmatprep.mubr.f32.mxu0 0.0
    %v2142 = vand.u32 %v1228, 4294901760
    %2143 = vmatmul.mubr.f32.gmra.mrb[0].mxu0 %v2142
    %v2144 = vpop.f32.mrb[0].mxu0
    %v2145 = vadd.f32 %v1949, %v2144
    %v2146 = vpop.f32.mrb[0].mxu0
    %2147 = vmatprep.mubr.f32.mxu0 0.0
    %v2148 = vand.u32 %v1231, 4294901760
    %2149 = vmatmul.mubr.f32.gmra.mrb[0].mxu0 %v2148
    %v2150 = vpop.f32.mrb[0].mxu0
    %v2151 = vadd.f32 %v1957, %v2150
    %v2152 = vpop.f32.mrb[0].mxu0
    %2153 = vmatprep.mubr.f32.mxu0 0.0
    %v2154 = vand.u32 %v1234, 4294901760
    %2155 = vmatmul.mubr.f32.gmra.mrb[0].mxu0 %v2154
    %v2156 = vpop.f32.mrb[0].mxu0
    %v2157 = vadd.f32 %v1965, %v2156
    %v2158 = vpop.f32.mrb[0].mxu0
    %2159 = vmatprep.mubr.f32.mxu0 0.0
    %v2160 = vand.u32 %v1237, 4294901760
    %2161 = vmatmul.mubr.f32.gmra.mrb[0].mxu0 %v2160
    %v2162 = vpop.f32.mrb[0].mxu0
    %v2163 = vadd.f32 %v1973, %v2162
    %v2164 = vpop.f32.mrb[0].mxu0
    %2165 = vmatprep.mubr.f32.mxu0 0.0
    %v2166 = vand.u32 %v1240, 4294901760
    %2167 = vmatmul.mubr.f32.gmra.mrb[0].mxu0 %v2166
    %v2168 = vpop.f32.mrb[0].mxu0
    %v2169 = vadd.f32 %v1981, %v2168
    %v2170 = vpop.f32.mrb[0].mxu0
    %2171 = vmatprep.mubr.f32.mxu0 0.0
    %v2172 = vand.u32 %v1243, 4294901760
    %2173 = vmatmul.mubr.f32.gmra.mrb[0].mxu0 %v2172
    %v2174 = vpop.f32.mrb[0].mxu0
    %v2175 = vadd.f32 %v1989, %v2174
    %v2176 = vpop.f32.mrb[0].mxu0
    %2177 = vmatprep.mubr.f32.mxu0 0.0
    %v2178 = vand.u32 %v1246, 4294901760
    %2179 = vmatmul.mubr.f32.gmra.mrb[0].mxu0 %v2178
    %v2180 = vpop.f32.mrb[0].mxu0
    %v2181 = vadd.f32 %v1997, %v2180
    %v2182 = vpop.f32.mrb[0].mxu0
    %2183 = vmatprep.mubr.f32.mxu0 0.0
    %v2184 = vand.u32 %v1249, 4294901760
    %2185 = vmatmul.mubr.f32.gmra.mrb[0].mxu0 %v2184
    %v2186 = vpop.f32.mrb[0].mxu0
    %v2187 = vadd.f32 %v2005, %v2186
    %v2188 = vpop.f32.mrb[0].mxu0
    %2189 = vmatprep.mubr.f32.mxu0 0.0
    %v2190 = vand.u32 %v1252, 4294901760
    %2191 = vmatmul.mubr.f32.gmra.mrb[0].mxu0 %v2190
    %v2192 = vpop.f32.mrb[0].mxu0
    %v2193 = vadd.f32 %v2013, %v2192
    %v2194 = vpop.f32.mrb[0].mxu0
    %2195 = vmatprep.mubr.f32.mxu0 0.0
    %v2196 = vand.u32 %v1255, 4294901760
    %2197 = vmatmul.mubr.f32.gmra.mrb[0].mxu0 %v2196
    %v2198 = vpop.f32.mrb[0].mxu0
    %v2199 = vadd.f32 %v2021, %v2198
    %v2200 = vpop.f32.mrb[0].mxu0
    %2201 = vmatprep.mubr.f32.mxu0 0.0
    %v2202 = vand.u32 %v1258, 4294901760
    %2203 = vmatmul.mubr.f32.gmra.mrb[0].mxu0 %v2202
    %v2204 = vpop.f32.mrb[0].mxu0
    %v2205 = vadd.f32 %v2029, %v2204
    %v2206 = vpop.f32.mrb[0].mxu0
    %2207 = vmatprep.mubr.f32.mxu0 0.0
    %v2208 = vand.u32 %v1261, 4294901760
    %2209 = vmatmul.mubr.f32.gmra.mrb[0].mxu0 %v2208
    %v2210 = vpop.f32.mrb[0].mxu0
    %v2211 = vadd.f32 %v2037, %v2210
    %v2212 = vpop.f32.mrb[0].mxu0
    %2213 = vmatprep.mubr.f32.mxu0 0.0
    %v2214 = vand.u32 %v1264, 4294901760
    %2215 = vmatmul.mubr.f32.gmra.mrb[0].mxu0 %v2214
    %v2216 = vpop.f32.mrb[0].mxu0
    %v2217 = vadd.f32 %v2045, %v2216
    %v2218 = vpop.f32.mrb[0].mxu0
    %2219 = vmatprep.mubr.f32.mxu0 0.0
    %v2220 = vand.u32 %v1267, 4294901760
    %2221 = vmatmul.mubr.f32.gmra.mrb[0].mxu0 %v2220
    %v2222 = vpop.f32.mrb[0].mxu0
    %v2223 = vadd.f32 %v2053, %v2222
    %v2224 = vpop.f32.mrb[0].mxu0
    %2225 = vdwg.mxu0
    %2226 = vmatprep.subr.mxu0 0.0
    %v2227 = vand.u32 %v1210, 4294901760
    %2228 = vmatpush1.msra.mxu0 %v2227
    %2229 = vmatprep.subr.mxu0 0.0
    %v2230 = vand.u32 %v1211, 4294901760
    %2231 = vmatpush1.msra.mxu0 %v2230
    %2232 = vmatprep.subr.mxu0 0.0
    %v2233 = vand.u32 %v1271, 4294901760
    %2234 = vmatpush1.msra.mxu0 %v2233
    %2235 = vmatprep.subr.mxu0 0.0
    %2236 = vmatpush1.msra.mxu0 0.0
    %2237 = vmatprep.subr.mxu0 0.0
    %2238 = vmatpush1.msra.mxu0 0.0
    %2239 = vmatprep.subr.mxu0 0.0
    %2240 = vmatpush1.msra.mxu0 0.0
    %2241 = vmatprep.subr.mxu0 0.0
    %2242 = vmatpush1.msra.mxu0 0.0
    %2243 = vmatprep.subr.mxu0 0.0
    %2244 = vmatpush1.msra.mxu0 0.0
    %2245 = vmatprep.subr.mxu0 0.0
    %2246 = vmatpush1.msra.mxu0 0.0
    %2247 = vmatprep.subr.mxu0 0.0
    %2248 = vmatpush1.msra.mxu0 0.0
    %2249 = vmatprep.subr.mxu0 0.0
    %2250 = vmatpush1.msra.mxu0 0.0
    %2251 = vmatprep.subr.mxu0 0.0
    %2252 = vmatpush1.msra.mxu0 0.0
    %2253 = vmatprep.subr.mxu0 0.0
    %2254 = vmatpush1.msra.mxu0 0.0
    %2255 = vmatprep.subr.mxu0 0.0
    %2256 = vmatpush1.msra.mxu0 0.0
    %2257 = vmatprep.subr.mxu0 0.0
    %2258 = vmatpush1.msra.mxu0 0.0
    %2259 = vmatprep.subr.mxu0 0.0
    %2260 = vmatpush1.msra.mxu0 0.0
    %2261 = vmatprep.subr.mxu0 0.0
    %2262 = vmatpush1.msra.mxu0 0.0
    %2263 = vmatprep.subr.mxu0 0.0
    %2264 = vmatpush1.msra.mxu0 0.0
    %2265 = vmatprep.subr.mxu0 0.0
    %2266 = vmatpush1.msra.mxu0 0.0
    %2267 = vmatprep.subr.mxu0 0.0
    %2268 = vmatpush1.msra.mxu0 0.0
    %2269 = vmatprep.subr.mxu0 0.0
    %2270 = vmatpush1.msra.mxu0 0.0
    %2271 = vmatprep.subr.mxu0 0.0
    %2272 = vmatpush1.msra.mxu0 0.0
    %2273 = vmatprep.subr.mxu0 0.0
    %2274 = vmatpush1.msra.mxu0 0.0
    %2275 = vmatprep.subr.mxu0 0.0
    %2276 = vmatpush1.msra.mxu0 0.0
    %2277 = vmatprep.subr.mxu0 0.0
    %2278 = vmatpush1.msra.mxu0 0.0
    %2279 = vmatprep.subr.mxu0 0.0
    %2280 = vmatpush1.msra.mxu0 0.0
    %2281 = vmatprep.subr.mxu0 0.0
    %2282 = vmatpush1.msra.mxu0 0.0
    %2283 = vmatprep.subr.mxu0 0.0
    %2284 = vmatpush1.msra.mxu0 0.0
    %2285 = vmatprep.subr.mxu0 0.0
    %2286 = vmatpush1.msra.mxu0 0.0
    %2287 = vmatprep.subr.mxu0 0.0
    %2288 = vmatpush1.msra.mxu0 0.0
    %2289 = vmatprep.subr.mxu0 0.0
    %2290 = vmatpush1.msra.mxu0 0.0
    %2291 = vmatprep.subr.mxu0 0.0
    %2292 = vmatpush1.msra.mxu0 0.0
    %2293 = vmatprep.mubr.f32.mxu0 0.0
    %v2294 = vand.u32 %v1222, 4294901760
    %2295 = vmatmul.mubr.f32.gmra.mrb[0].mxu0 %v2294
    %v2296 = vpop.f32.mrb[0].mxu0
    %v2297 = vadd.f32 %v2133, %v2296
    %v2298 = vpop.f32.mrb[0].mxu0
    %2299 = vmatprep.mubr.f32.mxu0 0.0
    %v2300 = vand.u32 %v1225, 4294901760
    %2301 = vmatmul.mubr.f32.gmra.mrb[0].mxu0 %v2300
    %v2302 = vpop.f32.mrb[0].mxu0
    %v2303 = vadd.f32 %v2139, %v2302
    %v2304 = vpop.f32.mrb[0].mxu0
    %2305 = vmatprep.mubr.f32.mxu0 0.0
    %v2306 = vand.u32 %v1228, 4294901760
    %2307 = vmatmul.mubr.f32.gmra.mrb[0].mxu0 %v2306
    %v2308 = vpop.f32.mrb[0].mxu0
    %v2309 = vadd.f32 %v2145, %v2308
    %v2310 = vpop.f32.mrb[0].mxu0
    %2311 = vmatprep.mubr.f32.mxu0 0.0
    %v2312 = vand.u32 %v1231, 4294901760
    %2313 = vmatmul.mubr.f32.gmra.mrb[0].mxu0 %v2312
    %v2314 = vpop.f32.mrb[0].mxu0
    %v2315 = vadd.f32 %v2151, %v2314
    %v2316 = vpop.f32.mrb[0].mxu0
    %2317 = vmatprep.mubr.f32.mxu0 0.0
    %v2318 = vand.u32 %v1234, 4294901760
    %2319 = vmatmul.mubr.f32.gmra.mrb[0].mxu0 %v2318
    %v2320 = vpop.f32.mrb[0].mxu0
    %v2321 = vadd.f32 %v2157, %v2320
    %v2322 = vpop.f32.mrb[0].mxu0
    %2323 = vmatprep.mubr.f32.mxu0 0.0
    %v2324 = vand.u32 %v1237, 4294901760
    %2325 = vmatmul.mubr.f32.gmra.mrb[0].mxu0 %v2324
    %v2326 = vpop.f32.mrb[0].mxu0
    %v2327 = vadd.f32 %v2163, %v2326
    %v2328 = vpop.f32.mrb[0].mxu0
    %2329 = vmatprep.mubr.f32.mxu0 0.0
    %v2330 = vand.u32 %v1240, 4294901760
    %2331 = vmatmul.mubr.f32.gmra.mrb[0].mxu0 %v2330
    %v2332 = vpop.f32.mrb[0].mxu0
    %v2333 = vadd.f32 %v2169, %v2332
    %v2334 = vpop.f32.mrb[0].mxu0
    %2335 = vmatprep.mubr.f32.mxu0 0.0
    %v2336 = vand.u32 %v1243, 4294901760
    %2337 = vmatmul.mubr.f32.gmra.mrb[0].mxu0 %v2336
    %v2338 = vpop.f32.mrb[0].mxu0
    %v2339 = vadd.f32 %v2175, %v2338
    %v2340 = vpop.f32.mrb[0].mxu0
    %2341 = vmatprep.mubr.f32.mxu0 0.0
    %v2342 = vand.u32 %v1246, 4294901760
    %2343 = vmatmul.mubr.f32.gmra.mrb[0].mxu0 %v2342
    %v2344 = vpop.f32.mrb[0].mxu0
    %v2345 = vadd.f32 %v2181, %v2344
    %v2346 = vpop.f32.mrb[0].mxu0
    %2347 = vmatprep.mubr.f32.mxu0 0.0
    %v2348 = vand.u32 %v1249, 4294901760
    %2349 = vmatmul.mubr.f32.gmra.mrb[0].mxu0 %v2348
    %v2350 = vpop.f32.mrb[0].mxu0
    %v2351 = vadd.f32 %v2187, %v2350
    %v2352 = vpop.f32.mrb[0].mxu0
    %2353 = vmatprep.mubr.f32.mxu0 0.0
    %v2354 = vand.u32 %v1252, 4294901760
    %2355 = vmatmul.mubr.f32.gmra.mrb[0].mxu0 %v2354
    %v2356 = vpop.f32.mrb[0].mxu0
    %v2357 = vadd.f32 %v2193, %v2356
    %v2358 = vpop.f32.mrb[0].mxu0
    %2359 = vmatprep.mubr.f32.mxu0 0.0
    %v2360 = vand.u32 %v1255, 4294901760
    %2361 = vmatmul.mubr.f32.gmra.mrb[0].mxu0 %v2360
    %v2362 = vpop.f32.mrb[0].mxu0
    %v2363 = vadd.f32 %v2199, %v2362
    %v2364 = vpop.f32.mrb[0].mxu0
    %2365 = vmatprep.mubr.f32.mxu0 0.0
    %v2366 = vand.u32 %v1258, 4294901760
    %2367 = vmatmul.mubr.f32.gmra.mrb[0].mxu0 %v2366
    %v2368 = vpop.f32.mrb[0].mxu0
    %v2369 = vadd.f32 %v2205, %v2368
    %v2370 = vpop.f32.mrb[0].mxu0
    %2371 = vmatprep.mubr.f32.mxu0 0.0
    %v2372 = vand.u32 %v1261, 4294901760
    %2373 = vmatmul.mubr.f32.gmra.mrb[0].mxu0 %v2372
    %v2374 = vpop.f32.mrb[0].mxu0
    %v2375 = vadd.f32 %v2211, %v2374
    %v2376 = vpop.f32.mrb[0].mxu0
    %2377 = vmatprep.mubr.f32.mxu0 0.0
    %v2378 = vand.u32 %v1264, 4294901760
    %2379 = vmatmul.mubr.f32.gmra.mrb[0].mxu0 %v2378
    %v2380 = vpop.f32.mrb[0].mxu0
    %v2381 = vadd.f32 %v2217, %v2380
    %v2382 = vpop.f32.mrb[0].mxu0
    %2383 = vmatprep.mubr.f32.mxu0 0.0
    %v2384 = vand.u32 %v1267, 4294901760
    %2385 = vmatmul.mubr.f32.gmra.mrb[0].mxu0 %v2384
    %v2386 = vpop.f32.mrb[0].mxu0
    %v2387 = vadd.f32 %v2223, %v2386
    %v2388 = vpop.f32.mrb[0].mxu0
    %2389 = vdwg.mxu0
    %v2390 = vmax.f32 %v2297, 0.0
    %v2391 = vmax.f32 %v2303, 0.0
    %v2392 = vmax.f32 %v2309, 0.0
    %v2393 = vmax.f32 %v2315, 0.0
    %v2394 = vmax.f32 %v2321, 0.0
    %v2395 = vmax.f32 %v2327, 0.0
    %v2396 = vmax.f32 %v2333, 0.0
    %v2397 = vmax.f32 %v2339, 0.0
    %v2398 = vmax.f32 %v2345, 0.0
    %v2399 = vmax.f32 %v2351, 0.0
    %v2400 = vmax.f32 %v2357, 0.0
    %v2401 = vmax.f32 %v2363, 0.0
    %v2402 = vmax.f32 %v2369, 0.0
    %v2403 = vmax.f32 %v2375, 0.0
    %v2404 = vmax.f32 %v2381, 0.0
    %v2405 = vmax.f32 %v2387, 0.0
    %v2406 = vld [vmem:[%s5] sm:$0xff]
    %v2407 = vld [vmem:[%s5 + $0x8] sm:$0x3]
    %v2408 = vld [vmem:[%s6] sm:$0x1]
    %v2410 = vlaneseq
    %v2411 = vshrl.u32 %v2410, 7
    %v2412 = vsub.s32 0, %v2411
    %v2413 = vrot.slane %v2408, %v2412
    %vm2415 = vcmask 80896
    %v2417 = vsel %vm2415, %v2390, 0
    %v2420 = vsel %vm2415, %v2391, 0
    %v2423 = vsel %vm2415, %v2392, 0
    %v2426 = vsel %vm2415, %v2393, 0
    %v2429 = vsel %vm2415, %v2394, 0
    %v2432 = vsel %vm2415, %v2395, 0
    %v2435 = vsel %vm2415, %v2396, 0
    %v2438 = vsel %vm2415, %v2397, 0
    %v2441 = vsel %vm2415, %v2398, 0
    %v2444 = vsel %vm2415, %v2399, 0
    %v2447 = vsel %vm2415, %v2400, 0
    %v2450 = vsel %vm2415, %v2401, 0
    %v2453 = vsel %vm2415, %v2402, 0
    %v2456 = vsel %vm2415, %v2403, 0
    %v2459 = vsel %vm2415, %v2404, 0
    %v2462 = vsel %vm2415, %v2405, 0
    %vm2464 = vcmask 1041408
    %v2466 = vsel %vm2464, %v2407, 0
    %2468 = vmatprep.subr.mxu0 0.0
    %v2469 = vand.u32 %v2406, 4294901760
    %2470 = vmatpush1.msra.mxu0 %v2469
    %2471 = vmatprep.subr.mxu0 0.0
    %v2472 = vand.u32 %v2466, 4294901760
    %2473 = vmatpush1.msra.mxu0 %v2472
    %2474 = vmatprep.subr.mxu0 0.0
    %2475 = vmatpush1.msra.mxu0 0.0
    %2476 = vmatprep.subr.mxu0 0.0
    %2477 = vmatpush1.msra.mxu0 0.0
    %2478 = vmatprep.subr.mxu0 0.0
    %2479 = vmatpush1.msra.mxu0 0.0
    %2480 = vmatprep.subr.mxu0 0.0
    %2481 = vmatpush1.msra.mxu0 0.0
    %2482 = vmatprep.subr.mxu0 0.0
    %2483 = vmatpush1.msra.mxu0 0.0
    %2484 = vmatprep.subr.mxu0 0.0
    %2485 = vmatpush1.msra.mxu0 0.0
    %2486 = vmatprep.subr.mxu0 0.0
    %2487 = vmatpush1.msra.mxu0 0.0
    %2488 = vmatprep.subr.mxu0 0.0
    %2489 = vmatpush1.msra.mxu0 0.0
    %2490 = vmatprep.subr.mxu0 0.0
    %2491 = vmatpush1.msra.mxu0 0.0
    %2492 = vmatprep.subr.mxu0 0.0
    %2493 = vmatpush1.msra.mxu0 0.0
    %2494 = vmatprep.subr.mxu0 0.0
    %2495 = vmatpush1.msra.mxu0 0.0
    %2496 = vmatprep.subr.mxu0 0.0
    %2497 = vmatpush1.msra.mxu0 0.0
    %2498 = vmatprep.subr.mxu0 0.0
    %2499 = vmatpush1.msra.mxu0 0.0
    %2500 = vmatprep.subr.mxu0 0.0
    %2501 = vmatpush1.msra.mxu0 0.0
    %2502 = vmatprep.subr.mxu0 0.0
    %2503 = vmatpush1.msra.mxu0 0.0
    %2504 = vmatprep.subr.mxu0 0.0
    %2505 = vmatpush1.msra.mxu0 0.0
    %2506 = vmatprep.subr.mxu0 0.0
    %2507 = vmatpush1.msra.mxu0 0.0
    %2508 = vmatprep.subr.mxu0 0.0
    %2509 = vmatpush1.msra.mxu0 0.0
    %2510 = vmatprep.subr.mxu0 0.0
    %2511 = vmatpush1.msra.mxu0 0.0
    %2512 = vmatprep.subr.mxu0 0.0
    %2513 = vmatpush1.msra.mxu0 0.0
    %2514 = vmatprep.subr.mxu0 0.0
    %2515 = vmatpush1.msra.mxu0 0.0
    %2516 = vmatprep.subr.mxu0 0.0
    %2517 = vmatpush1.msra.mxu0 0.0
    %2518 = vmatprep.subr.mxu0 0.0
    %2519 = vmatpush1.msra.mxu0 0.0
    %2520 = vmatprep.subr.mxu0 0.0
    %2521 = vmatpush1.msra.mxu0 0.0
    %2522 = vmatprep.subr.mxu0 0.0
    %2523 = vmatpush1.msra.mxu0 0.0
    %2524 = vmatprep.subr.mxu0 0.0
    %2525 = vmatpush1.msra.mxu0 0.0
    %2526 = vmatprep.subr.mxu0 0.0
    %2527 = vmatpush1.msra.mxu0 0.0
    %2528 = vmatprep.subr.mxu0 0.0
    %2529 = vmatpush1.msra.mxu0 0.0
    %2530 = vmatprep.subr.mxu0 0.0
    %2531 = vmatpush1.msra.mxu0 0.0
    %2532 = vmatprep.subr.mxu0 0.0
    %2533 = vmatpush1.msra.mxu0 0.0
    %2534 = vmatprep.mubr.f32.mxu0 0.0
    %v2535 = vand.u32 %v2417, 4294901760
    %v2536 = vsub.f32 %v2417, %v2535
    %v2537 = vand.u32 %v2536, 4294901760
    %v2538 = vsub.f32 %v2536, %v2537
    %v2539 = vand.u32 %v2538, 4294901760
    %2540 = vmatmul.mubr.f32.gmra.mrb[0].mxu0 %v2539
    %v2541 = vpop.f32.mrb[0].mxu0
    %v2542 = vadd.f32 %v2413, %v2541
    %v2543 = vpop.f32.mrb[0].mxu0
    %2544 = vmatprep.mubr.f32.mxu0 0.0
    %v2545 = vand.u32 %v2420, 4294901760
    %v2546 = vsub.f32 %v2420, %v2545
    %v2547 = vand.u32 %v2546, 4294901760
    %v2548 = vsub.f32 %v2546, %v2547
    %v2549 = vand.u32 %v2548, 4294901760
    %2550 = vmatmul.mubr.f32.gmra.mrb[0].mxu0 %v2549
    %v2551 = vpop.f32.mrb[0].mxu0
    %v2552 = vadd.f32 %v2413, %v2551
    %v2553 = vpop.f32.mrb[0].mxu0
    %2554 = vmatprep.mubr.f32.mxu0 0.0
    %v2555 = vand.u32 %v2423, 4294901760
    %v2556 = vsub.f32 %v2423, %v2555
    %v2557 = vand.u32 %v2556, 4294901760
    %v2558 = vsub.f32 %v2556, %v2557
    %v2559 = vand.u32 %v2558, 4294901760
    %2560 = vmatmul.mubr.f32.gmra.mrb[0].mxu0 %v2559
    %v2561 = vpop.f32.mrb[0].mxu0
    %v2562 = vadd.f32 %v2413, %v2561
    %v2563 = vpop.f32.mrb[0].mxu0
    %2564 = vmatprep.mubr.f32.mxu0 0.0
    %v2565 = vand.u32 %v2426, 4294901760
    %v2566 = vsub.f32 %v2426, %v2565
    %v2567 = vand.u32 %v2566, 4294901760
    %v2568 = vsub.f32 %v2566, %v2567
    %v2569 = vand.u32 %v2568, 4294901760
    %2570 = vmatmul.mubr.f32.gmra.mrb[0].mxu0 %v2569
    %v2571 = vpop.f32.mrb[0].mxu0
    %v2572 = vadd.f32 %v2413, %v2571
    %v2573 = vpop.f32.mrb[0].mxu0
    %2574 = vmatprep.mubr.f32.mxu0 0.0
    %v2575 = vand.u32 %v2429, 4294901760
    %v2576 = vsub.f32 %v2429, %v2575
    %v2577 = vand.u32 %v2576, 4294901760
    %v2578 = vsub.f32 %v2576, %v2577
    %v2579 = vand.u32 %v2578, 4294901760
    %2580 = vmatmul.mubr.f32.gmra.mrb[0].mxu0 %v2579
    %v2581 = vpop.f32.mrb[0].mxu0
    %v2582 = vadd.f32 %v2413, %v2581
    %v2583 = vpop.f32.mrb[0].mxu0
    %2584 = vmatprep.mubr.f32.mxu0 0.0
    %v2585 = vand.u32 %v2432, 4294901760
    %v2586 = vsub.f32 %v2432, %v2585
    %v2587 = vand.u32 %v2586, 4294901760
    %v2588 = vsub.f32 %v2586, %v2587
    %v2589 = vand.u32 %v2588, 4294901760
    %2590 = vmatmul.mubr.f32.gmra.mrb[0].mxu0 %v2589
    %v2591 = vpop.f32.mrb[0].mxu0
    %v2592 = vadd.f32 %v2413, %v2591
    %v2593 = vpop.f32.mrb[0].mxu0
    %2594 = vmatprep.mubr.f32.mxu0 0.0
    %v2595 = vand.u32 %v2435, 4294901760
    %v2596 = vsub.f32 %v2435, %v2595
    %v2597 = vand.u32 %v2596, 4294901760
    %v2598 = vsub.f32 %v2596, %v2597
    %v2599 = vand.u32 %v2598, 4294901760
    %2600 = vmatmul.mubr.f32.gmra.mrb[0].mxu0 %v2599
    %v2601 = vpop.f32.mrb[0].mxu0
    %v2602 = vadd.f32 %v2413, %v2601
    %v2603 = vpop.f32.mrb[0].mxu0
    %2604 = vmatprep.mubr.f32.mxu0 0.0
    %v2605 = vand.u32 %v2438, 4294901760
    %v2606 = vsub.f32 %v2438, %v2605
    %v2607 = vand.u32 %v2606, 4294901760
    %v2608 = vsub.f32 %v2606, %v2607
    %v2609 = vand.u32 %v2608, 4294901760
    %2610 = vmatmul.mubr.f32.gmra.mrb[0].mxu0 %v2609
    %v2611 = vpop.f32.mrb[0].mxu0
    %v2612 = vadd.f32 %v2413, %v2611
    %v2613 = vpop.f32.mrb[0].mxu0
    %2614 = vmatprep.mubr.f32.mxu0 0.0
    %v2615 = vand.u32 %v2441, 4294901760
    %v2616 = vsub.f32 %v2441, %v2615
    %v2617 = vand.u32 %v2616, 4294901760
    %v2618 = vsub.f32 %v2616, %v2617
    %v2619 = vand.u32 %v2618, 4294901760
    %2620 = vmatmul.mubr.f32.gmra.mrb[0].mxu0 %v2619
    %v2621 = vpop.f32.mrb[0].mxu0
    %v2622 = vadd.f32 %v2413, %v2621
    %v2623 = vpop.f32.mrb[0].mxu0
    %2624 = vmatprep.mubr.f32.mxu0 0.0
    %v2625 = vand.u32 %v2444, 4294901760
    %v2626 = vsub.f32 %v2444, %v2625
    %v2627 = vand.u32 %v2626, 4294901760
    %v2628 = vsub.f32 %v2626, %v2627
    %v2629 = vand.u32 %v2628, 4294901760
    %2630 = vmatmul.mubr.f32.gmra.mrb[0].mxu0 %v2629
    %v2631 = vpop.f32.mrb[0].mxu0
    %v2632 = vadd.f32 %v2413, %v2631
    %v2633 = vpop.f32.mrb[0].mxu0
    %2634 = vmatprep.mubr.f32.mxu0 0.0
    %v2635 = vand.u32 %v2447, 4294901760
    %v2636 = vsub.f32 %v2447, %v2635
    %v2637 = vand.u32 %v2636, 4294901760
    %v2638 = vsub.f32 %v2636, %v2637
    %v2639 = vand.u32 %v2638, 4294901760
    %2640 = vmatmul.mubr.f32.gmra.mrb[0].mxu0 %v2639
    %v2641 = vpop.f32.mrb[0].mxu0
    %v2642 = vadd.f32 %v2413, %v2641
    %v2643 = vpop.f32.mrb[0].mxu0
    %2644 = vmatprep.mubr.f32.mxu0 0.0
    %v2645 = vand.u32 %v2450, 4294901760
    %v2646 = vsub.f32 %v2450, %v2645
    %v2647 = vand.u32 %v2646, 4294901760
    %v2648 = vsub.f32 %v2646, %v2647
    %v2649 = vand.u32 %v2648, 4294901760
    %2650 = vmatmul.mubr.f32.gmra.mrb[0].mxu0 %v2649
    %v2651 = vpop.f32.mrb[0].mxu0
    %v2652 = vadd.f32 %v2413, %v2651
    %v2653 = vpop.f32.mrb[0].mxu0
    %2654 = vmatprep.mubr.f32.mxu0 0.0
    %v2655 = vand.u32 %v2453, 4294901760
    %v2656 = vsub.f32 %v2453, %v2655
    %v2657 = vand.u32 %v2656, 4294901760
    %v2658 = vsub.f32 %v2656, %v2657
    %v2659 = vand.u32 %v2658, 4294901760
    %2660 = vmatmul.mubr.f32.gmra.mrb[0].mxu0 %v2659
    %v2661 = vpop.f32.mrb[0].mxu0
    %v2662 = vadd.f32 %v2413, %v2661
    %v2663 = vpop.f32.mrb[0].mxu0
    %2664 = vmatprep.mubr.f32.mxu0 0.0
    %v2665 = vand.u32 %v2456, 4294901760
    %v2666 = vsub.f32 %v2456, %v2665
    %v2667 = vand.u32 %v2666, 4294901760
    %v2668 = vsub.f32 %v2666, %v2667
    %v2669 = vand.u32 %v2668, 4294901760
    %2670 = vmatmul.mubr.f32.gmra.mrb[0].mxu0 %v2669
    %v2671 = vpop.f32.mrb[0].mxu0
    %v2672 = vadd.f32 %v2413, %v2671
    %v2673 = vpop.f32.mrb[0].mxu0
    %2674 = vmatprep.mubr.f32.mxu0 0.0
    %v2675 = vand.u32 %v2459, 4294901760
    %v2676 = vsub.f32 %v2459, %v2675
    %v2677 = vand.u32 %v2676, 4294901760
    %v2678 = vsub.f32 %v2676, %v2677
    %v2679 = vand.u32 %v2678, 4294901760
    %2680 = vmatmul.mubr.f32.gmra.mrb[0].mxu0 %v2679
    %v2681 = vpop.f32.mrb[0].mxu0
    %v2682 = vadd.f32 %v2413, %v2681
    %v2683 = vpop.f32.mrb[0].mxu0
    %2684 = vmatprep.mubr.f32.mxu0 0.0
    %v2685 = vand.u32 %v2462, 4294901760
    %v2686 = vsub.f32 %v2462, %v2685
    %v2687 = vand.u32 %v2686, 4294901760
    %v2688 = vsub.f32 %v2686, %v2687
    %v2689 = vand.u32 %v2688, 4294901760
    %2690 = vmatmul.mubr.f32.gmra.mrb[0].mxu0 %v2689
    %v2691 = vpop.f32.mrb[0].mxu0
    %v2692 = vadd.f32 %v2413, %v2691
    %v2693 = vpop.f32.mrb[0].mxu0
    %2694 = vdwg.mxu0
    %2695 = vmatprep.subr.mxu0 0.0
    %v2696 = vand.u32 %v2406, 4294901760
    %v2697 = vsub.f32 %v2406, %v2696
    %v2698 = vand.u32 %v2697, 4294901760
    %v2699 = vsub.f32 %v2697, %v2698
    %v2700 = vand.u32 %v2699, 4294901760
    %2701 = vmatpush1.msra.mxu0 %v2700
    %2702 = vmatprep.subr.mxu0 0.0
    %v2703 = vand.u32 %v2466, 4294901760
    %v2704 = vsub.f32 %v2466, %v2703
    %v2705 = vand.u32 %v2704, 4294901760
    %v2706 = vsub.f32 %v2704, %v2705
    %v2707 = vand.u32 %v2706, 4294901760
    %2708 = vmatpush1.msra.mxu0 %v2707
    %2709 = vmatprep.subr.mxu0 0.0
    %2710 = vmatpush1.msra.mxu0 0.0
    %2711 = vmatprep.subr.mxu0 0.0
    %2712 = vmatpush1.msra.mxu0 0.0
    %2713 = vmatprep.subr.mxu0 0.0
    %2714 = vmatpush1.msra.mxu0 0.0
    %2715 = vmatprep.subr.mxu0 0.0
    %2716 = vmatpush1.msra.mxu0 0.0
    %2717 = vmatprep.subr.mxu0 0.0
    %2718 = vmatpush1.msra.mxu0 0.0
    %2719 = vmatprep.subr.mxu0 0.0
    %2720 = vmatpush1.msra.mxu0 0.0
    %2721 = vmatprep.subr.mxu0 0.0
    %2722 = vmatpush1.msra.mxu0 0.0
    %2723 = vmatprep.subr.mxu0 0.0
    %2724 = vmatpush1.msra.mxu0 0.0
    %2725 = vmatprep.subr.mxu0 0.0
    %2726 = vmatpush1.msra.mxu0 0.0
    %2727 = vmatprep.subr.mxu0 0.0
    %2728 = vmatpush1.msra.mxu0 0.0
    %2729 = vmatprep.subr.mxu0 0.0
    %2730 = vmatpush1.msra.mxu0 0.0
    %2731 = vmatprep.subr.mxu0 0.0
    %2732 = vmatpush1.msra.mxu0 0.0
    %2733 = vmatprep.subr.mxu0 0.0
    %2734 = vmatpush1.msra.mxu0 0.0
    %2735 = vmatprep.subr.mxu0 0.0
    %2736 = vmatpush1.msra.mxu0 0.0
    %2737 = vmatprep.subr.mxu0 0.0
    %2738 = vmatpush1.msra.mxu0 0.0
    %2739 = vmatprep.subr.mxu0 0.0
    %2740 = vmatpush1.msra.mxu0 0.0
    %2741 = vmatprep.subr.mxu0 0.0
    %2742 = vmatpush1.msra.mxu0 0.0
    %2743 = vmatprep.subr.mxu0 0.0
    %2744 = vmatpush1.msra.mxu0 0.0
    %2745 = vmatprep.subr.mxu0 0.0
    %2746 = vmatpush1.msra.mxu0 0.0
    %2747 = vmatprep.subr.mxu0 0.0
    %2748 = vmatpush1.msra.mxu0 0.0
    %2749 = vmatprep.subr.mxu0 0.0
    %2750 = vmatpush1.msra.mxu0 0.0
    %2751 = vmatprep.subr.mxu0 0.0
    %2752 = vmatpush1.msra.mxu0 0.0
    %2753 = vmatprep.subr.mxu0 0.0
    %2754 = vmatpush1.msra.mxu0 0.0
    %2755 = vmatprep.subr.mxu0 0.0
    %2756 = vmatpush1.msra.mxu0 0.0
    %2757 = vmatprep.subr.mxu0 0.0
    %2758 = vmatpush1.msra.mxu0 0.0
    %2759 = vmatprep.subr.mxu0 0.0
    %2760 = vmatpush1.msra.mxu0 0.0
    %2761 = vmatprep.subr.mxu0 0.0
    %2762 = vmatpush1.msra.mxu0 0.0
    %2763 = vmatprep.subr.mxu0 0.0
    %2764 = vmatpush1.msra.mxu0 0.0
    %2765 = vmatprep.subr.mxu0 0.0
    %2766 = vmatpush1.msra.mxu0 0.0
    %2767 = vmatprep.subr.mxu0 0.0
    %2768 = vmatpush1.msra.mxu0 0.0
    %2769 = vmatprep.mubr.f32.mxu0 0.0
    %v2770 = vand.u32 %v2417, 4294901760
    %2771 = vmatmul.mubr.f32.gmra.mrb[0].mxu0 %v2770
    %v2772 = vpop.f32.mrb[0].mxu0
    %v2773 = vadd.f32 %v2542, %v2772
    %v2774 = vpop.f32.mrb[0].mxu0
    %2775 = vmatprep.mubr.f32.mxu0 0.0
    %v2776 = vand.u32 %v2420, 4294901760
    %2777 = vmatmul.mubr.f32.gmra.mrb[0].mxu0 %v2776
    %v2778 = vpop.f32.mrb[0].mxu0
    %v2779 = vadd.f32 %v2552, %v2778
    %v2780 = vpop.f32.mrb[0].mxu0
    %2781 = vmatprep.mubr.f32.mxu0 0.0
    %v2782 = vand.u32 %v2423, 4294901760
    %2783 = vmatmul.mubr.f32.gmra.mrb[0].mxu0 %v2782
    %v2784 = vpop.f32.mrb[0].mxu0
    %v2785 = vadd.f32 %v2562, %v2784
    %v2786 = vpop.f32.mrb[0].mxu0
    %2787 = vmatprep.mubr.f32.mxu0 0.0
    %v2788 = vand.u32 %v2426, 4294901760
    %2789 = vmatmul.mubr.f32.gmra.mrb[0].mxu0 %v2788
    %v2790 = vpop.f32.mrb[0].mxu0
    %v2791 = vadd.f32 %v2572, %v2790
    %v2792 = vpop.f32.mrb[0].mxu0
    %2793 = vmatprep.mubr.f32.mxu0 0.0
    %v2794 = vand.u32 %v2429, 4294901760
    %2795 = vmatmul.mubr.f32.gmra.mrb[0].mxu0 %v2794
    %v2796 = vpop.f32.mrb[0].mxu0
    %v2797 = vadd.f32 %v2582, %v2796
    %v2798 = vpop.f32.mrb[0].mxu0
    %2799 = vmatprep.mubr.f32.mxu0 0.0
    %v2800 = vand.u32 %v2432, 4294901760
    %2801 = vmatmul.mubr.f32.gmra.mrb[0].mxu0 %v2800
    %v2802 = vpop.f32.mrb[0].mxu0
    %v2803 = vadd.f32 %v2592, %v2802
    %v2804 = vpop.f32.mrb[0].mxu0
    %2805 = vmatprep.mubr.f32.mxu0 0.0
    %v2806 = vand.u32 %v2435, 4294901760
    %2807 = vmatmul.mubr.f32.gmra.mrb[0].mxu0 %v2806
    %v2808 = vpop.f32.mrb[0].mxu0
    %v2809 = vadd.f32 %v2602, %v2808
    %v2810 = vpop.f32.mrb[0].mxu0
    %2811 = vmatprep.mubr.f32.mxu0 0.0
    %v2812 = vand.u32 %v2438, 4294901760
    %2813 = vmatmul.mubr.f32.gmra.mrb[0].mxu0 %v2812
    %v2814 = vpop.f32.mrb[0].mxu0
    %v2815 = vadd.f32 %v2612, %v2814
    %v2816 = vpop.f32.mrb[0].mxu0
    %2817 = vmatprep.mubr.f32.mxu0 0.0
    %v2818 = vand.u32 %v2441, 4294901760
    %2819 = vmatmul.mubr.f32.gmra.mrb[0].mxu0 %v2818
    %v2820 = vpop.f32.mrb[0].mxu0
    %v2821 = vadd.f32 %v2622, %v2820
    %v2822 = vpop.f32.mrb[0].mxu0
    %2823 = vmatprep.mubr.f32.mxu0 0.0
    %v2824 = vand.u32 %v2444, 4294901760
    %2825 = vmatmul.mubr.f32.gmra.mrb[0].mxu0 %v2824
    %v2826 = vpop.f32.mrb[0].mxu0
    %v2827 = vadd.f32 %v2632, %v2826
    %v2828 = vpop.f32.mrb[0].mxu0
    %2829 = vmatprep.mubr.f32.mxu0 0.0
    %v2830 = vand.u32 %v2447, 4294901760
    %2831 = vmatmul.mubr.f32.gmra.mrb[0].mxu0 %v2830
    %v2832 = vpop.f32.mrb[0].mxu0
    %v2833 = vadd.f32 %v2642, %v2832
    %v2834 = vpop.f32.mrb[0].mxu0
    %2835 = vmatprep.mubr.f32.mxu0 0.0
    %v2836 = vand.u32 %v2450, 4294901760
    %2837 = vmatmul.mubr.f32.gmra.mrb[0].mxu0 %v2836
    %v2838 = vpop.f32.mrb[0].mxu0
    %v2839 = vadd.f32 %v2652, %v2838
    %v2840 = vpop.f32.mrb[0].mxu0
    %2841 = vmatprep.mubr.f32.mxu0 0.0
    %v2842 = vand.u32 %v2453, 4294901760
    %2843 = vmatmul.mubr.f32.gmra.mrb[0].mxu0 %v2842
    %v2844 = vpop.f32.mrb[0].mxu0
    %v2845 = vadd.f32 %v2662, %v2844
    %v2846 = vpop.f32.mrb[0].mxu0
    %2847 = vmatprep.mubr.f32.mxu0 0.0
    %v2848 = vand.u32 %v2456, 4294901760
    %2849 = vmatmul.mubr.f32.gmra.mrb[0].mxu0 %v2848
    %v2850 = vpop.f32.mrb[0].mxu0
    %v2851 = vadd.f32 %v2672, %v2850
    %v2852 = vpop.f32.mrb[0].mxu0
    %2853 = vmatprep.mubr.f32.mxu0 0.0
    %v2854 = vand.u32 %v2459, 4294901760
    %2855 = vmatmul.mubr.f32.gmra.mrb[0].mxu0 %v2854
    %v2856 = vpop.f32.mrb[0].mxu0
    %v2857 = vadd.f32 %v2682, %v2856
    %v2858 = vpop.f32.mrb[0].mxu0
    %2859 = vmatprep.mubr.f32.mxu0 0.0
    %v2860 = vand.u32 %v2462, 4294901760
    %2861 = vmatmul.mubr.f32.gmra.mrb[0].mxu0 %v2860
    %v2862 = vpop.f32.mrb[0].mxu0
    %v2863 = vadd.f32 %v2692, %v2862
    %v2864 = vpop.f32.mrb[0].mxu0
    %2865 = vdwg.mxu0
    %2866 = vmatprep.subr.mxu0 0.0
    %v2867 = vand.u32 %v2406, 4294901760
    %v2868 = vsub.f32 %v2406, %v2867
    %2869 = vmatpush1.msra.mxu0 %v2868
    %2870 = vmatprep.subr.mxu0 0.0
    %v2871 = vand.u32 %v2466, 4294901760
    %v2872 = vsub.f32 %v2466, %v2871
    %2873 = vmatpush1.msra.mxu0 %v2872
    %2874 = vmatprep.subr.mxu0 0.0
    %2875 = vmatpush1.msra.mxu0 0.0
    %2876 = vmatprep.subr.mxu0 0.0
    %2877 = vmatpush1.msra.mxu0 0.0
    %2878 = vmatprep.subr.mxu0 0.0
    %2879 = vmatpush1.msra.mxu0 0.0
    %2880 = vmatprep.subr.mxu0 0.0
    %2881 = vmatpush1.msra.mxu0 0.0
    %2882 = vmatprep.subr.mxu0 0.0
    %2883 = vmatpush1.msra.mxu0 0.0
    %2884 = vmatprep.subr.mxu0 0.0
    %2885 = vmatpush1.msra.mxu0 0.0
    %2886 = vmatprep.subr.mxu0 0.0
    %2887 = vmatpush1.msra.mxu0 0.0
    %2888 = vmatprep.subr.mxu0 0.0
    %2889 = vmatpush1.msra.mxu0 0.0
    %2890 = vmatprep.subr.mxu0 0.0
    %2891 = vmatpush1.msra.mxu0 0.0
    %2892 = vmatprep.subr.mxu0 0.0
    %2893 = vmatpush1.msra.mxu0 0.0
    %2894 = vmatprep.subr.mxu0 0.0
    %2895 = vmatpush1.msra.mxu0 0.0
    %2896 = vmatprep.subr.mxu0 0.0
    %2897 = vmatpush1.msra.mxu0 0.0
    %2898 = vmatprep.subr.mxu0 0.0
    %2899 = vmatpush1.msra.mxu0 0.0
    %2900 = vmatprep.subr.mxu0 0.0
    %2901 = vmatpush1.msra.mxu0 0.0
    %2902 = vmatprep.subr.mxu0 0.0
    %2903 = vmatpush1.msra.mxu0 0.0
    %2904 = vmatprep.subr.mxu0 0.0
    %2905 = vmatpush1.msra.mxu0 0.0
    %2906 = vmatprep.subr.mxu0 0.0
    %2907 = vmatpush1.msra.mxu0 0.0
    %2908 = vmatprep.subr.mxu0 0.0
    %2909 = vmatpush1.msra.mxu0 0.0
    %2910 = vmatprep.subr.mxu0 0.0
    %2911 = vmatpush1.msra.mxu0 0.0
    %2912 = vmatprep.subr.mxu0 0.0
    %2913 = vmatpush1.msra.mxu0 0.0
    %2914 = vmatprep.subr.mxu0 0.0
    %2915 = vmatpush1.msra.mxu0 0.0
    %2916 = vmatprep.subr.mxu0 0.0
    %2917 = vmatpush1.msra.mxu0 0.0
    %2918 = vmatprep.subr.mxu0 0.0
    %2919 = vmatpush1.msra.mxu0 0.0
    %2920 = vmatprep.subr.mxu0 0.0
    %2921 = vmatpush1.msra.mxu0 0.0
    %2922 = vmatprep.subr.mxu0 0.0
    %2923 = vmatpush1.msra.mxu0 0.0
    %2924 = vmatprep.subr.mxu0 0.0
    %2925 = vmatpush1.msra.mxu0 0.0
    %2926 = vmatprep.subr.mxu0 0.0
    %2927 = vmatpush1.msra.mxu0 0.0
    %2928 = vmatprep.subr.mxu0 0.0
    %2929 = vmatpush1.msra.mxu0 0.0
    %2930 = vmatprep.subr.mxu0 0.0
    %2931 = vmatpush1.msra.mxu0 0.0
    %2932 = vmatprep.subr.mxu0 0.0
    %2933 = vmatpush1.msra.mxu0 0.0
    %2934 = vmatprep.mubr.f32.mxu0 0.0
    %v2935 = vand.u32 %v2417, 4294901760
    %v2936 = vsub.f32 %v2417, %v2935
    %2937 = vmatmul.mubr.f32.gmra.mrb[0].mxu0 %v2936
    %v2938 = vpop.f32.mrb[0].mxu0
    %v2939 = vadd.f32 %v2773, %v2938
    %v2940 = vpop.f32.mrb[0].mxu0
    %2941 = vmatprep.mubr.f32.mxu0 0.0
    %v2942 = vand.u32 %v2420, 4294901760
    %v2943 = vsub.f32 %v2420, %v2942
    %2944 = vmatmul.mubr.f32.gmra.mrb[0].mxu0 %v2943
    %v2945 = vpop.f32.mrb[0].mxu0
    %v2946 = vadd.f32 %v2779, %v2945
    %v2947 = vpop.f32.mrb[0].mxu0
    %2948 = vmatprep.mubr.f32.mxu0 0.0
    %v2949 = vand.u32 %v2423, 4294901760
    %v2950 = vsub.f32 %v2423, %v2949
    %2951 = vmatmul.mubr.f32.gmra.mrb[0].mxu0 %v2950
    %v2952 = vpop.f32.mrb[0].mxu0
    %v2953 = vadd.f32 %v2785, %v2952
    %v2954 = vpop.f32.mrb[0].mxu0
    %2955 = vmatprep.mubr.f32.mxu0 0.0
    %v2956 = vand.u32 %v2426, 4294901760
    %v2957 = vsub.f32 %v2426, %v2956
    %2958 = vmatmul.mubr.f32.gmra.mrb[0].mxu0 %v2957
    %v2959 = vpop.f32.mrb[0].mxu0
    %v2960 = vadd.f32 %v2791, %v2959
    %v2961 = vpop.f32.mrb[0].mxu0
    %2962 = vmatprep.mubr.f32.mxu0 0.0
    %v2963 = vand.u32 %v2429, 4294901760
    %v2964 = vsub.f32 %v2429, %v2963
    %2965 = vmatmul.mubr.f32.gmra.mrb[0].mxu0 %v2964
    %v2966 = vpop.f32.mrb[0].mxu0
    %v2967 = vadd.f32 %v2797, %v2966
    %v2968 = vpop.f32.mrb[0].mxu0
    %2969 = vmatprep.mubr.f32.mxu0 0.0
    %v2970 = vand.u32 %v2432, 4294901760
    %v2971 = vsub.f32 %v2432, %v2970
    %2972 = vmatmul.mubr.f32.gmra.mrb[0].mxu0 %v2971
    %v2973 = vpop.f32.mrb[0].mxu0
    %v2974 = vadd.f32 %v2803, %v2973
    %v2975 = vpop.f32.mrb[0].mxu0
    %2976 = vmatprep.mubr.f32.mxu0 0.0
    %v2977 = vand.u32 %v2435, 4294901760
    %v2978 = vsub.f32 %v2435, %v2977
    %2979 = vmatmul.mubr.f32.gmra.mrb[0].mxu0 %v2978
    %v2980 = vpop.f32.mrb[0].mxu0
    %v2981 = vadd.f32 %v2809, %v2980
    %v2982 = vpop.f32.mrb[0].mxu0
    %2983 = vmatprep.mubr.f32.mxu0 0.0
    %v2984 = vand.u32 %v2438, 4294901760
    %v2985 = vsub.f32 %v2438, %v2984
    %2986 = vmatmul.mubr.f32.gmra.mrb[0].mxu0 %v2985
    %v2987 = vpop.f32.mrb[0].mxu0
    %v2988 = vadd.f32 %v2815, %v2987
    %v2989 = vpop.f32.mrb[0].mxu0
    %2990 = vmatprep.mubr.f32.mxu0 0.0
    %v2991 = vand.u32 %v2441, 4294901760
    %v2992 = vsub.f32 %v2441, %v2991
    %2993 = vmatmul.mubr.f32.gmra.mrb[0].mxu0 %v2992
    %v2994 = vpop.f32.mrb[0].mxu0
    %v2995 = vadd.f32 %v2821, %v2994
    %v2996 = vpop.f32.mrb[0].mxu0
    %2997 = vmatprep.mubr.f32.mxu0 0.0
    %v2998 = vand.u32 %v2444, 4294901760
    %v2999 = vsub.f32 %v2444, %v2998
    %3000 = vmatmul.mubr.f32.gmra.mrb[0].mxu0 %v2999
    %v3001 = vpop.f32.mrb[0].mxu0
    %v3002 = vadd.f32 %v2827, %v3001
    %v3003 = vpop.f32.mrb[0].mxu0
    %3004 = vmatprep.mubr.f32.mxu0 0.0
    %v3005 = vand.u32 %v2447, 4294901760
    %v3006 = vsub.f32 %v2447, %v3005
    %3007 = vmatmul.mubr.f32.gmra.mrb[0].mxu0 %v3006
    %v3008 = vpop.f32.mrb[0].mxu0
    %v3009 = vadd.f32 %v2833, %v3008
    %v3010 = vpop.f32.mrb[0].mxu0
    %3011 = vmatprep.mubr.f32.mxu0 0.0
    %v3012 = vand.u32 %v2450, 4294901760
    %v3013 = vsub.f32 %v2450, %v3012
    %3014 = vmatmul.mubr.f32.gmra.mrb[0].mxu0 %v3013
    %v3015 = vpop.f32.mrb[0].mxu0
    %v3016 = vadd.f32 %v2839, %v3015
    %v3017 = vpop.f32.mrb[0].mxu0
    %3018 = vmatprep.mubr.f32.mxu0 0.0
    %v3019 = vand.u32 %v2453, 4294901760
    %v3020 = vsub.f32 %v2453, %v3019
    %3021 = vmatmul.mubr.f32.gmra.mrb[0].mxu0 %v3020
    %v3022 = vpop.f32.mrb[0].mxu0
    %v3023 = vadd.f32 %v2845, %v3022
    %v3024 = vpop.f32.mrb[0].mxu0
    %3025 = vmatprep.mubr.f32.mxu0 0.0
    %v3026 = vand.u32 %v2456, 4294901760
    %v3027 = vsub.f32 %v2456, %v3026
    %3028 = vmatmul.mubr.f32.gmra.mrb[0].mxu0 %v3027
    %v3029 = vpop.f32.mrb[0].mxu0
    %v3030 = vadd.f32 %v2851, %v3029
    %v3031 = vpop.f32.mrb[0].mxu0
    %3032 = vmatprep.mubr.f32.mxu0 0.0
    %v3033 = vand.u32 %v2459, 4294901760
    %v3034 = vsub.f32 %v2459, %v3033
    %3035 = vmatmul.mubr.f32.gmra.mrb[0].mxu0 %v3034
    %v3036 = vpop.f32.mrb[0].mxu0
    %v3037 = vadd.f32 %v2857, %v3036
    %v3038 = vpop.f32.mrb[0].mxu0
    %3039 = vmatprep.mubr.f32.mxu0 0.0
    %v3040 = vand.u32 %v2462, 4294901760
    %v3041 = vsub.f32 %v2462, %v3040
    %3042 = vmatmul.mubr.f32.gmra.mrb[0].mxu0 %v3041
    %v3043 = vpop.f32.mrb[0].mxu0
    %v3044 = vadd.f32 %v2863, %v3043
    %v3045 = vpop.f32.mrb[0].mxu0
    %3046 = vdwg.mxu0
    %3047 = vmatprep.subr.mxu0 0.0
    %v3048 = vand.u32 %v2406, 4294901760
    %3049 = vmatpush1.msra.mxu0 %v3048
    %3050 = vmatprep.subr.mxu0 0.0
    %v3051 = vand.u32 %v2466, 4294901760
    %3052 = vmatpush1.msra.mxu0 %v3051
    %3053 = vmatprep.subr.mxu0 0.0
    %3054 = vmatpush1.msra.mxu0 0.0
    %3055 = vmatprep.subr.mxu0 0.0
    %3056 = vmatpush1.msra.mxu0 0.0
    %3057 = vmatprep.subr.mxu0 0.0
    %3058 = vmatpush1.msra.mxu0 0.0
    %3059 = vmatprep.subr.mxu0 0.0
    %3060 = vmatpush1.msra.mxu0 0.0
    %3061 = vmatprep.subr.mxu0 0.0
    %3062 = vmatpush1.msra.mxu0 0.0
    %3063 = vmatprep.subr.mxu0 0.0
    %3064 = vmatpush1.msra.mxu0 0.0
    %3065 = vmatprep.subr.mxu0 0.0
    %3066 = vmatpush1.msra.mxu0 0.0
    %3067 = vmatprep.subr.mxu0 0.0
    %3068 = vmatpush1.msra.mxu0 0.0
    %3069 = vmatprep.subr.mxu0 0.0
    %3070 = vmatpush1.msra.mxu0 0.0
    %3071 = vmatprep.subr.mxu0 0.0
    %3072 = vmatpush1.msra.mxu0 0.0
    %3073 = vmatprep.subr.mxu0 0.0
    %3074 = vmatpush1.msra.mxu0 0.0
    %3075 = vmatprep.subr.mxu0 0.0
    %3076 = vmatpush1.msra.mxu0 0.0
    %3077 = vmatprep.subr.mxu0 0.0
    %3078 = vmatpush1.msra.mxu0 0.0
    %3079 = vmatprep.subr.mxu0 0.0
    %3080 = vmatpush1.msra.mxu0 0.0
    %3081 = vmatprep.subr.mxu0 0.0
    %3082 = vmatpush1.msra.mxu0 0.0
    %3083 = vmatprep.subr.mxu0 0.0
    %3084 = vmatpush1.msra.mxu0 0.0
    %3085 = vmatprep.subr.mxu0 0.0
    %3086 = vmatpush1.msra.mxu0 0.0
    %3087 = vmatprep.subr.mxu0 0.0
    %3088 = vmatpush1.msra.mxu0 0.0
    %3089 = vmatprep.subr.mxu0 0.0
    %3090 = vmatpush1.msra.mxu0 0.0
    %3091 = vmatprep.subr.mxu0 0.0
    %3092 = vmatpush1.msra.mxu0 0.0
    %3093 = vmatprep.subr.mxu0 0.0
    %3094 = vmatpush1.msra.mxu0 0.0
    %3095 = vmatprep.subr.mxu0 0.0
    %3096 = vmatpush1.msra.mxu0 0.0
    %3097 = vmatprep.subr.mxu0 0.0
    %3098 = vmatpush1.msra.mxu0 0.0
    %3099 = vmatprep.subr.mxu0 0.0
    %3100 = vmatpush1.msra.mxu0 0.0
    %3101 = vmatprep.subr.mxu0 0.0
    %3102 = vmatpush1.msra.mxu0 0.0
    %3103 = vmatprep.subr.mxu0 0.0
    %3104 = vmatpush1.msra.mxu0 0.0
    %3105 = vmatprep.subr.mxu0 0.0
    %3106 = vmatpush1.msra.mxu0 0.0
    %3107 = vmatprep.subr.mxu0 0.0
    %3108 = vmatpush1.msra.mxu0 0.0
    %3109 = vmatprep.subr.mxu0 0.0
    %3110 = vmatpush1.msra.mxu0 0.0
    %3111 = vmatprep.subr.mxu0 0.0
    %3112 = vmatpush1.msra.mxu0 0.0
    %3113 = vmatprep.mubr.f32.mxu0 0.0
    %v3114 = vand.u32 %v2417, 4294901760
    %v3115 = vsub.f32 %v2417, %v3114
    %v3116 = vand.u32 %v3115, 4294901760
    %3117 = vmatmul.mubr.f32.gmra.mrb[0].mxu0 %v3116
    %v3118 = vpop.f32.mrb[0].mxu0
    %v3119 = vadd.f32 %v2939, %v3118
    %v3120 = vpop.f32.mrb[0].mxu0
    %3121 = vmatprep.mubr.f32.mxu0 0.0
    %v3122 = vand.u32 %v2420, 4294901760
    %v3123 = vsub.f32 %v2420, %v3122
    %v3124 = vand.u32 %v3123, 4294901760
    %3125 = vmatmul.mubr.f32.gmra.mrb[0].mxu0 %v3124
    %v3126 = vpop.f32.mrb[0].mxu0
    %v3127 = vadd.f32 %v2946, %v3126
    %v3128 = vpop.f32.mrb[0].mxu0
    %3129 = vmatprep.mubr.f32.mxu0 0.0
    %v3130 = vand.u32 %v2423, 4294901760
    %v3131 = vsub.f32 %v2423, %v3130
    %v3132 = vand.u32 %v3131, 4294901760
    %3133 = vmatmul.mubr.f32.gmra.mrb[0].mxu0 %v3132
    %v3134 = vpop.f32.mrb[0].mxu0
    %v3135 = vadd.f32 %v2953, %v3134
    %v3136 = vpop.f32.mrb[0].mxu0
    %3137 = vmatprep.mubr.f32.mxu0 0.0
    %v3138 = vand.u32 %v2426, 4294901760
    %v3139 = vsub.f32 %v2426, %v3138
    %v3140 = vand.u32 %v3139, 4294901760
    %3141 = vmatmul.mubr.f32.gmra.mrb[0].mxu0 %v3140
    %v3142 = vpop.f32.mrb[0].mxu0
    %v3143 = vadd.f32 %v2960, %v3142
    %v3144 = vpop.f32.mrb[0].mxu0
    %3145 = vmatprep.mubr.f32.mxu0 0.0
    %v3146 = vand.u32 %v2429, 4294901760
    %v3147 = vsub.f32 %v2429, %v3146
    %v3148 = vand.u32 %v3147, 4294901760
    %3149 = vmatmul.mubr.f32.gmra.mrb[0].mxu0 %v3148
    %v3150 = vpop.f32.mrb[0].mxu0
    %v3151 = vadd.f32 %v2967, %v3150
    %v3152 = vpop.f32.mrb[0].mxu0
    %3153 = vmatprep.mubr.f32.mxu0 0.0
    %v3154 = vand.u32 %v2432, 4294901760
    %v3155 = vsub.f32 %v2432, %v3154
    %v3156 = vand.u32 %v3155, 4294901760
    %3157 = vmatmul.mubr.f32.gmra.mrb[0].mxu0 %v3156
    %v3158 = vpop.f32.mrb[0].mxu0
    %v3159 = vadd.f32 %v2974, %v3158
    %v3160 = vpop.f32.mrb[0].mxu0
    %3161 = vmatprep.mubr.f32.mxu0 0.0
    %v3162 = vand.u32 %v2435, 4294901760
    %v3163 = vsub.f32 %v2435, %v3162
    %v3164 = vand.u32 %v3163, 4294901760
    %3165 = vmatmul.mubr.f32.gmra.mrb[0].mxu0 %v3164
    %v3166 = vpop.f32.mrb[0].mxu0
    %v3167 = vadd.f32 %v2981, %v3166
    %v3168 = vpop.f32.mrb[0].mxu0
    %3169 = vmatprep.mubr.f32.mxu0 0.0
    %v3170 = vand.u32 %v2438, 4294901760
    %v3171 = vsub.f32 %v2438, %v3170
    %v3172 = vand.u32 %v3171, 4294901760
    %3173 = vmatmul.mubr.f32.gmra.mrb[0].mxu0 %v3172
    %v3174 = vpop.f32.mrb[0].mxu0
    %v3175 = vadd.f32 %v2988, %v3174
    %v3176 = vpop.f32.mrb[0].mxu0
    %3177 = vmatprep.mubr.f32.mxu0 0.0
    %v3178 = vand.u32 %v2441, 4294901760
    %v3179 = vsub.f32 %v2441, %v3178
    %v3180 = vand.u32 %v3179, 4294901760
    %3181 = vmatmul.mubr.f32.gmra.mrb[0].mxu0 %v3180
    %v3182 = vpop.f32.mrb[0].mxu0
    %v3183 = vadd.f32 %v2995, %v3182
    %v3184 = vpop.f32.mrb[0].mxu0
    %3185 = vmatprep.mubr.f32.mxu0 0.0
    %v3186 = vand.u32 %v2444, 4294901760
    %v3187 = vsub.f32 %v2444, %v3186
    %v3188 = vand.u32 %v3187, 4294901760
    %3189 = vmatmul.mubr.f32.gmra.mrb[0].mxu0 %v3188
    %v3190 = vpop.f32.mrb[0].mxu0
    %v3191 = vadd.f32 %v3002, %v3190
    %v3192 = vpop.f32.mrb[0].mxu0
    %3193 = vmatprep.mubr.f32.mxu0 0.0
    %v3194 = vand.u32 %v2447, 4294901760
    %v3195 = vsub.f32 %v2447, %v3194
    %v3196 = vand.u32 %v3195, 4294901760
    %3197 = vmatmul.mubr.f32.gmra.mrb[0].mxu0 %v3196
    %v3198 = vpop.f32.mrb[0].mxu0
    %v3199 = vadd.f32 %v3009, %v3198
    %v3200 = vpop.f32.mrb[0].mxu0
    %3201 = vmatprep.mubr.f32.mxu0 0.0
    %v3202 = vand.u32 %v2450, 4294901760
    %v3203 = vsub.f32 %v2450, %v3202
    %v3204 = vand.u32 %v3203, 4294901760
    %3205 = vmatmul.mubr.f32.gmra.mrb[0].mxu0 %v3204
    %v3206 = vpop.f32.mrb[0].mxu0
    %v3207 = vadd.f32 %v3016, %v3206
    %v3208 = vpop.f32.mrb[0].mxu0
    %3209 = vmatprep.mubr.f32.mxu0 0.0
    %v3210 = vand.u32 %v2453, 4294901760
    %v3211 = vsub.f32 %v2453, %v3210
    %v3212 = vand.u32 %v3211, 4294901760
    %3213 = vmatmul.mubr.f32.gmra.mrb[0].mxu0 %v3212
    %v3214 = vpop.f32.mrb[0].mxu0
    %v3215 = vadd.f32 %v3023, %v3214
    %v3216 = vpop.f32.mrb[0].mxu0
    %3217 = vmatprep.mubr.f32.mxu0 0.0
    %v3218 = vand.u32 %v2456, 4294901760
    %v3219 = vsub.f32 %v2456, %v3218
    %v3220 = vand.u32 %v3219, 4294901760
    %3221 = vmatmul.mubr.f32.gmra.mrb[0].mxu0 %v3220
    %v3222 = vpop.f32.mrb[0].mxu0
    %v3223 = vadd.f32 %v3030, %v3222
    %v3224 = vpop.f32.mrb[0].mxu0
    %3225 = vmatprep.mubr.f32.mxu0 0.0
    %v3226 = vand.u32 %v2459, 4294901760
    %v3227 = vsub.f32 %v2459, %v3226
    %v3228 = vand.u32 %v3227, 4294901760
    %3229 = vmatmul.mubr.f32.gmra.mrb[0].mxu0 %v3228
    %v3230 = vpop.f32.mrb[0].mxu0
    %v3231 = vadd.f32 %v3037, %v3230
    %v3232 = vpop.f32.mrb[0].mxu0
    %3233 = vmatprep.mubr.f32.mxu0 0.0
    %v3234 = vand.u32 %v2462, 4294901760
    %v3235 = vsub.f32 %v2462, %v3234
    %v3236 = vand.u32 %v3235, 4294901760
    %3237 = vmatmul.mubr.f32.gmra.mrb[0].mxu0 %v3236
    %v3238 = vpop.f32.mrb[0].mxu0
    %v3239 = vadd.f32 %v3044, %v3238
    %v3240 = vpop.f32.mrb[0].mxu0
    %3241 = vdwg.mxu0
    %3242 = vmatprep.subr.mxu0 0.0
    %v3243 = vand.u32 %v2406, 4294901760
    %v3244 = vsub.f32 %v2406, %v3243
    %v3245 = vand.u32 %v3244, 4294901760
    %3246 = vmatpush1.msra.mxu0 %v3245
    %3247 = vmatprep.subr.mxu0 0.0
    %v3248 = vand.u32 %v2466, 4294901760
    %v3249 = vsub.f32 %v2466, %v3248
    %v3250 = vand.u32 %v3249, 4294901760
    %3251 = vmatpush1.msra.mxu0 %v3250
    %3252 = vmatprep.subr.mxu0 0.0
    %3253 = vmatpush1.msra.mxu0 0.0
    %3254 = vmatprep.subr.mxu0 0.0
    %3255 = vmatpush1.msra.mxu0 0.0
    %3256 = vmatprep.subr.mxu0 0.0
    %3257 = vmatpush1.msra.mxu0 0.0
    %3258 = vmatprep.subr.mxu0 0.0
    %3259 = vmatpush1.msra.mxu0 0.0
    %3260 = vmatprep.subr.mxu0 0.0
    %3261 = vmatpush1.msra.mxu0 0.0
    %3262 = vmatprep.subr.mxu0 0.0
    %3263 = vmatpush1.msra.mxu0 0.0
    %3264 = vmatprep.subr.mxu0 0.0
    %3265 = vmatpush1.msra.mxu0 0.0
    %3266 = vmatprep.subr.mxu0 0.0
    %3267 = vmatpush1.msra.mxu0 0.0
    %3268 = vmatprep.subr.mxu0 0.0
    %3269 = vmatpush1.msra.mxu0 0.0
    %3270 = vmatprep.subr.mxu0 0.0
    %3271 = vmatpush1.msra.mxu0 0.0
    %3272 = vmatprep.subr.mxu0 0.0
    %3273 = vmatpush1.msra.mxu0 0.0
    %3274 = vmatprep.subr.mxu0 0.0
    %3275 = vmatpush1.msra.mxu0 0.0
    %3276 = vmatprep.subr.mxu0 0.0
    %3277 = vmatpush1.msra.mxu0 0.0
    %3278 = vmatprep.subr.mxu0 0.0
    %3279 = vmatpush1.msra.mxu0 0.0
    %3280 = vmatprep.subr.mxu0 0.0
    %3281 = vmatpush1.msra.mxu0 0.0
    %3282 = vmatprep.subr.mxu0 0.0
    %3283 = vmatpush1.msra.mxu0 0.0
    %3284 = vmatprep.subr.mxu0 0.0
    %3285 = vmatpush1.msra.mxu0 0.0
    %3286 = vmatprep.subr.mxu0 0.0
    %3287 = vmatpush1.msra.mxu0 0.0
    %3288 = vmatprep.subr.mxu0 0.0
    %3289 = vmatpush1.msra.mxu0 0.0
    %3290 = vmatprep.subr.mxu0 0.0
    %3291 = vmatpush1.msra.mxu0 0.0
    %3292 = vmatprep.subr.mxu0 0.0
    %3293 = vmatpush1.msra.mxu0 0.0
    %3294 = vmatprep.subr.mxu0 0.0
    %3295 = vmatpush1.msra.mxu0 0.0
    %3296 = vmatprep.subr.mxu0 0.0
    %3297 = vmatpush1.msra.mxu0 0.0
    %3298 = vmatprep.subr.mxu0 0.0
    %3299 = vmatpush1.msra.mxu0 0.0
    %3300 = vmatprep.subr.mxu0 0.0
    %3301 = vmatpush1.msra.mxu0 0.0
    %3302 = vmatprep.subr.mxu0 0.0
    %3303 = vmatpush1.msra.mxu0 0.0
    %3304 = vmatprep.subr.mxu0 0.0
    %3305 = vmatpush1.msra.mxu0 0.0
    %3306 = vmatprep.subr.mxu0 0.0
    %3307 = vmatpush1.msra.mxu0 0.0
    %3308 = vmatprep.subr.mxu0 0.0
    %3309 = vmatpush1.msra.mxu0 0.0
    %3310 = vmatprep.subr.mxu0 0.0
    %3311 = vmatpush1.msra.mxu0 0.0
    %3312 = vmatprep.mubr.f32.mxu0 0.0
    %v3313 = vand.u32 %v2417, 4294901760
    %3314 = vmatmul.mubr.f32.gmra.mrb[0].mxu0 %v3313
    %v3315 = vpop.f32.mrb[0].mxu0
    %v3316 = vadd.f32 %v3119, %v3315
    %v3317 = vpop.f32.mrb[0].mxu0
    %3318 = vmatprep.mubr.f32.mxu0 0.0
    %v3319 = vand.u32 %v2420, 4294901760
    %3320 = vmatmul.mubr.f32.gmra.mrb[0].mxu0 %v3319
    %v3321 = vpop.f32.mrb[0].mxu0
    %v3322 = vadd.f32 %v3127, %v3321
    %v3323 = vpop.f32.mrb[0].mxu0
    %3324 = vmatprep.mubr.f32.mxu0 0.0
    %v3325 = vand.u32 %v2423, 4294901760
    %3326 = vmatmul.mubr.f32.gmra.mrb[0].mxu0 %v3325
    %v3327 = vpop.f32.mrb[0].mxu0
    %v3328 = vadd.f32 %v3135, %v3327
    %v3329 = vpop.f32.mrb[0].mxu0
    %3330 = vmatprep.mubr.f32.mxu0 0.0
    %v3331 = vand.u32 %v2426, 4294901760
    %3332 = vmatmul.mubr.f32.gmra.mrb[0].mxu0 %v3331
    %v3333 = vpop.f32.mrb[0].mxu0
    %v3334 = vadd.f32 %v3143, %v3333
    %v3335 = vpop.f32.mrb[0].mxu0
    %3336 = vmatprep.mubr.f32.mxu0 0.0
    %v3337 = vand.u32 %v2429, 4294901760
    %3338 = vmatmul.mubr.f32.gmra.mrb[0].mxu0 %v3337
    %v3339 = vpop.f32.mrb[0].mxu0
    %v3340 = vadd.f32 %v3151, %v3339
    %v3341 = vpop.f32.mrb[0].mxu0
    %3342 = vmatprep.mubr.f32.mxu0 0.0
    %v3343 = vand.u32 %v2432, 4294901760
    %3344 = vmatmul.mubr.f32.gmra.mrb[0].mxu0 %v3343
    %v3345 = vpop.f32.mrb[0].mxu0
    %v3346 = vadd.f32 %v3159, %v3345
    %v3347 = vpop.f32.mrb[0].mxu0
    %3348 = vmatprep.mubr.f32.mxu0 0.0
    %v3349 = vand.u32 %v2435, 4294901760
    %3350 = vmatmul.mubr.f32.gmra.mrb[0].mxu0 %v3349
    %v3351 = vpop.f32.mrb[0].mxu0
    %v3352 = vadd.f32 %v3167, %v3351
    %v3353 = vpop.f32.mrb[0].mxu0
    %3354 = vmatprep.mubr.f32.mxu0 0.0
    %v3355 = vand.u32 %v2438, 4294901760
    %3356 = vmatmul.mubr.f32.gmra.mrb[0].mxu0 %v3355
    %v3357 = vpop.f32.mrb[0].mxu0
    %v3358 = vadd.f32 %v3175, %v3357
    %v3359 = vpop.f32.mrb[0].mxu0
    %3360 = vmatprep.mubr.f32.mxu0 0.0
    %v3361 = vand.u32 %v2441, 4294901760
    %3362 = vmatmul.mubr.f32.gmra.mrb[0].mxu0 %v3361
    %v3363 = vpop.f32.mrb[0].mxu0
    %v3364 = vadd.f32 %v3183, %v3363
    %v3365 = vpop.f32.mrb[0].mxu0
    %3366 = vmatprep.mubr.f32.mxu0 0.0
    %v3367 = vand.u32 %v2444, 4294901760
    %3368 = vmatmul.mubr.f32.gmra.mrb[0].mxu0 %v3367
    %v3369 = vpop.f32.mrb[0].mxu0
    %v3370 = vadd.f32 %v3191, %v3369
    %v3371 = vpop.f32.mrb[0].mxu0
    %3372 = vmatprep.mubr.f32.mxu0 0.0
    %v3373 = vand.u32 %v2447, 4294901760
    %3374 = vmatmul.mubr.f32.gmra.mrb[0].mxu0 %v3373
    %v3375 = vpop.f32.mrb[0].mxu0
    %v3376 = vadd.f32 %v3199, %v3375
    %v3377 = vpop.f32.mrb[0].mxu0
    %3378 = vmatprep.mubr.f32.mxu0 0.0
    %v3379 = vand.u32 %v2450, 4294901760
    %3380 = vmatmul.mubr.f32.gmra.mrb[0].mxu0 %v3379
    %v3381 = vpop.f32.mrb[0].mxu0
    %v3382 = vadd.f32 %v3207, %v3381
    %v3383 = vpop.f32.mrb[0].mxu0
    %3384 = vmatprep.mubr.f32.mxu0 0.0
    %v3385 = vand.u32 %v2453, 4294901760
    %3386 = vmatmul.mubr.f32.gmra.mrb[0].mxu0 %v3385
    %v3387 = vpop.f32.mrb[0].mxu0
    %v3388 = vadd.f32 %v3215, %v3387
    %v3389 = vpop.f32.mrb[0].mxu0
    %3390 = vmatprep.mubr.f32.mxu0 0.0
    %v3391 = vand.u32 %v2456, 4294901760
    %3392 = vmatmul.mubr.f32.gmra.mrb[0].mxu0 %v3391
    %v3393 = vpop.f32.mrb[0].mxu0
    %v3394 = vadd.f32 %v3223, %v3393
    %v3395 = vpop.f32.mrb[0].mxu0
    %3396 = vmatprep.mubr.f32.mxu0 0.0
    %v3397 = vand.u32 %v2459, 4294901760
    %3398 = vmatmul.mubr.f32.gmra.mrb[0].mxu0 %v3397
    %v3399 = vpop.f32.mrb[0].mxu0
    %v3400 = vadd.f32 %v3231, %v3399
    %v3401 = vpop.f32.mrb[0].mxu0
    %3402 = vmatprep.mubr.f32.mxu0 0.0
    %v3403 = vand.u32 %v2462, 4294901760
    %3404 = vmatmul.mubr.f32.gmra.mrb[0].mxu0 %v3403
    %v3405 = vpop.f32.mrb[0].mxu0
    %v3406 = vadd.f32 %v3239, %v3405
    %v3407 = vpop.f32.mrb[0].mxu0
    %3408 = vdwg.mxu0
    %3409 = vmatprep.subr.mxu0 0.0
    %v3410 = vand.u32 %v2406, 4294901760
    %3411 = vmatpush1.msra.mxu0 %v3410
    %3412 = vmatprep.subr.mxu0 0.0
    %v3413 = vand.u32 %v2466, 4294901760
    %3414 = vmatpush1.msra.mxu0 %v3413
    %3415 = vmatprep.subr.mxu0 0.0
    %3416 = vmatpush1.msra.mxu0 0.0
    %3417 = vmatprep.subr.mxu0 0.0
    %3418 = vmatpush1.msra.mxu0 0.0
    %3419 = vmatprep.subr.mxu0 0.0
    %3420 = vmatpush1.msra.mxu0 0.0
    %3421 = vmatprep.subr.mxu0 0.0
    %3422 = vmatpush1.msra.mxu0 0.0
    %3423 = vmatprep.subr.mxu0 0.0
    %3424 = vmatpush1.msra.mxu0 0.0
    %3425 = vmatprep.subr.mxu0 0.0
    %3426 = vmatpush1.msra.mxu0 0.0
    %3427 = vmatprep.subr.mxu0 0.0
    %3428 = vmatpush1.msra.mxu0 0.0
    %3429 = vmatprep.subr.mxu0 0.0
    %3430 = vmatpush1.msra.mxu0 0.0
    %3431 = vmatprep.subr.mxu0 0.0
    %3432 = vmatpush1.msra.mxu0 0.0
    %3433 = vmatprep.subr.mxu0 0.0
    %3434 = vmatpush1.msra.mxu0 0.0
    %3435 = vmatprep.subr.mxu0 0.0
    %3436 = vmatpush1.msra.mxu0 0.0
    %3437 = vmatprep.subr.mxu0 0.0
    %3438 = vmatpush1.msra.mxu0 0.0
    %3439 = vmatprep.subr.mxu0 0.0
    %3440 = vmatpush1.msra.mxu0 0.0
    %3441 = vmatprep.subr.mxu0 0.0
    %3442 = vmatpush1.msra.mxu0 0.0
    %3443 = vmatprep.subr.mxu0 0.0
    %3444 = vmatpush1.msra.mxu0 0.0
    %3445 = vmatprep.subr.mxu0 0.0
    %3446 = vmatpush1.msra.mxu0 0.0
    %3447 = vmatprep.subr.mxu0 0.0
    %3448 = vmatpush1.msra.mxu0 0.0
    %3449 = vmatprep.subr.mxu0 0.0
    %3450 = vmatpush1.msra.mxu0 0.0
    %3451 = vmatprep.subr.mxu0 0.0
    %3452 = vmatpush1.msra.mxu0 0.0
    %3453 = vmatprep.subr.mxu0 0.0
    %3454 = vmatpush1.msra.mxu0 0.0
    %3455 = vmatprep.subr.mxu0 0.0
    %3456 = vmatpush1.msra.mxu0 0.0
    %3457 = vmatprep.subr.mxu0 0.0
    %3458 = vmatpush1.msra.mxu0 0.0
    %3459 = vmatprep.subr.mxu0 0.0
    %3460 = vmatpush1.msra.mxu0 0.0
    %3461 = vmatprep.subr.mxu0 0.0
    %3462 = vmatpush1.msra.mxu0 0.0
    %3463 = vmatprep.subr.mxu0 0.0
    %3464 = vmatpush1.msra.mxu0 0.0
    %3465 = vmatprep.subr.mxu0 0.0
    %3466 = vmatpush1.msra.mxu0 0.0
    %3467 = vmatprep.subr.mxu0 0.0
    %3468 = vmatpush1.msra.mxu0 0.0
    %3469 = vmatprep.subr.mxu0 0.0
    %3470 = vmatpush1.msra.mxu0 0.0
    %3471 = vmatprep.subr.mxu0 0.0
    %3472 = vmatpush1.msra.mxu0 0.0
    %3473 = vmatprep.subr.mxu0 0.0
    %3474 = vmatpush1.msra.mxu0 0.0
    %3475 = vmatprep.mubr.f32.mxu0 0.0
    %v3476 = vand.u32 %v2417, 4294901760
    %3477 = vmatmul.mubr.f32.gmra.mrb[0].mxu0 %v3476
    %v3478 = vpop.f32.mrb[0].mxu0
    %v3479 = vadd.f32 %v3316, %v3478
    %v3480 = vpop.f32.mrb[0].mxu0
    %3481 = vmatprep.mubr.f32.mxu0 0.0
    %v3482 = vand.u32 %v2420, 4294901760
    %3483 = vmatmul.mubr.f32.gmra.mrb[0].mxu0 %v3482
    %v3484 = vpop.f32.mrb[0].mxu0
    %v3485 = vadd.f32 %v3322, %v3484
    %v3486 = vpop.f32.mrb[0].mxu0
    %3487 = vmatprep.mubr.f32.mxu0 0.0
    %v3488 = vand.u32 %v2423, 4294901760
    %3489 = vmatmul.mubr.f32.gmra.mrb[0].mxu0 %v3488
    %v3490 = vpop.f32.mrb[0].mxu0
    %v3491 = vadd.f32 %v3328, %v3490
    %v3492 = vpop.f32.mrb[0].mxu0
    %3493 = vmatprep.mubr.f32.mxu0 0.0
    %v3494 = vand.u32 %v2426, 4294901760
    %3495 = vmatmul.mubr.f32.gmra.mrb[0].mxu0 %v3494
    %v3496 = vpop.f32.mrb[0].mxu0
    %v3497 = vadd.f32 %v3334, %v3496
    %v3498 = vpop.f32.mrb[0].mxu0
    %3499 = vmatprep.mubr.f32.mxu0 0.0
    %v3500 = vand.u32 %v2429, 4294901760
    %3501 = vmatmul.mubr.f32.gmra.mrb[0].mxu0 %v3500
    %v3502 = vpop.f32.mrb[0].mxu0
    %v3503 = vadd.f32 %v3340, %v3502
    %v3504 = vpop.f32.mrb[0].mxu0
    %3505 = vmatprep.mubr.f32.mxu0 0.0
    %v3506 = vand.u32 %v2432, 4294901760
    %3507 = vmatmul.mubr.f32.gmra.mrb[0].mxu0 %v3506
    %v3508 = vpop.f32.mrb[0].mxu0
    %v3509 = vadd.f32 %v3346, %v3508
    %v3510 = vpop.f32.mrb[0].mxu0
    %3511 = vmatprep.mubr.f32.mxu0 0.0
    %v3512 = vand.u32 %v2435, 4294901760
    %3513 = vmatmul.mubr.f32.gmra.mrb[0].mxu0 %v3512
    %v3514 = vpop.f32.mrb[0].mxu0
    %v3515 = vadd.f32 %v3352, %v3514
    %v3516 = vpop.f32.mrb[0].mxu0
    %3517 = vmatprep.mubr.f32.mxu0 0.0
    %v3518 = vand.u32 %v2438, 4294901760
    %3519 = vmatmul.mubr.f32.gmra.mrb[0].mxu0 %v3518
    %v3520 = vpop.f32.mrb[0].mxu0
    %v3521 = vadd.f32 %v3358, %v3520
    %v3522 = vpop.f32.mrb[0].mxu0
    %3523 = vmatprep.mubr.f32.mxu0 0.0
    %v3524 = vand.u32 %v2441, 4294901760
    %3525 = vmatmul.mubr.f32.gmra.mrb[0].mxu0 %v3524
    %v3526 = vpop.f32.mrb[0].mxu0
    %v3527 = vadd.f32 %v3364, %v3526
    %v3528 = vpop.f32.mrb[0].mxu0
    %3529 = vmatprep.mubr.f32.mxu0 0.0
    %v3530 = vand.u32 %v2444, 4294901760
    %3531 = vmatmul.mubr.f32.gmra.mrb[0].mxu0 %v3530
    %v3532 = vpop.f32.mrb[0].mxu0
    %v3533 = vadd.f32 %v3370, %v3532
    %v3534 = vpop.f32.mrb[0].mxu0
    %3535 = vmatprep.mubr.f32.mxu0 0.0
    %v3536 = vand.u32 %v2447, 4294901760
    %3537 = vmatmul.mubr.f32.gmra.mrb[0].mxu0 %v3536
    %v3538 = vpop.f32.mrb[0].mxu0
    %v3539 = vadd.f32 %v3376, %v3538
    %v3540 = vpop.f32.mrb[0].mxu0
    %3541 = vmatprep.mubr.f32.mxu0 0.0
    %v3542 = vand.u32 %v2450, 4294901760
    %3543 = vmatmul.mubr.f32.gmra.mrb[0].mxu0 %v3542
    %v3544 = vpop.f32.mrb[0].mxu0
    %v3545 = vadd.f32 %v3382, %v3544
    %v3546 = vpop.f32.mrb[0].mxu0
    %3547 = vmatprep.mubr.f32.mxu0 0.0
    %v3548 = vand.u32 %v2453, 4294901760
    %3549 = vmatmul.mubr.f32.gmra.mrb[0].mxu0 %v3548
    %v3550 = vpop.f32.mrb[0].mxu0
    %v3551 = vadd.f32 %v3388, %v3550
    %v3552 = vpop.f32.mrb[0].mxu0
    %3553 = vmatprep.mubr.f32.mxu0 0.0
    %v3554 = vand.u32 %v2456, 4294901760
    %3555 = vmatmul.mubr.f32.gmra.mrb[0].mxu0 %v3554
    %v3556 = vpop.f32.mrb[0].mxu0
    %v3557 = vadd.f32 %v3394, %v3556
    %v3558 = vpop.f32.mrb[0].mxu0
    %3559 = vmatprep.mubr.f32.mxu0 0.0
    %v3560 = vand.u32 %v2459, 4294901760
    %3561 = vmatmul.mubr.f32.gmra.mrb[0].mxu0 %v3560
    %v3562 = vpop.f32.mrb[0].mxu0
    %v3563 = vadd.f32 %v3400, %v3562
    %v3564 = vpop.f32.mrb[0].mxu0
    %3565 = vmatprep.mubr.f32.mxu0 0.0
    %v3566 = vand.u32 %v2462, 4294901760
    %3567 = vmatmul.mubr.f32.gmra.mrb[0].mxu0 %v3566
    %v3568 = vpop.f32.mrb[0].mxu0
    %v3569 = vadd.f32 %v3406, %v3568
    %v3570 = vpop.f32.mrb[0].mxu0
    %3571 = vdwg.mxu0
    %3572 = vst.msk [vmem:[#allocation2] sm:$0xff] %vm50, %v3479
    %3573 = vst.msk [vmem:[#allocation2 + $0x8] sm:$0xff] %vm50, %v3485
    %3574 = vst.msk [vmem:[#allocation2 + $0x10] sm:$0xff] %vm50, %v3491
    %3575 = vst.msk [vmem:[#allocation2 + $0x18] sm:$0xff] %vm50, %v3497
    %3576 = vst.msk [vmem:[#allocation2 + $0x20] sm:$0xff] %vm50, %v3503
    %3577 = vst.msk [vmem:[#allocation2 + $0x28] sm:$0xff] %vm50, %v3509
    %3578 = vst.msk [vmem:[#allocation2 + $0x30] sm:$0xff] %vm50, %v3515
    %3579 = vst.msk [vmem:[#allocation2 + $0x38] sm:$0xff] %vm50, %v3521
    %3580 = vst.msk [vmem:[#allocation2 + $0x40] sm:$0xff] %vm50, %v3527
    %3581 = vst.msk [vmem:[#allocation2 + $0x48] sm:$0xff] %vm50, %v3533
    %3582 = vst.msk [vmem:[#allocation2 + $0x50] sm:$0xff] %vm50, %v3539
    %3583 = vst.msk [vmem:[#allocation2 + $0x58] sm:$0xff] %vm50, %v3545
    %3584 = vst.msk [vmem:[#allocation2 + $0x60] sm:$0xff] %vm50, %v3551
    %3585 = vst.msk [vmem:[#allocation2 + $0x68] sm:$0xff] %vm50, %v3557
    %3586 = vst.msk [vmem:[#allocation2 + $0x70] sm:$0xff] %vm50, %v3563
    %3587 = vst.msk [vmem:[#allocation2 + $0x78] sm:$0xff] %vm50, %v3569
    // Predicated region
    $region30: #{mlp_forward_pallas.1} parent=1 // pred_check
      _
    $region31: #{mlp_forward_pallas.1} parent=1 // pred_check_branch
      %3589 = sbr.rel (0) target = $region33
    $region32: #{mlp_forward_pallas.1} parent=1 // pred_region
      // Predicated region
      $region34: #{mlp_forward_pallas.1} parent=32 // pred_check
        _
      $region35: #{mlp_forward_pallas.1} parent=32 // pred_check_branch
        %3591 = sbr.rel (0) target = $region37
      $region36: #{mlp_forward_pallas.1} parent=32 // pred_region
        // Predicated region
        $region38: #{mlp_forward_pallas.1} parent=36 // pred_check
          _
        $region39: #{mlp_forward_pallas.1} parent=36 // pred_check_branch
          %3593 = sbr.rel (0) target = $region41
        $region40: #{mlp_forward_pallas.1} parent=36 // pred_region
          // Predicated region
          $region53: #{mlp_forward_pallas.1} parent=40 // pred_check
            _
          $region54: #{mlp_forward_pallas.1} parent=40 // pred_check_branch
            %3608 = sbr.rel (0) target = $region56
          $region55: #{mlp_forward_pallas.1} parent=40 // pred_region
            loop: start=0, step=1, limit=1
            $region57: #{mlp_forward_pallas.1} parent=55 // loop_pre_header
              _
            $region58: #{mlp_forward_pallas.1} parent=55 // loop_header
              %s3610 = sphi 0, %s3614
              %p3611 = scmp.ge.s32.totalorder %s3610, 1
              %s3615 = sphi [#allocation2], [#allocation2]
              %s3616 = sphi %s7, %s7
            $region59: #{mlp_forward_pallas.1} parent=55 // loop_header_branch
              %3613 = sbr.rel (%p3611) target = $region63
            $region60: #{mlp_forward_pallas.1} parent=55 // loop_body
              %v3617 = vld [vmem:[%s3615] sm:$0xff]
              %3618 = vst [vmem:[%s3616] sm:$0xff] %v3617
            $region61: #{mlp_forward_pallas.1} parent=55 // loop_footer
              %s3614 = sadd.s32 1, %s3610
            $region62: #{mlp_forward_pallas.1} parent=55 // loop_footer_branch
              %3609 = sbr.rel target = $region58
            $region63: #{mlp_forward_pallas.1} parent=55 // loop_exit
              _
          $region56: #{mlp_forward_pallas.1} parent=40 // pred_fallthru
            _
          // Predicated region
          $region64: #{mlp_forward_pallas.1} parent=40 // pred_check
            _
          $region65: #{mlp_forward_pallas.1} parent=40 // pred_check_branch
            %3620 = sbr.rel target = $region67
          $region66: #{mlp_forward_pallas.1} parent=40 // pred_region
            _
          $region67: #{mlp_forward_pallas.1} parent=40 // pred_fallthru
            _
        $region41: #{mlp_forward_pallas.1} parent=36 // pred_fallthru
          _
        // Predicated region
        $region42: #{mlp_forward_pallas.1} parent=36 // pred_check
          _
        $region43: #{mlp_forward_pallas.1} parent=36 // pred_check_branch
          %3595 = sbr.rel target = $region45
        $region44: #{mlp_forward_pallas.1} parent=36 // pred_region
          loop: start=0, step=1, limit=1
          $region46: #{mlp_forward_pallas.1} parent=44 // loop_pre_header
            _
          $region47: #{mlp_forward_pallas.1} parent=44 // loop_header
            %s3598 = sphi 0, %s3602
            %p3599 = scmp.ge.s32.totalorder %s3598, 1
            %s3603 = sphi [#allocation2], [#allocation2]
            %s3604 = sphi %s7, %s7
          $region48: #{mlp_forward_pallas.1} parent=44 // loop_header_branch
            %3601 = sbr.rel (%p3599) target = $region52
          $region49: #{mlp_forward_pallas.1} parent=44 // loop_body
            %v3605 = vld [vmem:[%s3603] sm:$0xff]
            %3606 = vst [vmem:[%s3604] sm:$0xff] %v3605
          $region50: #{mlp_forward_pallas.1} parent=44 // loop_footer
            %s3602 = sadd.s32 1, %s3598
          $region51: #{mlp_forward_pallas.1} parent=44 // loop_footer_branch
            %3597 = sbr.rel target = $region47
          $region52: #{mlp_forward_pallas.1} parent=44 // loop_exit
            _
        $region45: #{mlp_forward_pallas.1} parent=36 // pred_fallthru
          _
      $region37: #{mlp_forward_pallas.1} parent=32 // pred_fallthru
        _
      %3621 = vnop
    $region33: #{mlp_forward_pallas.1} parent=1 // pred_fallthru
      _
    // Predicated region
    $region68: #{mlp_forward_pallas.1} parent=1 // pred_check
      _
    $region69: #{mlp_forward_pallas.1} parent=1 // pred_check_branch
      %3623 = sbr.rel (0) target = $region71
    $region70: #{mlp_forward_pallas.1} parent=1 // pred_region
      _
    $region71: #{mlp_forward_pallas.1} parent=1 // pred_fallthru
      _

</llo_original>
